<compile_context>
chip_gen: v7x
topology: tpu7x:2x2x1
jax: 0.10.0
libtpu: 0.0.40
codegen_flags: <defaults>
</compile_context>

<pallas_src>
import functools

import jax
import jax.numpy as jnp
from jax.experimental import pallas as pl
from jax.experimental.pallas import tpu as pltpu

FREQS = (0.5, 1.0, 2.0, 4.0, 8.0)


def _leaky_relu(v, slope=0.2):
    return jnp.where(v > 0, v, slope * v)


def posenc_mlp_kernel(xT_ref,
                      w1_ref, b1_ref,
                      w2_ref, b2_ref,
                      w3_ref, b3_ref,
                      w4_ref, b4_ref,
                      oT_ref,
                      enc_ref):
    """Transposed (feature-major, batch-in-lanes) PosEncMLP forward for one batch tile.

    xT_ref : (nin, B_TILE)            f32
    wK_ref : (out_dim, in_dim)        bf16   (torch weight layout, i.e. W, not W^T of it)
    bK_ref : (out_dim, 1)             f32
    oT_ref : (nout, B_TILE)           f32
    enc_ref: (nin*2*len(FREQS), B_TILE) f32 VMEM scratch
    """
    nin = xT_ref.shape[0]
    nfreq = len(FREQS)

    xt = xT_ref[...]  # (nin, B_TILE) f32

    # Positional encoding written straight into the (feature, batch) scratch.
    # Row block k*nin:(k+1)*nin holds sin(x * f_k); the cos blocks follow —
    # this matches torch.cat(sines + coses, dim=1) in the transposed layout.
    for k, f in enumerate(FREQS):
        xf = xt * jnp.float32(f)
        enc_ref[k * nin:(k + 1) * nin, :] = jnp.sin(xf)
        enc_ref[(nfreq + k) * nin:(nfreq + k + 1) * nin, :] = jnp.cos(xf)

    def layer(w_ref, b_ref, h_bf16):
        # bf16 x bf16 MXU matmul, f32 accumulate, f32 bias add (lane broadcast).
        y = jnp.dot(w_ref[...], h_bf16, preferred_element_type=jnp.float32)
        return y + b_ref[...]

    h = enc_ref[...].astype(jnp.bfloat16)                     # (nenc, B_TILE)
    h = _leaky_relu(layer(w1_ref, b1_ref, h)).astype(jnp.bfloat16)   # (nh, B_TILE)
    h = _leaky_relu(layer(w2_ref, b2_ref, h)).astype(jnp.bfloat16)   # (nh, B_TILE)
    h = _leaky_relu(layer(w3_ref, b3_ref, h)).astype(jnp.bfloat16)   # (nh, B_TILE)
    # Final layer: no activation; lane-dense f32 store.
    oT_ref[...] = layer(w4_ref, b4_ref, h).astype(oT_ref.dtype)      # (nout, B_TILE)


def _prepare_params(params):
    """Convert (din, dout) f32 weights / (dout,) f32 biases into the kernel layout:
    transposed bf16 weights (halves weight DMA) and f32 column biases."""
    w1, b1, w2, b2, w3, b3, w4, b4 = params
    wt = lambda w: jnp.asarray(w, jnp.float32).T.astype(jnp.bfloat16)   # (dout, din) bf16
    bc = lambda b: jnp.asarray(b, jnp.float32).reshape(-1, 1)           # (dout, 1)  f32
    return (wt(w1), bc(b1), wt(w2), bc(b2), wt(w3), bc(b3), wt(w4), bc(b4))


@functools.partial(jax.jit, static_argnames=("block_b",))
def posenc_mlp(x, params, *, block_b=512):
    """x: (B, nin) f32; params: (w1, b1, ..., w4, b4) with w (din, dout), b (dout,)."""
    B, nin = x.shape
    kparams = _prepare_params(params)
    w1T, b1c, w2T, b2c, w3T, b3c, w4T, b4c = kparams
    nh, nenc = w1T.shape
    nout = w4T.shape[0]
    assert nenc == nin * 2 * len(FREQS)

    # Pad the batch up to a multiple of the tile and go batch-in-lanes (transpose).
    Bp = pl.cdiv(B, block_b) * block_b
    xT = x.T  # (nin, B)
    if Bp != B:
        xT = jnp.pad(xT, ((0, 0), (0, Bp - B)))
    grid = (Bp // block_b,)

    const2d = lambda arr: pl.BlockSpec(arr.shape, lambda i: (0, 0))  # VMEM-resident

    grid_spec = pltpu.PrefetchScalarGridSpec(
        num_scalar_prefetch=0,
        grid=grid,
        in_specs=[
            pl.BlockSpec((nin, block_b), lambda i: (0, i)),   # x tile (batch-in-lanes)
            const2d(w1T), const2d(b1c),
            const2d(w2T), const2d(b2c),
            const2d(w3T), const2d(b3c),
            const2d(w4T), const2d(b4c),
        ],
        out_specs=pl.BlockSpec((nout, block_b), lambda i: (0, i)),
        scratch_shapes=[pltpu.VMEM((nenc, block_b), jnp.float32)],  # enc_T scratch
    )

    flops = 2 * Bp * (nenc * nh + nh * nh + nh * nh + nh * nout)
    transcendentals = 2 * len(FREQS) * Bp * nin
    bytes_accessed = (Bp * nin * 4 + Bp * nout * 4                      # x in, out
                      + 2 * (nenc * nh + 2 * nh * nh + nh * nout)       # bf16 weights
                      + 4 * (3 * nh + nout))                            # f32 biases
    cost = pl.CostEstimate(flops=flops, transcendentals=transcendentals,
                           bytes_accessed=bytes_accessed)

    outT = pl.pallas_call(
        posenc_mlp_kernel,
        out_shape=jax.ShapeDtypeStruct((nout, Bp), jnp.float32),
        grid_spec=grid_spec,
        compiler_params=pltpu.CompilerParams(
            dimension_semantics=("parallel",),
            vmem_limit_bytes=32 * 1024 * 1024,   # explicit; tiles sized well below v7x's 64 MiB
        ),
        cost_estimate=cost,
    )(xT, *kparams)

    return outT[:, :B].T  # (B, nout)


def make_params(key, nin, nout, nh, freqs=FREQS):
    """Deterministic synthetic parameters in torch-Linear-equivalent layout:
    w stored (din, dout) f32 (so reference computes x @ w + b), b stored (dout,) f32."""
    nenc = nin * len(freqs) * 2
    dims = [(nenc, nh), (nh, nh), (nh, nh), (nh, nout)]
    params = []
    for din, dout in dims:
        kw, kb, key = jax.random.split(key, 3)
        scale = 1.0 / jnp.sqrt(jnp.float32(din))
        w = jax.random.uniform(kw, (din, dout), jnp.float32, -scale, scale)
        b = jax.random.uniform(kb, (dout,), jnp.float32, -scale, scale)
        params += [w, b]
    return tuple(params)


def posenc_mlp_reference(x, params):
    """Pure-JAX f32 reference (matches the PyTorch module exactly)."""
    w1, b1, w2, b2, w3, b3, w4, b4 = params
    sines = [jnp.sin(x * f) for f in FREQS]
    coses = [jnp.cos(x * f) for f in FREQS]
    h = jnp.concatenate(sines + coses, axis=1)
    h = _leaky_relu(h @ w1 + b1)
    h = _leaky_relu(h @ w2 + b2)
    h = _leaky_relu(h @ w3 + b3)
    return h @ w4 + b4


if __name__ == "__main__":
    # x is (batch, nin): a batch of low-dimensional points. Batch is the only
    # "large" axis; feature dims stay the module's small ones (nin=4, nh=32, nout=8).
    B, nin, nout, nh = 2048, 4, 8, 32

    key = jax.random.PRNGKey(0)
    kx, kp = jax.random.split(key)
    x = jax.random.normal(kx, (B, nin), jnp.float32)
    params = make_params(kp, nin, nout, nh)

    out = posenc_mlp(x, params, block_b=512)
    out = jax.block_until_ready(out)
    assert out.shape == (B, nout)

    ref = posenc_mlp_reference(x, params)
    # bf16 matmul operands (f32 accumulation) => loosened tolerance vs. the f32 reference.
    max_err = float(jnp.max(jnp.abs(out - ref)))
    scale = max(float(jnp.max(jnp.abs(ref))), 1.0)
    assert max_err <= 2e-2 * scale, f"mismatch vs reference: max_err={max_err}, scale={scale}"

    print("KERNEL_OK")
</pallas_src>

<mosaic_0001>
module attributes {stable_mosaic.version = 11 : i64} {
  func.func @posenc_mlp_kernel(%arg0: i32, %arg1: memref<4x512xf32, #tpu.memory_space<vmem>>, %arg2: memref<32x40xbf16, #tpu.memory_space<vmem>>, %arg3: memref<32x1xf32, #tpu.memory_space<vmem>>, %arg4: memref<32x32xbf16, #tpu.memory_space<vmem>>, %arg5: memref<32x1xf32, #tpu.memory_space<vmem>>, %arg6: memref<32x32xbf16, #tpu.memory_space<vmem>>, %arg7: memref<32x1xf32, #tpu.memory_space<vmem>>, %arg8: memref<8x32xbf16, #tpu.memory_space<vmem>>, %arg9: memref<8x1xf32, #tpu.memory_space<vmem>>, %arg10: memref<8x512xf32, #tpu.memory_space<vmem>>, %arg11: memref<40x512xf32, #tpu.memory_space<vmem>>) attributes {dimension_semantics = [#tpu.dimension_semantics<parallel>], iteration_bounds = array<i64: 4>, scalar_prefetch = 0 : i64, scratch_operands = 1 : i64, tpu.core_type = #tpu.core_type<tc>, window_params = [{transform_indices = @transform_0, window_bounds = array<i64: 4, 512>}, {pipeline_mode = #tpu.pipeline_mode<synchronous>, transform_indices = @transform_1, window_bounds = array<i64: 32, 40>}, {pipeline_mode = #tpu.pipeline_mode<synchronous>, transform_indices = @transform_2, window_bounds = array<i64: 32, 1>}, {pipeline_mode = #tpu.pipeline_mode<synchronous>, transform_indices = @transform_3, window_bounds = array<i64: 32, 32>}, {pipeline_mode = #tpu.pipeline_mode<synchronous>, transform_indices = @transform_4, window_bounds = array<i64: 32, 1>}, {pipeline_mode = #tpu.pipeline_mode<synchronous>, transform_indices = @transform_5, window_bounds = array<i64: 32, 32>}, {pipeline_mode = #tpu.pipeline_mode<synchronous>, transform_indices = @transform_6, window_bounds = array<i64: 32, 1>}, {pipeline_mode = #tpu.pipeline_mode<synchronous>, transform_indices = @transform_7, window_bounds = array<i64: 8, 32>}, {pipeline_mode = #tpu.pipeline_mode<synchronous>, transform_indices = @transform_8, window_bounds = array<i64: 8, 1>}, {transform_indices = @transform_9, window_bounds = array<i64: 8, 512>}]} {
    %c0 = arith.constant 0 : index
    %c0_0 = arith.constant 0 : index
    %0 = vector.load %arg1[%c0, %c0_0] : memref<4x512xf32, #tpu.memory_space<vmem>>, vector<4x512xf32>
    %cst = arith.constant 5.000000e-01 : f32
    %1 = vector.broadcast %cst : f32 to vector<4x512xf32>
    %2 = arith.mulf %0, %1 : vector<4x512xf32>
    %3 = math.sin %2 : vector<4x512xf32>
    %c0_1 = arith.constant 0 : index
    %c0_2 = arith.constant 0 : index
    %4 = vector.load %arg11[%c0_1, %c0_2] : memref<40x512xf32, #tpu.memory_space<vmem>>, vector<4x512xf32>
    tpu.vector_store %arg11[%c0_1, %c0_2], %3 {strides = array<i32>} : memref<40x512xf32, #tpu.memory_space<vmem>>, vector<4x512xf32>,
    %5 = math.cos %2 : vector<4x512xf32>
    %c20 = arith.constant 20 : index
    %c0_3 = arith.constant 0 : index
    %6 = vector.load %arg11[%c20, %c0_3] : memref<40x512xf32, #tpu.memory_space<vmem>>, vector<4x512xf32>
    tpu.vector_store %arg11[%c20, %c0_3], %5 {strides = array<i32>} : memref<40x512xf32, #tpu.memory_space<vmem>>, vector<4x512xf32>,
    %cst_4 = arith.constant 1.000000e+00 : f32
    %7 = vector.broadcast %cst_4 : f32 to vector<4x512xf32>
    %8 = arith.mulf %0, %7 : vector<4x512xf32>
    %9 = math.sin %8 : vector<4x512xf32>
    %c4 = arith.constant 4 : index
    %c0_5 = arith.constant 0 : index
    %10 = vector.load %arg11[%c4, %c0_5] : memref<40x512xf32, #tpu.memory_space<vmem>>, vector<4x512xf32>
    tpu.vector_store %arg11[%c4, %c0_5], %9 {strides = array<i32>} : memref<40x512xf32, #tpu.memory_space<vmem>>, vector<4x512xf32>,
    %11 = math.cos %8 : vector<4x512xf32>
    %c24 = arith.constant 24 : index
    %c0_6 = arith.constant 0 : index
    %12 = vector.load %arg11[%c24, %c0_6] : memref<40x512xf32, #tpu.memory_space<vmem>>, vector<4x512xf32>
    tpu.vector_store %arg11[%c24, %c0_6], %11 {strides = array<i32>} : memref<40x512xf32, #tpu.memory_space<vmem>>, vector<4x512xf32>,
    %cst_7 = arith.constant 2.000000e+00 : f32
    %13 = vector.broadcast %cst_7 : f32 to vector<4x512xf32>
    %14 = arith.mulf %0, %13 : vector<4x512xf32>
    %15 = math.sin %14 : vector<4x512xf32>
    %c8 = arith.constant 8 : index
    %c0_8 = arith.constant 0 : index
    %16 = vector.load %arg11[%c8, %c0_8] : memref<40x512xf32, #tpu.memory_space<vmem>>, vector<4x512xf32>
    tpu.vector_store %arg11[%c8, %c0_8], %15 {strides = array<i32>} : memref<40x512xf32, #tpu.memory_space<vmem>>, vector<4x512xf32>,
    %17 = math.cos %14 : vector<4x512xf32>
    %c28 = arith.constant 28 : index
    %c0_9 = arith.constant 0 : index
    %18 = vector.load %arg11[%c28, %c0_9] : memref<40x512xf32, #tpu.memory_space<vmem>>, vector<4x512xf32>
    tpu.vector_store %arg11[%c28, %c0_9], %17 {strides = array<i32>} : memref<40x512xf32, #tpu.memory_space<vmem>>, vector<4x512xf32>,
    %cst_10 = arith.constant 4.000000e+00 : f32
    %19 = vector.broadcast %cst_10 : f32 to vector<4x512xf32>
    %20 = arith.mulf %0, %19 : vector<4x512xf32>
    %21 = math.sin %20 : vector<4x512xf32>
    %c12 = arith.constant 12 : index
    %c0_11 = arith.constant 0 : index
    %22 = vector.load %arg11[%c12, %c0_11] : memref<40x512xf32, #tpu.memory_space<vmem>>, vector<4x512xf32>
    tpu.vector_store %arg11[%c12, %c0_11], %21 {strides = array<i32>} : memref<40x512xf32, #tpu.memory_space<vmem>>, vector<4x512xf32>,
    %23 = math.cos %20 : vector<4x512xf32>
    %c32 = arith.constant 32 : index
    %c0_12 = arith.constant 0 : index
    %24 = vector.load %arg11[%c32, %c0_12] : memref<40x512xf32, #tpu.memory_space<vmem>>, vector<4x512xf32>
    tpu.vector_store %arg11[%c32, %c0_12], %23 {strides = array<i32>} : memref<40x512xf32, #tpu.memory_space<vmem>>, vector<4x512xf32>,
    %cst_13 = arith.constant 8.000000e+00 : f32
    %25 = vector.broadcast %cst_13 : f32 to vector<4x512xf32>
    %26 = arith.mulf %0, %25 : vector<4x512xf32>
    %27 = math.sin %26 : vector<4x512xf32>
    %c16 = arith.constant 16 : index
    %c0_14 = arith.constant 0 : index
    %28 = vector.load %arg11[%c16, %c0_14] : memref<40x512xf32, #tpu.memory_space<vmem>>, vector<4x512xf32>
    tpu.vector_store %arg11[%c16, %c0_14], %27 {strides = array<i32>} : memref<40x512xf32, #tpu.memory_space<vmem>>, vector<4x512xf32>,
    %29 = math.cos %26 : vector<4x512xf32>
    %c36 = arith.constant 36 : index
    %c0_15 = arith.constant 0 : index
    %30 = vector.load %arg11[%c36, %c0_15] : memref<40x512xf32, #tpu.memory_space<vmem>>, vector<4x512xf32>
    tpu.vector_store %arg11[%c36, %c0_15], %29 {strides = array<i32>} : memref<40x512xf32, #tpu.memory_space<vmem>>, vector<4x512xf32>,
    %c0_16 = arith.constant 0 : index
    %c0_17 = arith.constant 0 : index
    %31 = vector.load %arg11[%c0_16, %c0_17] : memref<40x512xf32, #tpu.memory_space<vmem>>, vector<40x512xf32>
    %32 = arith.truncf %31 : vector<40x512xf32> to vector<40x512xbf16>
    %c0_18 = arith.constant 0 : index
    %c0_19 = arith.constant 0 : index
    %33 = vector.load %arg2[%c0_18, %c0_19] : memref<32x40xbf16, #tpu.memory_space<vmem>>, vector<32x40xbf16>
    %cst_20 = arith.constant dense<0.000000e+00> : vector<32x512xf32>
    %34 = tpu.matmul %33, %32, %cst_20 {dimension_numbers = #tpu.dot_dimension_numbers<[1], [0], [0], [1], [0, 0, 1, 1], [], []>} : vector<32x40xbf16>, vector<40x512xbf16>, vector<32x512xf32> -> vector<32x512xf32>
    %c0_21 = arith.constant 0 : index
    %c0_22 = arith.constant 0 : index
    %35 = vector.load %arg3[%c0_21, %c0_22] : memref<32x1xf32, #tpu.memory_space<vmem>>, vector<32x1xf32>
    %36 = vector.broadcast %35 : vector<32x1xf32> to vector<32x512xf32>
    %37 = arith.addf %34, %36 : vector<32x512xf32>
    %cst_23 = arith.constant 0.000000e+00 : f32
    %38 = vector.broadcast %cst_23 : f32 to vector<32x512xf32>
    %39 = arith.cmpf ogt, %37, %38 : vector<32x512xf32>
    %cst_24 = arith.constant 2.000000e-01 : f32
    %40 = vector.broadcast %cst_24 : f32 to vector<32x512xf32>
    %41 = arith.mulf %40, %37 : vector<32x512xf32>
    %42 = arith.select %39, %37, %41 : vector<32x512xi1>, vector<32x512xf32>
    %43 = arith.truncf %42 : vector<32x512xf32> to vector<32x512xbf16>
    %c0_25 = arith.constant 0 : index
    %c0_26 = arith.constant 0 : index
    %44 = vector.load %arg4[%c0_25, %c0_26] : memref<32x32xbf16, #tpu.memory_space<vmem>>, vector<32x32xbf16>
    %cst_27 = arith.constant dense<0.000000e+00> : vector<32x512xf32>
    %45 = tpu.matmul %44, %43, %cst_27 {dimension_numbers = #tpu.dot_dimension_numbers<[1], [0], [0], [1], [0, 0, 1, 1], [], []>} : vector<32x32xbf16>, vector<32x512xbf16>, vector<32x512xf32> -> vector<32x512xf32>
    %c0_28 = arith.constant 0 : index
    %c0_29 = arith.constant 0 : index
    %46 = vector.load %arg5[%c0_28, %c0_29] : memref<32x1xf32, #tpu.memory_space<vmem>>, vector<32x1xf32>
    %47 = vector.broadcast %46 : vector<32x1xf32> to vector<32x512xf32>
    %48 = arith.addf %45, %47 : vector<32x512xf32>
    %cst_30 = arith.constant 0.000000e+00 : f32
    %49 = vector.broadcast %cst_30 : f32 to vector<32x512xf32>
    %50 = arith.cmpf ogt, %48, %49 : vector<32x512xf32>
    %cst_31 = arith.constant 2.000000e-01 : f32
    %51 = vector.broadcast %cst_31 : f32 to vector<32x512xf32>
    %52 = arith.mulf %51, %48 : vector<32x512xf32>
    %53 = arith.select %50, %48, %52 : vector<32x512xi1>, vector<32x512xf32>
    %54 = arith.truncf %53 : vector<32x512xf32> to vector<32x512xbf16>
    %c0_32 = arith.constant 0 : index
    %c0_33 = arith.constant 0 : index
    %55 = vector.load %arg6[%c0_32, %c0_33] : memref<32x32xbf16, #tpu.memory_space<vmem>>, vector<32x32xbf16>
    %cst_34 = arith.constant dense<0.000000e+00> : vector<32x512xf32>
    %56 = tpu.matmul %55, %54, %cst_34 {dimension_numbers = #tpu.dot_dimension_numbers<[1], [0], [0], [1], [0, 0, 1, 1], [], []>} : vector<32x32xbf16>, vector<32x512xbf16>, vector<32x512xf32> -> vector<32x512xf32>
    %c0_35 = arith.constant 0 : index
    %c0_36 = arith.constant 0 : index
    %57 = vector.load %arg7[%c0_35, %c0_36] : memref<32x1xf32, #tpu.memory_space<vmem>>, vector<32x1xf32>
    %58 = vector.broadcast %57 : vector<32x1xf32> to vector<32x512xf32>
    %59 = arith.addf %56, %58 : vector<32x512xf32>
    %cst_37 = arith.constant 0.000000e+00 : f32
    %60 = vector.broadcast %cst_37 : f32 to vector<32x512xf32>
    %61 = arith.cmpf ogt, %59, %60 : vector<32x512xf32>
    %cst_38 = arith.constant 2.000000e-01 : f32
    %62 = vector.broadcast %cst_38 : f32 to vector<32x512xf32>
    %63 = arith.mulf %62, %59 : vector<32x512xf32>
    %64 = arith.select %61, %59, %63 : vector<32x512xi1>, vector<32x512xf32>
    %65 = arith.truncf %64 : vector<32x512xf32> to vector<32x512xbf16>
    %c0_39 = arith.constant 0 : index
    %c0_40 = arith.constant 0 : index
    %66 = vector.load %arg8[%c0_39, %c0_40] : memref<8x32xbf16, #tpu.memory_space<vmem>>, vector<8x32xbf16>
    %cst_41 = arith.constant dense<0.000000e+00> : vector<8x512xf32>
    %67 = tpu.matmul %66, %65, %cst_41 {dimension_numbers = #tpu.dot_dimension_numbers<[1], [0], [0], [1], [0, 0, 1, 1], [], []>} : vector<8x32xbf16>, vector<32x512xbf16>, vector<8x512xf32> -> vector<8x512xf32>
    %c0_42 = arith.constant 0 : index
    %c0_43 = arith.constant 0 : index
    %68 = vector.load %arg9[%c0_42, %c0_43] : memref<8x1xf32, #tpu.memory_space<vmem>>, vector<8x1xf32>
    %69 = vector.broadcast %68 : vector<8x1xf32> to vector<8x512xf32>
    %70 = arith.addf %67, %69 : vector<8x512xf32>
    %c0_44 = arith.constant 0 : index
    %c0_45 = arith.constant 0 : index
    %71 = vector.load %arg10[%c0_44, %c0_45] : memref<8x512xf32, #tpu.memory_space<vmem>>, vector<8x512xf32>
    tpu.vector_store %arg10[%c0_44, %c0_45], %70 {strides = array<i32>} : memref<8x512xf32, #tpu.memory_space<vmem>>, vector<8x512xf32>,
    return
  }
  func.func @transform_0(%arg0: i32) -> (i32, i32) {
    %c0_i32 = arith.constant 0 : i32
    %c0_i32_0 = arith.constant 0 : i32
    return %c0_i32, %arg0 : i32, i32
  }
  func.func @transform_1(%arg0: i32) -> (i32, i32) {
    %c0_i32 = arith.constant 0 : i32
    %c0_i32_0 = arith.constant 0 : i32
    %c0_i32_1 = arith.constant 0 : i32
    return %c0_i32, %c0_i32_0 : i32, i32
  }
  func.func @transform_2(%arg0: i32) -> (i32, i32) {
    %c0_i32 = arith.constant 0 : i32
    %c0_i32_0 = arith.constant 0 : i32
    %c0_i32_1 = arith.constant 0 : i32
    return %c0_i32, %c0_i32_0 : i32, i32
  }
  func.func @transform_3(%arg0: i32) -> (i32, i32) {
    %c0_i32 = arith.constant 0 : i32
    %c0_i32_0 = arith.constant 0 : i32
    %c0_i32_1 = arith.constant 0 : i32
    return %c0_i32, %c0_i32_0 : i32, i32
  }
  func.func @transform_4(%arg0: i32) -> (i32, i32) {
    %c0_i32 = arith.constant 0 : i32
    %c0_i32_0 = arith.constant 0 : i32
    %c0_i32_1 = arith.constant 0 : i32
    return %c0_i32, %c0_i32_0 : i32, i32
  }
  func.func @transform_5(%arg0: i32) -> (i32, i32) {
    %c0_i32 = arith.constant 0 : i32
    %c0_i32_0 = arith.constant 0 : i32
    %c0_i32_1 = arith.constant 0 : i32
    return %c0_i32, %c0_i32_0 : i32, i32
  }
  func.func @transform_6(%arg0: i32) -> (i32, i32) {
    %c0_i32 = arith.constant 0 : i32
    %c0_i32_0 = arith.constant 0 : i32
    %c0_i32_1 = arith.constant 0 : i32
    return %c0_i32, %c0_i32_0 : i32, i32
  }
  func.func @transform_7(%arg0: i32) -> (i32, i32) {
    %c0_i32 = arith.constant 0 : i32
    %c0_i32_0 = arith.constant 0 : i32
    %c0_i32_1 = arith.constant 0 : i32
    return %c0_i32, %c0_i32_0 : i32, i32
  }
  func.func @transform_8(%arg0: i32) -> (i32, i32) {
    %c0_i32 = arith.constant 0 : i32
    %c0_i32_0 = arith.constant 0 : i32
    %c0_i32_1 = arith.constant 0 : i32
    return %c0_i32, %c0_i32_0 : i32, i32
  }
  func.func @transform_9(%arg0: i32) -> (i32, i32) {
    %c0_i32 = arith.constant 0 : i32
    %c0_i32_0 = arith.constant 0 : i32
    return %c0_i32, %arg0 : i32, i32
  }
}

</mosaic_0001>

<llo_original>
// kernel: posenc_mlp.1
$region0: #{posenc_mlp.1}
  #allocation0 [shape = 'u32[]', space=smem, size = 0x4, offset = 0x4, fixed_abs, tag = 'smem constant byte address 0x4 - core index']
  #allocation1 [shape = 'u32[144,128]{1,0:T(1,128)}', space=vmem, size = 0x12000, scoped, tag = 'internal scratch']
  #allocation2 [shape = 'f32[40,512]{1,0:T(8,128)}', space=vmem, size = 0x14000, scoped, tag = 'scratch operand']
  %s0 = inlined_call_operand.vmem [shape: f32[4,2048], index: 0, kind: input, shape index: {}]
  %s1 = inlined_call_operand.vmem [shape: bf16[32,40], index: 1, kind: input, shape index: {}]
  %s2 = inlined_call_operand.vmem [shape: f32[32,1], index: 2, kind: input, shape index: {}]
  %s3 = inlined_call_operand.vmem [shape: bf16[32,32], index: 3, kind: input, shape index: {}]
  %s4 = inlined_call_operand.vmem [shape: f32[32,1], index: 4, kind: input, shape index: {}]
  %s5 = inlined_call_operand.vmem [shape: bf16[32,32], index: 5, kind: input, shape index: {}]
  %s6 = inlined_call_operand.vmem [shape: f32[32,1], index: 6, kind: input, shape index: {}]
  %s7 = inlined_call_operand.vmem [shape: bf16[8,32], index: 7, kind: input, shape index: {}]
  %s8 = inlined_call_operand.vmem [shape: f32[8,1], index: 8, kind: input, shape index: {}]
  %s9 = inlined_call_operand.hbm [shape: f32[8,2048], index: 9, kind: output, shape index: {}]
  %s10 = sld [smem:[#allocation0]]
  $region69: #{posenc_mlp.1} parent=0
    _
  %s12 = ssub.s32 1, %s10
  %s13 = scalar_select 0, %s12, %s10
  $region1: #{posenc_mlp.1} parent=0
    #allocation3 [shape = 'u8[32768]{0}', space=vmem, size = 0x8000, scoped, tag = 'output window, operand 0']
    #allocation4 [shape = 's32[2]{0}', space=sflag, size = 0x8, scoped, tag = 'scoped memory for posenc_mlp.1']
    %14 = vsyncpa [#allocation4], 0
    %s15 = scalar_lea.sflag [#allocation4], 1
    %16 = vsyncpa %s15, 0
    loop: start=0, step=1, limit=6
    $region2: #{posenc_mlp.1} parent=1 // loop_pre_header
      _
    $region3: #{posenc_mlp.1} parent=1 // loop_header
      %s18 = sphi 0, %s22
      %p19 = scmp.ge.s32.totalorder %s18, 6
      %s28 = sphi 0, %s30
      %s31 = sphi 0, %s28
      %s32 = sphi 0, %s31
      %s48 = sphi 0, %s32
      %s52 = sphi 0, %s52
      %s54 = sphi 0, %s52
      %s55 = sphi 0, %s54
      %s69 = sphi 0, %s55
      %s73 = sphi 0, %s73
      %s75 = sphi 0, %s73
      %s76 = sphi 0, %s75
      %s90 = sphi 0, %s76
      %s94 = sphi 0, %s94
      %s96 = sphi 0, %s94
      %s97 = sphi 0, %s96
      %s111 = sphi 0, %s97
      %s115 = sphi 0, %s115
      %s117 = sphi 0, %s115
      %s118 = sphi 0, %s117
      %s132 = sphi 0, %s118
      %s136 = sphi 0, %s136
      %s138 = sphi 0, %s136
      %s139 = sphi 0, %s138
      %s153 = sphi 0, %s139
      %s157 = sphi 0, %s157
      %s159 = sphi 0, %s157
      %s160 = sphi 0, %s159
      %s174 = sphi 0, %s160
      %s178 = sphi 0, %s178
      %s180 = sphi 0, %s178
      %s181 = sphi 0, %s180
      %s195 = sphi 0, %s181
      %s199 = sphi 0, %s199
      %s201 = sphi 0, %s199
      %s202 = sphi 0, %s201
      %s216 = sphi 0, %s202
      %s222 = sphi 0, %s224
      %s225 = sphi 0, %s222
      %s226 = sphi 0, %s225
      %s242 = sphi 0, %s226
    $region4: #{posenc_mlp.1} parent=1 // loop_header_branch
      %21 = sbr.rel (%p19) target = $region8
    $region5: #{posenc_mlp.1} parent=1 // loop_body
      %s23 = ssub.s32 %s18, 1
      %s24 = ssub.s32 %s18, 2
      %s25 = sadd.s32 %s18, 1
      %s26 = ssub.s32 %s18, %s25
      %p27 = scmp.eq.s32.totalorder %s26, 0
      %s29 = sadd.s32 %s28, 1
      %s30 = scalar_select %p27, %s28, %s29
      %p33 = pneg %p27
      %p34 = scmp.eq.s32.totalorder %s18, 3
      %p35 = por %p33, %p34
      %p36 = scmp.ne.s32.totalorder %s28, %s31
      %p37 = scmp.eq.s32.totalorder %s18, 0
      %p38 = por %p36, %p37
      %p39 = scmp.ne.s32.totalorder %s28, %s31
      %p40 = scmp.eq.s32.totalorder %s23, 3
      %p41 = por %p39, %p40
      %p42 = scmp.ne.s32.totalorder %s31, %s32
      %p43 = scmp.eq.s32.totalorder %s23, 0
      %p44 = por %p42, %p43
      %p45 = scmp.ne.s32.totalorder %s31, %s32
      %p46 = scmp.eq.s32.totalorder %s24, 3
      %p47 = por %p45, %p46
      %p49 = scmp.ne.s32.totalorder %s32, %s48
      %p50 = scmp.eq.s32.totalorder %s24, 0
      %p51 = por %p49, %p50
      %s53 = sadd.s32 %s52, 1
      %p56 = scmp.eq.s32.totalorder %s18, 3
      %p57 = scmp.ne.s32.totalorder %s52, %s54
      %p58 = scmp.eq.s32.totalorder %s18, 0
      %p59 = por %p57, %p58
      %p60 = scmp.ne.s32.totalorder %s52, %s54
      %p61 = scmp.eq.s32.totalorder %s23, 3
      %p62 = por %p60, %p61
      %p63 = scmp.ne.s32.totalorder %s54, %s55
      %p64 = scmp.eq.s32.totalorder %s23, 0
      %p65 = por %p63, %p64
      %p66 = scmp.ne.s32.totalorder %s54, %s55
      %p67 = scmp.eq.s32.totalorder %s24, 3
      %p68 = por %p66, %p67
      %p70 = scmp.ne.s32.totalorder %s55, %s69
      %p71 = scmp.eq.s32.totalorder %s24, 0
      %p72 = por %p70, %p71
      %s74 = sadd.s32 %s73, 1
      %p77 = scmp.eq.s32.totalorder %s18, 3
      %p78 = scmp.ne.s32.totalorder %s73, %s75
      %p79 = scmp.eq.s32.totalorder %s18, 0
      %p80 = por %p78, %p79
      %p81 = scmp.ne.s32.totalorder %s73, %s75
      %p82 = scmp.eq.s32.totalorder %s23, 3
      %p83 = por %p81, %p82
      %p84 = scmp.ne.s32.totalorder %s75, %s76
      %p85 = scmp.eq.s32.totalorder %s23, 0
      %p86 = por %p84, %p85
      %p87 = scmp.ne.s32.totalorder %s75, %s76
      %p88 = scmp.eq.s32.totalorder %s24, 3
      %p89 = por %p87, %p88
      %p91 = scmp.ne.s32.totalorder %s76, %s90
      %p92 = scmp.eq.s32.totalorder %s24, 0
      %p93 = por %p91, %p92
      %s95 = sadd.s32 %s94, 1
      %p98 = scmp.eq.s32.totalorder %s18, 3
      %p99 = scmp.ne.s32.totalorder %s94, %s96
      %p100 = scmp.eq.s32.totalorder %s18, 0
      %p101 = por %p99, %p100
      %p102 = scmp.ne.s32.totalorder %s94, %s96
      %p103 = scmp.eq.s32.totalorder %s23, 3
      %p104 = por %p102, %p103
      %p105 = scmp.ne.s32.totalorder %s96, %s97
      %p106 = scmp.eq.s32.totalorder %s23, 0
      %p107 = por %p105, %p106
      %p108 = scmp.ne.s32.totalorder %s96, %s97
      %p109 = scmp.eq.s32.totalorder %s24, 3
      %p110 = por %p108, %p109
      %p112 = scmp.ne.s32.totalorder %s97, %s111
      %p113 = scmp.eq.s32.totalorder %s24, 0
      %p114 = por %p112, %p113
      %s116 = sadd.s32 %s115, 1
      %p119 = scmp.eq.s32.totalorder %s18, 3
      %p120 = scmp.ne.s32.totalorder %s115, %s117
      %p121 = scmp.eq.s32.totalorder %s18, 0
      %p122 = por %p120, %p121
      %p123 = scmp.ne.s32.totalorder %s115, %s117
      %p124 = scmp.eq.s32.totalorder %s23, 3
      %p125 = por %p123, %p124
      %p126 = scmp.ne.s32.totalorder %s117, %s118
      %p127 = scmp.eq.s32.totalorder %s23, 0
      %p128 = por %p126, %p127
      %p129 = scmp.ne.s32.totalorder %s117, %s118
      %p130 = scmp.eq.s32.totalorder %s24, 3
      %p131 = por %p129, %p130
      %p133 = scmp.ne.s32.totalorder %s118, %s132
      %p134 = scmp.eq.s32.totalorder %s24, 0
      %p135 = por %p133, %p134
      %s137 = sadd.s32 %s136, 1
      %p140 = scmp.eq.s32.totalorder %s18, 3
      %p141 = scmp.ne.s32.totalorder %s136, %s138
      %p142 = scmp.eq.s32.totalorder %s18, 0
      %p143 = por %p141, %p142
      %p144 = scmp.ne.s32.totalorder %s136, %s138
      %p145 = scmp.eq.s32.totalorder %s23, 3
      %p146 = por %p144, %p145
      %p147 = scmp.ne.s32.totalorder %s138, %s139
      %p148 = scmp.eq.s32.totalorder %s23, 0
      %p149 = por %p147, %p148
      %p150 = scmp.ne.s32.totalorder %s138, %s139
      %p151 = scmp.eq.s32.totalorder %s24, 3
      %p152 = por %p150, %p151
      %p154 = scmp.ne.s32.totalorder %s139, %s153
      %p155 = scmp.eq.s32.totalorder %s24, 0
      %p156 = por %p154, %p155
      %s158 = sadd.s32 %s157, 1
      %p161 = scmp.eq.s32.totalorder %s18, 3
      %p162 = scmp.ne.s32.totalorder %s157, %s159
      %p163 = scmp.eq.s32.totalorder %s18, 0
      %p164 = por %p162, %p163
      %p165 = scmp.ne.s32.totalorder %s157, %s159
      %p166 = scmp.eq.s32.totalorder %s23, 3
      %p167 = por %p165, %p166
      %p168 = scmp.ne.s32.totalorder %s159, %s160
      %p169 = scmp.eq.s32.totalorder %s23, 0
      %p170 = por %p168, %p169
      %p171 = scmp.ne.s32.totalorder %s159, %s160
      %p172 = scmp.eq.s32.totalorder %s24, 3
      %p173 = por %p171, %p172
      %p175 = scmp.ne.s32.totalorder %s160, %s174
      %p176 = scmp.eq.s32.totalorder %s24, 0
      %p177 = por %p175, %p176
      %s179 = sadd.s32 %s178, 1
      %p182 = scmp.eq.s32.totalorder %s18, 3
      %p183 = scmp.ne.s32.totalorder %s178, %s180
      %p184 = scmp.eq.s32.totalorder %s18, 0
      %p185 = por %p183, %p184
      %p186 = scmp.ne.s32.totalorder %s178, %s180
      %p187 = scmp.eq.s32.totalorder %s23, 3
      %p188 = por %p186, %p187
      %p189 = scmp.ne.s32.totalorder %s180, %s181
      %p190 = scmp.eq.s32.totalorder %s23, 0
      %p191 = por %p189, %p190
      %p192 = scmp.ne.s32.totalorder %s180, %s181
      %p193 = scmp.eq.s32.totalorder %s24, 3
      %p194 = por %p192, %p193
      %p196 = scmp.ne.s32.totalorder %s181, %s195
      %p197 = scmp.eq.s32.totalorder %s24, 0
      %p198 = por %p196, %p197
      %s200 = sadd.s32 %s199, 1
      %p203 = scmp.eq.s32.totalorder %s18, 3
      %p204 = scmp.ne.s32.totalorder %s199, %s201
      %p205 = scmp.eq.s32.totalorder %s18, 0
      %p206 = por %p204, %p205
      %p207 = scmp.ne.s32.totalorder %s199, %s201
      %p208 = scmp.eq.s32.totalorder %s23, 3
      %p209 = por %p207, %p208
      %p210 = scmp.ne.s32.totalorder %s201, %s202
      %p211 = scmp.eq.s32.totalorder %s23, 0
      %p212 = por %p210, %p211
      %p213 = scmp.ne.s32.totalorder %s201, %s202
      %p214 = scmp.eq.s32.totalorder %s24, 3
      %p215 = por %p213, %p214
      %p217 = scmp.ne.s32.totalorder %s202, %s216
      %p218 = scmp.eq.s32.totalorder %s24, 0
      %p219 = por %p217, %p218
      %s220 = ssub.s32 %s18, %s25
      %p221 = scmp.eq.s32.totalorder %s220, 0
      %s223 = sadd.s32 %s222, 1
      %s224 = scalar_select %p221, %s222, %s223
      %p227 = pneg %p221
      %p228 = scmp.eq.s32.totalorder %s18, 3
      %p229 = por %p227, %p228
      %p230 = scmp.ne.s32.totalorder %s222, %s225
      %p231 = scmp.eq.s32.totalorder %s18, 0
      %p232 = por %p230, %p231
      %p233 = scmp.ne.s32.totalorder %s222, %s225
      %p234 = scmp.eq.s32.totalorder %s23, 3
      %p235 = por %p233, %p234
      %p236 = scmp.ne.s32.totalorder %s225, %s226
      %p237 = scmp.eq.s32.totalorder %s23, 0
      %p238 = por %p236, %p237
      %p239 = scmp.ne.s32.totalorder %s225, %s226
      %p240 = scmp.eq.s32.totalorder %s24, 3
      %p241 = por %p239, %p240
      %p243 = scmp.ne.s32.totalorder %s226, %s242
      %p244 = scmp.eq.s32.totalorder %s24, 0
      %p245 = por %p243, %p244
      %p246 = scmp.le.s32.totalorder 1, %s18
      %p247 = scmp.lt.s32.totalorder %s18, 5
      %p248 = pnand %p246, %p247
      %p249 = pneg %p248
      // Predicated region
      $region9: #{posenc_mlp.1} parent=5 // pred_check
        _
      $region10: #{posenc_mlp.1} parent=5 // pred_check_branch
        %251 = sbr.rel (%p248) target = $region12
      $region11: #{posenc_mlp.1} parent=5 // pred_region
        %s252 = ssub.s32 %s18, 1
        // Predicated region
        $region13: #{posenc_mlp.1} parent=11 // pred_check
          %p253 = pneg %p65
        $region14: #{posenc_mlp.1} parent=11 // pred_check_branch
          %255 = sbr.rel (%p253) target = $region16
        $region15: #{posenc_mlp.1} parent=11 // pred_region
          _
        $region16: #{posenc_mlp.1} parent=11 // pred_fallthru
          _
        // Predicated region
        $region17: #{posenc_mlp.1} parent=11 // pred_check
          %p256 = pneg %p86
        $region18: #{posenc_mlp.1} parent=11 // pred_check_branch
          %258 = sbr.rel (%p256) target = $region20
        $region19: #{posenc_mlp.1} parent=11 // pred_region
          _
        $region20: #{posenc_mlp.1} parent=11 // pred_fallthru
          _
        // Predicated region
        $region21: #{posenc_mlp.1} parent=11 // pred_check
          %p259 = pneg %p107
        $region22: #{posenc_mlp.1} parent=11 // pred_check_branch
          %261 = sbr.rel (%p259) target = $region24
        $region23: #{posenc_mlp.1} parent=11 // pred_region
          _
        $region24: #{posenc_mlp.1} parent=11 // pred_fallthru
          _
        // Predicated region
        $region25: #{posenc_mlp.1} parent=11 // pred_check
          %p262 = pneg %p128
        $region26: #{posenc_mlp.1} parent=11 // pred_check_branch
          %264 = sbr.rel (%p262) target = $region28
        $region27: #{posenc_mlp.1} parent=11 // pred_region
          _
        $region28: #{posenc_mlp.1} parent=11 // pred_fallthru
          _
        // Predicated region
        $region29: #{posenc_mlp.1} parent=11 // pred_check
          %p265 = pneg %p149
        $region30: #{posenc_mlp.1} parent=11 // pred_check_branch
          %267 = sbr.rel (%p265) target = $region32
        $region31: #{posenc_mlp.1} parent=11 // pred_region
          _
        $region32: #{posenc_mlp.1} parent=11 // pred_fallthru
          _
        // Predicated region
        $region33: #{posenc_mlp.1} parent=11 // pred_check
          %p268 = pneg %p170
        $region34: #{posenc_mlp.1} parent=11 // pred_check_branch
          %270 = sbr.rel (%p268) target = $region36
        $region35: #{posenc_mlp.1} parent=11 // pred_region
          _
        $region36: #{posenc_mlp.1} parent=11 // pred_fallthru
          _
        // Predicated region
        $region37: #{posenc_mlp.1} parent=11 // pred_check
          %p271 = pneg %p191
        $region38: #{posenc_mlp.1} parent=11 // pred_check_branch
          %273 = sbr.rel (%p271) target = $region40
        $region39: #{posenc_mlp.1} parent=11 // pred_region
          _
        $region40: #{posenc_mlp.1} parent=11 // pred_fallthru
          _
        // Predicated region
        $region41: #{posenc_mlp.1} parent=11 // pred_check
          %p274 = pneg %p212
        $region42: #{posenc_mlp.1} parent=11 // pred_check_branch
          %276 = sbr.rel (%p274) target = $region44
        $region43: #{posenc_mlp.1} parent=11 // pred_region
          _
        $region44: #{posenc_mlp.1} parent=11 // pred_fallthru
          _
      $region12: #{posenc_mlp.1} parent=5 // pred_fallthru
        _
      %p277 = scmp.lt.s32.totalorder %s18, 4
      // Predicated region
      $region45: #{posenc_mlp.1} parent=5 // pred_check
        %p278 = pneg %p277
      $region46: #{posenc_mlp.1} parent=5 // pred_check_branch
        %280 = sbr.rel (%p278) target = $region48
      $region47: #{posenc_mlp.1} parent=5 // pred_region
        // Predicated region
        $region49: #{posenc_mlp.1} parent=47 // pred_check
          %p281 = pneg %p38
        $region50: #{posenc_mlp.1} parent=47 // pred_check_branch
          %283 = sbr.rel (%p281) target = $region52
        $region51: #{posenc_mlp.1} parent=47 // pred_region
          %s284 = smul.u32 4, %s18
          %p285 = scmp.lt.s32.totalorder %s284, 15
          %s286 = scalar_select %p285, %s284, 15
          %s287 = smul.addr %s286, 4
          %s288 = scalar_lea.vmem %s0, %s287
          %s289 = smul.u32 4, %s18
        $region52: #{posenc_mlp.1} parent=47 // pred_fallthru
          _
      $region48: #{posenc_mlp.1} parent=5 // pred_fallthru
        _
      %p290 = scmp.le.s32.totalorder 1, %s18
      %p291 = scmp.lt.s32.totalorder %s18, 5
      %p292 = pnand %p290, %p291
      %p293 = pneg %p292
      // Predicated region
      $region53: #{posenc_mlp.1} parent=5 // pred_check
        _
      $region54: #{posenc_mlp.1} parent=5 // pred_check_branch
        %295 = sbr.rel (%p292) target = $region56
      $region55: #{posenc_mlp.1} parent=5 // pred_region
        %s296 = ssub.s32 %s18, 1
        %s297 = smul.u32 4, %s23
        %p298 = scmp.lt.s32.totalorder %s297, 15
        %s299 = scalar_select %p298, %s297, 15
        %s300 = smul.addr %s299, 4
        %s301 = scalar_lea.vmem %s0, %s300
        %p302 = pneg %p44
        %p303 = pneg %p41
        %p304 = pneg %p65
        %p305 = pneg %p62
        %p306 = pneg %p86
        %p307 = pneg %p83
        %p308 = pneg %p107
        %p309 = pneg %p104
        %p310 = pneg %p128
        %p311 = pneg %p125
        %p312 = pneg %p149
        %p313 = pneg %p146
        %p314 = pneg %p170
        %p315 = pneg %p167
        %p316 = pneg %p191
        %p317 = pneg %p188
        %p318 = pneg %p212
        %p319 = pneg %p209
        %p320 = pneg %p238
        %p321 = pneg %p235
        %s322 = sand.u32 %s225, 1
        %s323 = scalar_lea.sflag [#allocation4], %s322
        %s324 = sand.u32 %s225, 1
        %s325 = smul.addr %s324, 32
        %s326 = scalar_lea.vmem [#allocation3], %s325
        %s327 = smul.u32 4, %s23
        %p328 = scmp.lt.s32.totalorder %s327, 15
        %s329 = scalar_select %p328, %s327, 15
        %s330 = smul.addr %s329, 4
        %s331 = scalar_lea.vmem %s0, %s330
        %s332 = smul.u32 4, %s23
        %s333 = smul.u32 4, %s23
        %v335 = vld [vmem:[%s331] sm:$0xff]
        %v336 = vld [vmem:[%s331 + $0x8] sm:$0xff]
        %v337 = vmul.f32 %v335, 0.5
        %v338 = vmul.f32 %v336, 0.5
        %v339 = vand.u32 2147483647, %v337
        %vm340 = vcmp.le.f32.partialorder %v339, 0.7853982
        %vm341 = vcmp.lt.s32.totalorder %v337, 0
        %v342 = vand.u32 %v337, 2139095040
        %v343 = vshrl.u32 %v342, 23
        %v344 = vsub.s32 %v343, 127
        %v345 = vand.u32 2147483647, %v337
        %v346 = vand.u32 %v345, 8388607
        %v347 = vor.u32 %v346, 8388608
        %v348 = vsub.s32 0, %v347
        %v349 = vadd.s32 %v344, 1
        %vm350 = vcmp.gt.s32.totalorder %v349, 0
        %v351 = vsel %vm350, %v349, 0
        %v352 = vshrl.u32 %v351, 5
        %v353 = vand.u32 %v351, 31
        %v354 = vsub.s32 32, %v353
        %v355 = vshrl.u32 683565275, %v354
        %v356 = vshll.u32 683565275, %v353
        %v357 = vshrl.u32 2475754826, %v354
        %v358 = vor.u32 %v356, %v357
        %v359 = vshll.u32 2475754826, %v353
        %v360 = vshrl.u32 2131351028, %v354
        %v361 = vor.u32 %v359, %v360
        %v362 = vshll.u32 2131351028, %v353
        %v363 = vshrl.u32 2102212464, %v354
        %v364 = vor.u32 %v362, %v363
        %v365 = vshll.u32 2102212464, %v353
        %v366 = vshrl.u32 920167782, %v354
        %v367 = vor.u32 %v365, %v366
        %v368 = vshll.u32 920167782, %v353
        %v369 = vshrl.u32 1326507024, %v354
        %v370 = vor.u32 %v368, %v369
        %vm371 = vcmp.lt.s32.totalorder %v352, 1
        %vm372 = vcmp.lt.s32.totalorder %v352, 2
        %vm373 = vcmp.lt.s32.totalorder %v352, 3
        %vm374 = vcmp.lt.s32.totalorder %v352, 4
        %v375 = vsel %vm371, %v355, %v358
        %v376 = vsel %vm374, %v364, 2102212464
        %v377 = vsel %vm373, %v361, %v376
        %v378 = vsel %vm372, %v375, %v377
        %v379 = vsel %vm371, %v358, %v361
        %v380 = vsel %vm374, %v367, 920167782
        %v381 = vsel %vm373, %v364, %v380
        %v382 = vsel %vm372, %v379, %v381
        %v383 = vsel %vm371, %v361, %v364
        %v384 = vsel %vm374, %v370, 1326507024
        %v385 = vsel %vm373, %v367, %v384
        %v386 = vsel %vm372, %v383, %v385
        %v387 = vshll.u32 %v347, 8
        %v388 = vmul.u32.u64.compose %v387, %v386
        %v389 = vextract.low.u32 %v388
        %v390 = vextract.high.u32 %v388
        %v391 = vmul.u32.u64.compose %v387, %v382
        %v392 = vextract.low.u32 %v391
        %v393 = vextract.high.u32 %v391
        %v394 = vmul.u32 %v387, %v378
        %v395 = vadd.s32 %v390, %v392
        %vm396 = vc.u32 %v390, %v392
        %v397 = vadd.s32 %v393, 1
        %v398 = vsel %vm396, %v397, %v393
        %v399 = vadd.s32 %v394, %v398
        %v400 = vadd.s32 %v399, 536870912
        %v401 = vshrl.u32 %v400, 30
        %v402 = vshll.u32 %v401, 30
        %v403 = vsub.s32 %v399, %v402
        %vm404 = vcmp.lt.s32.totalorder %v403, 0
        %v405 = vsub.s32 0, %v403
        %v406 = vsel %vm404, %v405, %v403
        %v407 = vclz %v406
        %v408 = vsub.s32 %v407, 2
        %vm409 = vcmp.gt.s32.totalorder 0, %v408
        %v410 = vsel %vm409, 0, %v408
        %v411 = vsub.s32 32, %v410
        %v412 = vshll.u32 %v403, %v410
        %v413 = vshrl.u32 %v395, %v411
        %v414 = vor.u32 %v412, %v413
        %v415 = vsub.s32 4294967266, %v410
        %v416 = vadd.s32 %v415, 127
        %v417 = vshll.u32 %v416, 23
        %v418 = vor.u32 4788187, %v417
        %v419 = vand.u32 2147483647, %v418
        %v421 = vcvt.s32.f32 %v414
        %v422 = vmul.f32 %v421, %v419
        %v423 = vxor.u32 %v422, 2147483648
        %v424 = vsel %vm341, %v423, %v422
        %v425 = vsub.s32 4, %v401
        %v426 = vsel %vm341, %v425, %v401
        %v427 = vsel %vm340, %v337, %v424
        %v428 = vsel %vm340, 0, %v426
        %v429 = vcosq.f32.pop %v427
        %v430 = vsinq.f32.pop %v427
        %vm431 = vweird.f32 %v337
        %v432 = vadd.s32 %v428, 3
        %v433 = vand.u32 %v432, 3
        %vm434 = vcmp.lt.s32.totalorder %v433, 2
        %vm435 = vcmp.eq.s32.totalorder %v433, 0
        %v436 = vxor.u32 %v430, 2147483648
        %v437 = vsel %vm435, %v429, %v436
        %vm438 = vcmp.eq.s32.totalorder %v433, 2
        %v439 = vxor.u32 %v429, 2147483648
        %v440 = vsel %vm438, %v439, %v430
        %v441 = vsel %vm434, %v437, %v440
        %v442 = vsel %vm431, nan, %v441
        %v443 = vand.u32 2147483647, %v338
        %vm444 = vcmp.le.f32.partialorder %v443, 0.7853982
        %vm445 = vcmp.lt.s32.totalorder %v338, 0
        %v446 = vand.u32 %v338, 2139095040
        %v447 = vshrl.u32 %v446, 23
        %v448 = vsub.s32 %v447, 127
        %v449 = vand.u32 2147483647, %v338
        %v450 = vand.u32 %v449, 8388607
        %v451 = vor.u32 %v450, 8388608
        %v452 = vsub.s32 0, %v451
        %v453 = vadd.s32 %v448, 1
        %vm454 = vcmp.gt.s32.totalorder %v453, 0
        %v455 = vsel %vm454, %v453, 0
        %v456 = vshrl.u32 %v455, 5
        %v457 = vand.u32 %v455, 31
        %v458 = vsub.s32 32, %v457
        %v459 = vshrl.u32 683565275, %v458
        %v460 = vshll.u32 683565275, %v457
        %v461 = vshrl.u32 2475754826, %v458
        %v462 = vor.u32 %v460, %v461
        %v463 = vshll.u32 2475754826, %v457
        %v464 = vshrl.u32 2131351028, %v458
        %v465 = vor.u32 %v463, %v464
        %v466 = vshll.u32 2131351028, %v457
        %v467 = vshrl.u32 2102212464, %v458
        %v468 = vor.u32 %v466, %v467
        %v469 = vshll.u32 2102212464, %v457
        %v470 = vshrl.u32 920167782, %v458
        %v471 = vor.u32 %v469, %v470
        %v472 = vshll.u32 920167782, %v457
        %v473 = vshrl.u32 1326507024, %v458
        %v474 = vor.u32 %v472, %v473
        %vm475 = vcmp.lt.s32.totalorder %v456, 1
        %vm476 = vcmp.lt.s32.totalorder %v456, 2
        %vm477 = vcmp.lt.s32.totalorder %v456, 3
        %vm478 = vcmp.lt.s32.totalorder %v456, 4
        %v479 = vsel %vm475, %v459, %v462
        %v480 = vsel %vm478, %v468, 2102212464
        %v481 = vsel %vm477, %v465, %v480
        %v482 = vsel %vm476, %v479, %v481
        %v483 = vsel %vm475, %v462, %v465
        %v484 = vsel %vm478, %v471, 920167782
        %v485 = vsel %vm477, %v468, %v484
        %v486 = vsel %vm476, %v483, %v485
        %v487 = vsel %vm475, %v465, %v468
        %v488 = vsel %vm478, %v474, 1326507024
        %v489 = vsel %vm477, %v471, %v488
        %v490 = vsel %vm476, %v487, %v489
        %v491 = vshll.u32 %v451, 8
        %v492 = vmul.u32.u64.compose %v491, %v490
        %v493 = vextract.low.u32 %v492
        %v494 = vextract.high.u32 %v492
        %v495 = vmul.u32.u64.compose %v491, %v486
        %v496 = vextract.low.u32 %v495
        %v497 = vextract.high.u32 %v495
        %v498 = vmul.u32 %v491, %v482
        %v499 = vadd.s32 %v494, %v496
        %vm500 = vc.u32 %v494, %v496
        %v501 = vadd.s32 %v497, 1
        %v502 = vsel %vm500, %v501, %v497
        %v503 = vadd.s32 %v498, %v502
        %v504 = vadd.s32 %v503, 536870912
        %v505 = vshrl.u32 %v504, 30
        %v506 = vshll.u32 %v505, 30
        %v507 = vsub.s32 %v503, %v506
        %vm508 = vcmp.lt.s32.totalorder %v507, 0
        %v509 = vsub.s32 0, %v507
        %v510 = vsel %vm508, %v509, %v507
        %v511 = vclz %v510
        %v512 = vsub.s32 %v511, 2
        %vm513 = vcmp.gt.s32.totalorder 0, %v512
        %v514 = vsel %vm513, 0, %v512
        %v515 = vsub.s32 32, %v514
        %v516 = vshll.u32 %v507, %v514
        %v517 = vshrl.u32 %v499, %v515
        %v518 = vor.u32 %v516, %v517
        %v519 = vsub.s32 4294967266, %v514
        %v520 = vadd.s32 %v519, 127
        %v521 = vshll.u32 %v520, 23
        %v522 = vor.u32 4788187, %v521
        %v523 = vand.u32 2147483647, %v522
        %v525 = vcvt.s32.f32 %v518
        %v526 = vmul.f32 %v525, %v523
        %v527 = vxor.u32 %v526, 2147483648
        %v528 = vsel %vm445, %v527, %v526
        %v529 = vsub.s32 4, %v505
        %v530 = vsel %vm445, %v529, %v505
        %v531 = vsel %vm444, %v338, %v528
        %v532 = vsel %vm444, 0, %v530
        %v533 = vcosq.f32.pop %v531
        %v534 = vsinq.f32.pop %v531
        %vm535 = vweird.f32 %v338
        %v536 = vadd.s32 %v532, 3
        %v537 = vand.u32 %v536, 3
        %vm538 = vcmp.lt.s32.totalorder %v537, 2
        %vm539 = vcmp.eq.s32.totalorder %v537, 0
        %v540 = vxor.u32 %v534, 2147483648
        %v541 = vsel %vm539, %v533, %v540
        %vm542 = vcmp.eq.s32.totalorder %v537, 2
        %v543 = vxor.u32 %v533, 2147483648
        %v544 = vsel %vm542, %v543, %v534
        %v545 = vsel %vm538, %v541, %v544
        %v546 = vsel %vm535, nan, %v545
        %v549 = vcombine.high %v442, %v442
        %v550 = vcombine.high %v546, %v546
        %553 = vst [vmem:[#allocation2] sm:$0xf] %v442
        %554 = vst [vmem:[#allocation2 + $0x8] sm:$0xf] %v549
        %555 = vst [vmem:[#allocation2 + $0x10] sm:$0xf] %v546
        %556 = vst [vmem:[#allocation2 + $0x18] sm:$0xf] %v550
        %v557 = vand.u32 2147483647, %v337
        %vm558 = vcmp.le.f32.partialorder %v557, 0.7853982
        %vm559 = vcmp.lt.s32.totalorder %v337, 0
        %v560 = vand.u32 %v337, 2139095040
        %v561 = vshrl.u32 %v560, 23
        %v562 = vsub.s32 %v561, 127
        %v563 = vand.u32 2147483647, %v337
        %v564 = vand.u32 %v563, 8388607
        %v565 = vor.u32 %v564, 8388608
        %v566 = vsub.s32 0, %v565
        %v567 = vadd.s32 %v562, 1
        %vm568 = vcmp.gt.s32.totalorder %v567, 0
        %v569 = vsel %vm568, %v567, 0
        %v570 = vshrl.u32 %v569, 5
        %v571 = vand.u32 %v569, 31
        %v572 = vsub.s32 32, %v571
        %v573 = vshrl.u32 683565275, %v572
        %v574 = vshll.u32 683565275, %v571
        %v575 = vshrl.u32 2475754826, %v572
        %v576 = vor.u32 %v574, %v575
        %v577 = vshll.u32 2475754826, %v571
        %v578 = vshrl.u32 2131351028, %v572
        %v579 = vor.u32 %v577, %v578
        %v580 = vshll.u32 2131351028, %v571
        %v581 = vshrl.u32 2102212464, %v572
        %v582 = vor.u32 %v580, %v581
        %v583 = vshll.u32 2102212464, %v571
        %v584 = vshrl.u32 920167782, %v572
        %v585 = vor.u32 %v583, %v584
        %v586 = vshll.u32 920167782, %v571
        %v587 = vshrl.u32 1326507024, %v572
        %v588 = vor.u32 %v586, %v587
        %vm589 = vcmp.lt.s32.totalorder %v570, 1
        %vm590 = vcmp.lt.s32.totalorder %v570, 2
        %vm591 = vcmp.lt.s32.totalorder %v570, 3
        %vm592 = vcmp.lt.s32.totalorder %v570, 4
        %v593 = vsel %vm589, %v573, %v576
        %v594 = vsel %vm592, %v582, 2102212464
        %v595 = vsel %vm591, %v579, %v594
        %v596 = vsel %vm590, %v593, %v595
        %v597 = vsel %vm589, %v576, %v579
        %v598 = vsel %vm592, %v585, 920167782
        %v599 = vsel %vm591, %v582, %v598
        %v600 = vsel %vm590, %v597, %v599
        %v601 = vsel %vm589, %v579, %v582
        %v602 = vsel %vm592, %v588, 1326507024
        %v603 = vsel %vm591, %v585, %v602
        %v604 = vsel %vm590, %v601, %v603
        %v605 = vshll.u32 %v565, 8
        %v606 = vmul.u32.u64.compose %v605, %v604
        %v607 = vextract.low.u32 %v606
        %v608 = vextract.high.u32 %v606
        %v609 = vmul.u32.u64.compose %v605, %v600
        %v610 = vextract.low.u32 %v609
        %v611 = vextract.high.u32 %v609
        %v612 = vmul.u32 %v605, %v596
        %v613 = vadd.s32 %v608, %v610
        %vm614 = vc.u32 %v608, %v610
        %v615 = vadd.s32 %v611, 1
        %v616 = vsel %vm614, %v615, %v611
        %v617 = vadd.s32 %v612, %v616
        %v618 = vadd.s32 %v617, 536870912
        %v619 = vshrl.u32 %v618, 30
        %v620 = vshll.u32 %v619, 30
        %v621 = vsub.s32 %v617, %v620
        %vm622 = vcmp.lt.s32.totalorder %v621, 0
        %v623 = vsub.s32 0, %v621
        %v624 = vsel %vm622, %v623, %v621
        %v625 = vclz %v624
        %v626 = vsub.s32 %v625, 2
        %vm627 = vcmp.gt.s32.totalorder 0, %v626
        %v628 = vsel %vm627, 0, %v626
        %v629 = vsub.s32 32, %v628
        %v630 = vshll.u32 %v621, %v628
        %v631 = vshrl.u32 %v613, %v629
        %v632 = vor.u32 %v630, %v631
        %v633 = vsub.s32 4294967266, %v628
        %v634 = vadd.s32 %v633, 127
        %v635 = vshll.u32 %v634, 23
        %v636 = vor.u32 4788187, %v635
        %v637 = vand.u32 2147483647, %v636
        %v639 = vcvt.s32.f32 %v632
        %v640 = vmul.f32 %v639, %v637
        %v641 = vxor.u32 %v640, 2147483648
        %v642 = vsel %vm559, %v641, %v640
        %v643 = vsub.s32 4, %v619
        %v644 = vsel %vm559, %v643, %v619
        %v645 = vsel %vm558, %v337, %v642
        %v646 = vsel %vm558, 0, %v644
        %v647 = vcosq.f32.pop %v645
        %v648 = vsinq.f32.pop %v645
        %vm649 = vweird.f32 %v337
        %v650 = vand.u32 %v646, 3
        %vm651 = vcmp.lt.s32.totalorder %v650, 2
        %vm652 = vcmp.eq.s32.totalorder %v650, 0
        %v653 = vxor.u32 %v648, 2147483648
        %v654 = vsel %vm652, %v647, %v653
        %vm655 = vcmp.eq.s32.totalorder %v650, 2
        %v656 = vxor.u32 %v647, 2147483648
        %v657 = vsel %vm655, %v656, %v648
        %v658 = vsel %vm651, %v654, %v657
        %v659 = vsel %vm649, nan, %v658
        %v660 = vand.u32 2147483647, %v338
        %vm661 = vcmp.le.f32.partialorder %v660, 0.7853982
        %vm662 = vcmp.lt.s32.totalorder %v338, 0
        %v663 = vand.u32 %v338, 2139095040
        %v664 = vshrl.u32 %v663, 23
        %v665 = vsub.s32 %v664, 127
        %v666 = vand.u32 2147483647, %v338
        %v667 = vand.u32 %v666, 8388607
        %v668 = vor.u32 %v667, 8388608
        %v669 = vsub.s32 0, %v668
        %v670 = vadd.s32 %v665, 1
        %vm671 = vcmp.gt.s32.totalorder %v670, 0
        %v672 = vsel %vm671, %v670, 0
        %v673 = vshrl.u32 %v672, 5
        %v674 = vand.u32 %v672, 31
        %v675 = vsub.s32 32, %v674
        %v676 = vshrl.u32 683565275, %v675
        %v677 = vshll.u32 683565275, %v674
        %v678 = vshrl.u32 2475754826, %v675
        %v679 = vor.u32 %v677, %v678
        %v680 = vshll.u32 2475754826, %v674
        %v681 = vshrl.u32 2131351028, %v675
        %v682 = vor.u32 %v680, %v681
        %v683 = vshll.u32 2131351028, %v674
        %v684 = vshrl.u32 2102212464, %v675
        %v685 = vor.u32 %v683, %v684
        %v686 = vshll.u32 2102212464, %v674
        %v687 = vshrl.u32 920167782, %v675
        %v688 = vor.u32 %v686, %v687
        %v689 = vshll.u32 920167782, %v674
        %v690 = vshrl.u32 1326507024, %v675
        %v691 = vor.u32 %v689, %v690
        %vm692 = vcmp.lt.s32.totalorder %v673, 1
        %vm693 = vcmp.lt.s32.totalorder %v673, 2
        %vm694 = vcmp.lt.s32.totalorder %v673, 3
        %vm695 = vcmp.lt.s32.totalorder %v673, 4
        %v696 = vsel %vm692, %v676, %v679
        %v697 = vsel %vm695, %v685, 2102212464
        %v698 = vsel %vm694, %v682, %v697
        %v699 = vsel %vm693, %v696, %v698
        %v700 = vsel %vm692, %v679, %v682
        %v701 = vsel %vm695, %v688, 920167782
        %v702 = vsel %vm694, %v685, %v701
        %v703 = vsel %vm693, %v700, %v702
        %v704 = vsel %vm692, %v682, %v685
        %v705 = vsel %vm695, %v691, 1326507024
        %v706 = vsel %vm694, %v688, %v705
        %v707 = vsel %vm693, %v704, %v706
        %v708 = vshll.u32 %v668, 8
        %v709 = vmul.u32.u64.compose %v708, %v707
        %v710 = vextract.low.u32 %v709
        %v711 = vextract.high.u32 %v709
        %v712 = vmul.u32.u64.compose %v708, %v703
        %v713 = vextract.low.u32 %v712
        %v714 = vextract.high.u32 %v712
        %v715 = vmul.u32 %v708, %v699
        %v716 = vadd.s32 %v711, %v713
        %vm717 = vc.u32 %v711, %v713
        %v718 = vadd.s32 %v714, 1
        %v719 = vsel %vm717, %v718, %v714
        %v720 = vadd.s32 %v715, %v719
        %v721 = vadd.s32 %v720, 536870912
        %v722 = vshrl.u32 %v721, 30
        %v723 = vshll.u32 %v722, 30
        %v724 = vsub.s32 %v720, %v723
        %vm725 = vcmp.lt.s32.totalorder %v724, 0
        %v726 = vsub.s32 0, %v724
        %v727 = vsel %vm725, %v726, %v724
        %v728 = vclz %v727
        %v729 = vsub.s32 %v728, 2
        %vm730 = vcmp.gt.s32.totalorder 0, %v729
        %v731 = vsel %vm730, 0, %v729
        %v732 = vsub.s32 32, %v731
        %v733 = vshll.u32 %v724, %v731
        %v734 = vshrl.u32 %v716, %v732
        %v735 = vor.u32 %v733, %v734
        %v736 = vsub.s32 4294967266, %v731
        %v737 = vadd.s32 %v736, 127
        %v738 = vshll.u32 %v737, 23
        %v739 = vor.u32 4788187, %v738
        %v740 = vand.u32 2147483647, %v739
        %v742 = vcvt.s32.f32 %v735
        %v743 = vmul.f32 %v742, %v740
        %v744 = vxor.u32 %v743, 2147483648
        %v745 = vsel %vm662, %v744, %v743
        %v746 = vsub.s32 4, %v722
        %v747 = vsel %vm662, %v746, %v722
        %v748 = vsel %vm661, %v338, %v745
        %v749 = vsel %vm661, 0, %v747
        %v750 = vcosq.f32.pop %v748
        %v751 = vsinq.f32.pop %v748
        %vm752 = vweird.f32 %v338
        %v753 = vand.u32 %v749, 3
        %vm754 = vcmp.lt.s32.totalorder %v753, 2
        %vm755 = vcmp.eq.s32.totalorder %v753, 0
        %v756 = vxor.u32 %v751, 2147483648
        %v757 = vsel %vm755, %v750, %v756
        %vm758 = vcmp.eq.s32.totalorder %v753, 2
        %v759 = vxor.u32 %v750, 2147483648
        %v760 = vsel %vm758, %v759, %v751
        %v761 = vsel %vm754, %v757, %v760
        %v762 = vsel %vm752, nan, %v761
        %v765 = vcombine.low %v659, %v659
        %v766 = vcombine.low %v762, %v762
        %769 = vst [vmem:[#allocation2 + $0x40] sm:$0xf0] %v765
        %770 = vst [vmem:[#allocation2 + $0x48] sm:$0xf0] %v659
        %771 = vst [vmem:[#allocation2 + $0x50] sm:$0xf0] %v766
        %772 = vst [vmem:[#allocation2 + $0x58] sm:$0xf0] %v762
        %v773 = vand.u32 2147483647, %v335
        %vm774 = vcmp.le.f32.partialorder %v773, 0.7853982
        %vm775 = vcmp.lt.s32.totalorder %v335, 0
        %v776 = vand.u32 %v335, 2139095040
        %v777 = vshrl.u32 %v776, 23
        %v778 = vsub.s32 %v777, 127
        %v779 = vand.u32 2147483647, %v335
        %v780 = vand.u32 %v779, 8388607
        %v781 = vor.u32 %v780, 8388608
        %v782 = vsub.s32 0, %v781
        %v783 = vadd.s32 %v778, 1
        %vm784 = vcmp.gt.s32.totalorder %v783, 0
        %v785 = vsel %vm784, %v783, 0
        %v786 = vshrl.u32 %v785, 5
        %v787 = vand.u32 %v785, 31
        %v788 = vsub.s32 32, %v787
        %v789 = vshrl.u32 683565275, %v788
        %v790 = vshll.u32 683565275, %v787
        %v791 = vshrl.u32 2475754826, %v788
        %v792 = vor.u32 %v790, %v791
        %v793 = vshll.u32 2475754826, %v787
        %v794 = vshrl.u32 2131351028, %v788
        %v795 = vor.u32 %v793, %v794
        %v796 = vshll.u32 2131351028, %v787
        %v797 = vshrl.u32 2102212464, %v788
        %v798 = vor.u32 %v796, %v797
        %v799 = vshll.u32 2102212464, %v787
        %v800 = vshrl.u32 920167782, %v788
        %v801 = vor.u32 %v799, %v800
        %v802 = vshll.u32 920167782, %v787
        %v803 = vshrl.u32 1326507024, %v788
        %v804 = vor.u32 %v802, %v803
        %vm805 = vcmp.lt.s32.totalorder %v786, 1
        %vm806 = vcmp.lt.s32.totalorder %v786, 2
        %vm807 = vcmp.lt.s32.totalorder %v786, 3
        %vm808 = vcmp.lt.s32.totalorder %v786, 4
        %v809 = vsel %vm805, %v789, %v792
        %v810 = vsel %vm808, %v798, 2102212464
        %v811 = vsel %vm807, %v795, %v810
        %v812 = vsel %vm806, %v809, %v811
        %v813 = vsel %vm805, %v792, %v795
        %v814 = vsel %vm808, %v801, 920167782
        %v815 = vsel %vm807, %v798, %v814
        %v816 = vsel %vm806, %v813, %v815
        %v817 = vsel %vm805, %v795, %v798
        %v818 = vsel %vm808, %v804, 1326507024
        %v819 = vsel %vm807, %v801, %v818
        %v820 = vsel %vm806, %v817, %v819
        %v821 = vshll.u32 %v781, 8
        %v822 = vmul.u32.u64.compose %v821, %v820
        %v823 = vextract.low.u32 %v822
        %v824 = vextract.high.u32 %v822
        %v825 = vmul.u32.u64.compose %v821, %v816
        %v826 = vextract.low.u32 %v825
        %v827 = vextract.high.u32 %v825
        %v828 = vmul.u32 %v821, %v812
        %v829 = vadd.s32 %v824, %v826
        %vm830 = vc.u32 %v824, %v826
        %v831 = vadd.s32 %v827, 1
        %v832 = vsel %vm830, %v831, %v827
        %v833 = vadd.s32 %v828, %v832
        %v834 = vadd.s32 %v833, 536870912
        %v835 = vshrl.u32 %v834, 30
        %v836 = vshll.u32 %v835, 30
        %v837 = vsub.s32 %v833, %v836
        %vm838 = vcmp.lt.s32.totalorder %v837, 0
        %v839 = vsub.s32 0, %v837
        %v840 = vsel %vm838, %v839, %v837
        %v841 = vclz %v840
        %v842 = vsub.s32 %v841, 2
        %vm843 = vcmp.gt.s32.totalorder 0, %v842
        %v844 = vsel %vm843, 0, %v842
        %v845 = vsub.s32 32, %v844
        %v846 = vshll.u32 %v837, %v844
        %v847 = vshrl.u32 %v829, %v845
        %v848 = vor.u32 %v846, %v847
        %v849 = vsub.s32 4294967266, %v844
        %v850 = vadd.s32 %v849, 127
        %v851 = vshll.u32 %v850, 23
        %v852 = vor.u32 4788187, %v851
        %v853 = vand.u32 2147483647, %v852
        %v855 = vcvt.s32.f32 %v848
        %v856 = vmul.f32 %v855, %v853
        %v857 = vxor.u32 %v856, 2147483648
        %v858 = vsel %vm775, %v857, %v856
        %v859 = vsub.s32 4, %v835
        %v860 = vsel %vm775, %v859, %v835
        %v861 = vsel %vm774, %v335, %v858
        %v862 = vsel %vm774, 0, %v860
        %v863 = vcosq.f32.pop %v861
        %v864 = vsinq.f32.pop %v861
        %vm865 = vweird.f32 %v335
        %v866 = vadd.s32 %v862, 3
        %v867 = vand.u32 %v866, 3
        %vm868 = vcmp.lt.s32.totalorder %v867, 2
        %vm869 = vcmp.eq.s32.totalorder %v867, 0
        %v870 = vxor.u32 %v864, 2147483648
        %v871 = vsel %vm869, %v863, %v870
        %vm872 = vcmp.eq.s32.totalorder %v867, 2
        %v873 = vxor.u32 %v863, 2147483648
        %v874 = vsel %vm872, %v873, %v864
        %v875 = vsel %vm868, %v871, %v874
        %v876 = vsel %vm865, nan, %v875
        %v877 = vand.u32 2147483647, %v336
        %vm878 = vcmp.le.f32.partialorder %v877, 0.7853982
        %vm879 = vcmp.lt.s32.totalorder %v336, 0
        %v880 = vand.u32 %v336, 2139095040
        %v881 = vshrl.u32 %v880, 23
        %v882 = vsub.s32 %v881, 127
        %v883 = vand.u32 2147483647, %v336
        %v884 = vand.u32 %v883, 8388607
        %v885 = vor.u32 %v884, 8388608
        %v886 = vsub.s32 0, %v885
        %v887 = vadd.s32 %v882, 1
        %vm888 = vcmp.gt.s32.totalorder %v887, 0
        %v889 = vsel %vm888, %v887, 0
        %v890 = vshrl.u32 %v889, 5
        %v891 = vand.u32 %v889, 31
        %v892 = vsub.s32 32, %v891
        %v893 = vshrl.u32 683565275, %v892
        %v894 = vshll.u32 683565275, %v891
        %v895 = vshrl.u32 2475754826, %v892
        %v896 = vor.u32 %v894, %v895
        %v897 = vshll.u32 2475754826, %v891
        %v898 = vshrl.u32 2131351028, %v892
        %v899 = vor.u32 %v897, %v898
        %v900 = vshll.u32 2131351028, %v891
        %v901 = vshrl.u32 2102212464, %v892
        %v902 = vor.u32 %v900, %v901
        %v903 = vshll.u32 2102212464, %v891
        %v904 = vshrl.u32 920167782, %v892
        %v905 = vor.u32 %v903, %v904
        %v906 = vshll.u32 920167782, %v891
        %v907 = vshrl.u32 1326507024, %v892
        %v908 = vor.u32 %v906, %v907
        %vm909 = vcmp.lt.s32.totalorder %v890, 1
        %vm910 = vcmp.lt.s32.totalorder %v890, 2
        %vm911 = vcmp.lt.s32.totalorder %v890, 3
        %vm912 = vcmp.lt.s32.totalorder %v890, 4
        %v913 = vsel %vm909, %v893, %v896
        %v914 = vsel %vm912, %v902, 2102212464
        %v915 = vsel %vm911, %v899, %v914
        %v916 = vsel %vm910, %v913, %v915
        %v917 = vsel %vm909, %v896, %v899
        %v918 = vsel %vm912, %v905, 920167782
        %v919 = vsel %vm911, %v902, %v918
        %v920 = vsel %vm910, %v917, %v919
        %v921 = vsel %vm909, %v899, %v902
        %v922 = vsel %vm912, %v908, 1326507024
        %v923 = vsel %vm911, %v905, %v922
        %v924 = vsel %vm910, %v921, %v923
        %v925 = vshll.u32 %v885, 8
        %v926 = vmul.u32.u64.compose %v925, %v924
        %v927 = vextract.low.u32 %v926
        %v928 = vextract.high.u32 %v926
        %v929 = vmul.u32.u64.compose %v925, %v920
        %v930 = vextract.low.u32 %v929
        %v931 = vextract.high.u32 %v929
        %v932 = vmul.u32 %v925, %v916
        %v933 = vadd.s32 %v928, %v930
        %vm934 = vc.u32 %v928, %v930
        %v935 = vadd.s32 %v931, 1
        %v936 = vsel %vm934, %v935, %v931
        %v937 = vadd.s32 %v932, %v936
        %v938 = vadd.s32 %v937, 536870912
        %v939 = vshrl.u32 %v938, 30
        %v940 = vshll.u32 %v939, 30
        %v941 = vsub.s32 %v937, %v940
        %vm942 = vcmp.lt.s32.totalorder %v941, 0
        %v943 = vsub.s32 0, %v941
        %v944 = vsel %vm942, %v943, %v941
        %v945 = vclz %v944
        %v946 = vsub.s32 %v945, 2
        %vm947 = vcmp.gt.s32.totalorder 0, %v946
        %v948 = vsel %vm947, 0, %v946
        %v949 = vsub.s32 32, %v948
        %v950 = vshll.u32 %v941, %v948
        %v951 = vshrl.u32 %v933, %v949
        %v952 = vor.u32 %v950, %v951
        %v953 = vsub.s32 4294967266, %v948
        %v954 = vadd.s32 %v953, 127
        %v955 = vshll.u32 %v954, 23
        %v956 = vor.u32 4788187, %v955
        %v957 = vand.u32 2147483647, %v956
        %v959 = vcvt.s32.f32 %v952
        %v960 = vmul.f32 %v959, %v957
        %v961 = vxor.u32 %v960, 2147483648
        %v962 = vsel %vm879, %v961, %v960
        %v963 = vsub.s32 4, %v939
        %v964 = vsel %vm879, %v963, %v939
        %v965 = vsel %vm878, %v336, %v962
        %v966 = vsel %vm878, 0, %v964
        %v967 = vcosq.f32.pop %v965
        %v968 = vsinq.f32.pop %v965
        %vm969 = vweird.f32 %v336
        %v970 = vadd.s32 %v966, 3
        %v971 = vand.u32 %v970, 3
        %vm972 = vcmp.lt.s32.totalorder %v971, 2
        %vm973 = vcmp.eq.s32.totalorder %v971, 0
        %v974 = vxor.u32 %v968, 2147483648
        %v975 = vsel %vm973, %v967, %v974
        %vm976 = vcmp.eq.s32.totalorder %v971, 2
        %v977 = vxor.u32 %v967, 2147483648
        %v978 = vsel %vm976, %v977, %v968
        %v979 = vsel %vm972, %v975, %v978
        %v980 = vsel %vm969, nan, %v979
        %v983 = vcombine.low %v876, %v876
        %v984 = vcombine.low %v980, %v980
        %987 = vst [vmem:[#allocation2] sm:$0xf0] %v983
        %988 = vst [vmem:[#allocation2 + $0x8] sm:$0xf0] %v876
        %989 = vst [vmem:[#allocation2 + $0x10] sm:$0xf0] %v984
        %990 = vst [vmem:[#allocation2 + $0x18] sm:$0xf0] %v980
        %v991 = vand.u32 2147483647, %v335
        %vm992 = vcmp.le.f32.partialorder %v991, 0.7853982
        %vm993 = vcmp.lt.s32.totalorder %v335, 0
        %v994 = vand.u32 %v335, 2139095040
        %v995 = vshrl.u32 %v994, 23
        %v996 = vsub.s32 %v995, 127
        %v997 = vand.u32 2147483647, %v335
        %v998 = vand.u32 %v997, 8388607
        %v999 = vor.u32 %v998, 8388608
        %v1000 = vsub.s32 0, %v999
        %v1001 = vadd.s32 %v996, 1
        %vm1002 = vcmp.gt.s32.totalorder %v1001, 0
        %v1003 = vsel %vm1002, %v1001, 0
        %v1004 = vshrl.u32 %v1003, 5
        %v1005 = vand.u32 %v1003, 31
        %v1006 = vsub.s32 32, %v1005
        %v1007 = vshrl.u32 683565275, %v1006
        %v1008 = vshll.u32 683565275, %v1005
        %v1009 = vshrl.u32 2475754826, %v1006
        %v1010 = vor.u32 %v1008, %v1009
        %v1011 = vshll.u32 2475754826, %v1005
        %v1012 = vshrl.u32 2131351028, %v1006
        %v1013 = vor.u32 %v1011, %v1012
        %v1014 = vshll.u32 2131351028, %v1005
        %v1015 = vshrl.u32 2102212464, %v1006
        %v1016 = vor.u32 %v1014, %v1015
        %v1017 = vshll.u32 2102212464, %v1005
        %v1018 = vshrl.u32 920167782, %v1006
        %v1019 = vor.u32 %v1017, %v1018
        %v1020 = vshll.u32 920167782, %v1005
        %v1021 = vshrl.u32 1326507024, %v1006
        %v1022 = vor.u32 %v1020, %v1021
        %vm1023 = vcmp.lt.s32.totalorder %v1004, 1
        %vm1024 = vcmp.lt.s32.totalorder %v1004, 2
        %vm1025 = vcmp.lt.s32.totalorder %v1004, 3
        %vm1026 = vcmp.lt.s32.totalorder %v1004, 4
        %v1027 = vsel %vm1023, %v1007, %v1010
        %v1028 = vsel %vm1026, %v1016, 2102212464
        %v1029 = vsel %vm1025, %v1013, %v1028
        %v1030 = vsel %vm1024, %v1027, %v1029
        %v1031 = vsel %vm1023, %v1010, %v1013
        %v1032 = vsel %vm1026, %v1019, 920167782
        %v1033 = vsel %vm1025, %v1016, %v1032
        %v1034 = vsel %vm1024, %v1031, %v1033
        %v1035 = vsel %vm1023, %v1013, %v1016
        %v1036 = vsel %vm1026, %v1022, 1326507024
        %v1037 = vsel %vm1025, %v1019, %v1036
        %v1038 = vsel %vm1024, %v1035, %v1037
        %v1039 = vshll.u32 %v999, 8
        %v1040 = vmul.u32.u64.compose %v1039, %v1038
        %v1041 = vextract.low.u32 %v1040
        %v1042 = vextract.high.u32 %v1040
        %v1043 = vmul.u32.u64.compose %v1039, %v1034
        %v1044 = vextract.low.u32 %v1043
        %v1045 = vextract.high.u32 %v1043
        %v1046 = vmul.u32 %v1039, %v1030
        %v1047 = vadd.s32 %v1042, %v1044
        %vm1048 = vc.u32 %v1042, %v1044
        %v1049 = vadd.s32 %v1045, 1
        %v1050 = vsel %vm1048, %v1049, %v1045
        %v1051 = vadd.s32 %v1046, %v1050
        %v1052 = vadd.s32 %v1051, 536870912
        %v1053 = vshrl.u32 %v1052, 30
        %v1054 = vshll.u32 %v1053, 30
        %v1055 = vsub.s32 %v1051, %v1054
        %vm1056 = vcmp.lt.s32.totalorder %v1055, 0
        %v1057 = vsub.s32 0, %v1055
        %v1058 = vsel %vm1056, %v1057, %v1055
        %v1059 = vclz %v1058
        %v1060 = vsub.s32 %v1059, 2
        %vm1061 = vcmp.gt.s32.totalorder 0, %v1060
        %v1062 = vsel %vm1061, 0, %v1060
        %v1063 = vsub.s32 32, %v1062
        %v1064 = vshll.u32 %v1055, %v1062
        %v1065 = vshrl.u32 %v1047, %v1063
        %v1066 = vor.u32 %v1064, %v1065
        %v1067 = vsub.s32 4294967266, %v1062
        %v1068 = vadd.s32 %v1067, 127
        %v1069 = vshll.u32 %v1068, 23
        %v1070 = vor.u32 4788187, %v1069
        %v1071 = vand.u32 2147483647, %v1070
        %v1073 = vcvt.s32.f32 %v1066
        %v1074 = vmul.f32 %v1073, %v1071
        %v1075 = vxor.u32 %v1074, 2147483648
        %v1076 = vsel %vm993, %v1075, %v1074
        %v1077 = vsub.s32 4, %v1053
        %v1078 = vsel %vm993, %v1077, %v1053
        %v1079 = vsel %vm992, %v335, %v1076
        %v1080 = vsel %vm992, 0, %v1078
        %v1081 = vcosq.f32.pop %v1079
        %v1082 = vsinq.f32.pop %v1079
        %vm1083 = vweird.f32 %v335
        %v1084 = vand.u32 %v1080, 3
        %vm1085 = vcmp.lt.s32.totalorder %v1084, 2
        %vm1086 = vcmp.eq.s32.totalorder %v1084, 0
        %v1087 = vxor.u32 %v1082, 2147483648
        %v1088 = vsel %vm1086, %v1081, %v1087
        %vm1089 = vcmp.eq.s32.totalorder %v1084, 2
        %v1090 = vxor.u32 %v1081, 2147483648
        %v1091 = vsel %vm1089, %v1090, %v1082
        %v1092 = vsel %vm1085, %v1088, %v1091
        %v1093 = vsel %vm1083, nan, %v1092
        %v1094 = vand.u32 2147483647, %v336
        %vm1095 = vcmp.le.f32.partialorder %v1094, 0.7853982
        %vm1096 = vcmp.lt.s32.totalorder %v336, 0
        %v1097 = vand.u32 %v336, 2139095040
        %v1098 = vshrl.u32 %v1097, 23
        %v1099 = vsub.s32 %v1098, 127
        %v1100 = vand.u32 2147483647, %v336
        %v1101 = vand.u32 %v1100, 8388607
        %v1102 = vor.u32 %v1101, 8388608
        %v1103 = vsub.s32 0, %v1102
        %v1104 = vadd.s32 %v1099, 1
        %vm1105 = vcmp.gt.s32.totalorder %v1104, 0
        %v1106 = vsel %vm1105, %v1104, 0
        %v1107 = vshrl.u32 %v1106, 5
        %v1108 = vand.u32 %v1106, 31
        %v1109 = vsub.s32 32, %v1108
        %v1110 = vshrl.u32 683565275, %v1109
        %v1111 = vshll.u32 683565275, %v1108
        %v1112 = vshrl.u32 2475754826, %v1109
        %v1113 = vor.u32 %v1111, %v1112
        %v1114 = vshll.u32 2475754826, %v1108
        %v1115 = vshrl.u32 2131351028, %v1109
        %v1116 = vor.u32 %v1114, %v1115
        %v1117 = vshll.u32 2131351028, %v1108
        %v1118 = vshrl.u32 2102212464, %v1109
        %v1119 = vor.u32 %v1117, %v1118
        %v1120 = vshll.u32 2102212464, %v1108
        %v1121 = vshrl.u32 920167782, %v1109
        %v1122 = vor.u32 %v1120, %v1121
        %v1123 = vshll.u32 920167782, %v1108
        %v1124 = vshrl.u32 1326507024, %v1109
        %v1125 = vor.u32 %v1123, %v1124
        %vm1126 = vcmp.lt.s32.totalorder %v1107, 1
        %vm1127 = vcmp.lt.s32.totalorder %v1107, 2
        %vm1128 = vcmp.lt.s32.totalorder %v1107, 3
        %vm1129 = vcmp.lt.s32.totalorder %v1107, 4
        %v1130 = vsel %vm1126, %v1110, %v1113
        %v1131 = vsel %vm1129, %v1119, 2102212464
        %v1132 = vsel %vm1128, %v1116, %v1131
        %v1133 = vsel %vm1127, %v1130, %v1132
        %v1134 = vsel %vm1126, %v1113, %v1116
        %v1135 = vsel %vm1129, %v1122, 920167782
        %v1136 = vsel %vm1128, %v1119, %v1135
        %v1137 = vsel %vm1127, %v1134, %v1136
        %v1138 = vsel %vm1126, %v1116, %v1119
        %v1139 = vsel %vm1129, %v1125, 1326507024
        %v1140 = vsel %vm1128, %v1122, %v1139
        %v1141 = vsel %vm1127, %v1138, %v1140
        %v1142 = vshll.u32 %v1102, 8
        %v1143 = vmul.u32.u64.compose %v1142, %v1141
        %v1144 = vextract.low.u32 %v1143
        %v1145 = vextract.high.u32 %v1143
        %v1146 = vmul.u32.u64.compose %v1142, %v1137
        %v1147 = vextract.low.u32 %v1146
        %v1148 = vextract.high.u32 %v1146
        %v1149 = vmul.u32 %v1142, %v1133
        %v1150 = vadd.s32 %v1145, %v1147
        %vm1151 = vc.u32 %v1145, %v1147
        %v1152 = vadd.s32 %v1148, 1
        %v1153 = vsel %vm1151, %v1152, %v1148
        %v1154 = vadd.s32 %v1149, %v1153
        %v1155 = vadd.s32 %v1154, 536870912
        %v1156 = vshrl.u32 %v1155, 30
        %v1157 = vshll.u32 %v1156, 30
        %v1158 = vsub.s32 %v1154, %v1157
        %vm1159 = vcmp.lt.s32.totalorder %v1158, 0
        %v1160 = vsub.s32 0, %v1158
        %v1161 = vsel %vm1159, %v1160, %v1158
        %v1162 = vclz %v1161
        %v1163 = vsub.s32 %v1162, 2
        %vm1164 = vcmp.gt.s32.totalorder 0, %v1163
        %v1165 = vsel %vm1164, 0, %v1163
        %v1166 = vsub.s32 32, %v1165
        %v1167 = vshll.u32 %v1158, %v1165
        %v1168 = vshrl.u32 %v1150, %v1166
        %v1169 = vor.u32 %v1167, %v1168
        %v1170 = vsub.s32 4294967266, %v1165
        %v1171 = vadd.s32 %v1170, 127
        %v1172 = vshll.u32 %v1171, 23
        %v1173 = vor.u32 4788187, %v1172
        %v1174 = vand.u32 2147483647, %v1173
        %v1176 = vcvt.s32.f32 %v1169
        %v1177 = vmul.f32 %v1176, %v1174
        %v1178 = vxor.u32 %v1177, 2147483648
        %v1179 = vsel %vm1096, %v1178, %v1177
        %v1180 = vsub.s32 4, %v1156
        %v1181 = vsel %vm1096, %v1180, %v1156
        %v1182 = vsel %vm1095, %v336, %v1179
        %v1183 = vsel %vm1095, 0, %v1181
        %v1184 = vcosq.f32.pop %v1182
        %v1185 = vsinq.f32.pop %v1182
        %vm1186 = vweird.f32 %v336
        %v1187 = vand.u32 %v1183, 3
        %vm1188 = vcmp.lt.s32.totalorder %v1187, 2
        %vm1189 = vcmp.eq.s32.totalorder %v1187, 0
        %v1190 = vxor.u32 %v1185, 2147483648
        %v1191 = vsel %vm1189, %v1184, %v1190
        %vm1192 = vcmp.eq.s32.totalorder %v1187, 2
        %v1193 = vxor.u32 %v1184, 2147483648
        %v1194 = vsel %vm1192, %v1193, %v1185
        %v1195 = vsel %vm1188, %v1191, %v1194
        %v1196 = vsel %vm1186, nan, %v1195
        %v1199 = vcombine.high %v1093, %v1093
        %v1200 = vcombine.high %v1196, %v1196
        %1203 = vst [vmem:[#allocation2 + $0x60] sm:$0xf] %v1093
        %1204 = vst [vmem:[#allocation2 + $0x68] sm:$0xf] %v1199
        %1205 = vst [vmem:[#allocation2 + $0x70] sm:$0xf] %v1196
        %1206 = vst [vmem:[#allocation2 + $0x78] sm:$0xf] %v1200
        %v1207 = vmul.f32 %v335, 2.0
        %v1208 = vmul.f32 %v336, 2.0
        %v1209 = vand.u32 2147483647, %v1207
        %vm1210 = vcmp.le.f32.partialorder %v1209, 0.7853982
        %vm1211 = vcmp.lt.s32.totalorder %v1207, 0
        %v1212 = vand.u32 %v1207, 2139095040
        %v1213 = vshrl.u32 %v1212, 23
        %v1214 = vsub.s32 %v1213, 127
        %v1215 = vand.u32 2147483647, %v1207
        %v1216 = vand.u32 %v1215, 8388607
        %v1217 = vor.u32 %v1216, 8388608
        %v1218 = vsub.s32 0, %v1217
        %v1219 = vadd.s32 %v1214, 1
        %vm1220 = vcmp.gt.s32.totalorder %v1219, 0
        %v1221 = vsel %vm1220, %v1219, 0
        %v1222 = vshrl.u32 %v1221, 5
        %v1223 = vand.u32 %v1221, 31
        %v1224 = vsub.s32 32, %v1223
        %v1225 = vshrl.u32 683565275, %v1224
        %v1226 = vshll.u32 683565275, %v1223
        %v1227 = vshrl.u32 2475754826, %v1224
        %v1228 = vor.u32 %v1226, %v1227
        %v1229 = vshll.u32 2475754826, %v1223
        %v1230 = vshrl.u32 2131351028, %v1224
        %v1231 = vor.u32 %v1229, %v1230
        %v1232 = vshll.u32 2131351028, %v1223
        %v1233 = vshrl.u32 2102212464, %v1224
        %v1234 = vor.u32 %v1232, %v1233
        %v1235 = vshll.u32 2102212464, %v1223
        %v1236 = vshrl.u32 920167782, %v1224
        %v1237 = vor.u32 %v1235, %v1236
        %v1238 = vshll.u32 920167782, %v1223
        %v1239 = vshrl.u32 1326507024, %v1224
        %v1240 = vor.u32 %v1238, %v1239
        %vm1241 = vcmp.lt.s32.totalorder %v1222, 1
        %vm1242 = vcmp.lt.s32.totalorder %v1222, 2
        %vm1243 = vcmp.lt.s32.totalorder %v1222, 3
        %vm1244 = vcmp.lt.s32.totalorder %v1222, 4
        %v1245 = vsel %vm1241, %v1225, %v1228
        %v1246 = vsel %vm1244, %v1234, 2102212464
        %v1247 = vsel %vm1243, %v1231, %v1246
        %v1248 = vsel %vm1242, %v1245, %v1247
        %v1249 = vsel %vm1241, %v1228, %v1231
        %v1250 = vsel %vm1244, %v1237, 920167782
        %v1251 = vsel %vm1243, %v1234, %v1250
        %v1252 = vsel %vm1242, %v1249, %v1251
        %v1253 = vsel %vm1241, %v1231, %v1234
        %v1254 = vsel %vm1244, %v1240, 1326507024
        %v1255 = vsel %vm1243, %v1237, %v1254
        %v1256 = vsel %vm1242, %v1253, %v1255
        %v1257 = vshll.u32 %v1217, 8
        %v1258 = vmul.u32.u64.compose %v1257, %v1256
        %v1259 = vextract.low.u32 %v1258
        %v1260 = vextract.high.u32 %v1258
        %v1261 = vmul.u32.u64.compose %v1257, %v1252
        %v1262 = vextract.low.u32 %v1261
        %v1263 = vextract.high.u32 %v1261
        %v1264 = vmul.u32 %v1257, %v1248
        %v1265 = vadd.s32 %v1260, %v1262
        %vm1266 = vc.u32 %v1260, %v1262
        %v1267 = vadd.s32 %v1263, 1
        %v1268 = vsel %vm1266, %v1267, %v1263
        %v1269 = vadd.s32 %v1264, %v1268
        %v1270 = vadd.s32 %v1269, 536870912
        %v1271 = vshrl.u32 %v1270, 30
        %v1272 = vshll.u32 %v1271, 30
        %v1273 = vsub.s32 %v1269, %v1272
        %vm1274 = vcmp.lt.s32.totalorder %v1273, 0
        %v1275 = vsub.s32 0, %v1273
        %v1276 = vsel %vm1274, %v1275, %v1273
        %v1277 = vclz %v1276
        %v1278 = vsub.s32 %v1277, 2
        %vm1279 = vcmp.gt.s32.totalorder 0, %v1278
        %v1280 = vsel %vm1279, 0, %v1278
        %v1281 = vsub.s32 32, %v1280
        %v1282 = vshll.u32 %v1273, %v1280
        %v1283 = vshrl.u32 %v1265, %v1281
        %v1284 = vor.u32 %v1282, %v1283
        %v1285 = vsub.s32 4294967266, %v1280
        %v1286 = vadd.s32 %v1285, 127
        %v1287 = vshll.u32 %v1286, 23
        %v1288 = vor.u32 4788187, %v1287
        %v1289 = vand.u32 2147483647, %v1288
        %v1291 = vcvt.s32.f32 %v1284
        %v1292 = vmul.f32 %v1291, %v1289
        %v1293 = vxor.u32 %v1292, 2147483648
        %v1294 = vsel %vm1211, %v1293, %v1292
        %v1295 = vsub.s32 4, %v1271
        %v1296 = vsel %vm1211, %v1295, %v1271
        %v1297 = vsel %vm1210, %v1207, %v1294
        %v1298 = vsel %vm1210, 0, %v1296
        %v1299 = vcosq.f32.pop %v1297
        %v1300 = vsinq.f32.pop %v1297
        %vm1301 = vweird.f32 %v1207
        %v1302 = vadd.s32 %v1298, 3
        %v1303 = vand.u32 %v1302, 3
        %vm1304 = vcmp.lt.s32.totalorder %v1303, 2
        %vm1305 = vcmp.eq.s32.totalorder %v1303, 0
        %v1306 = vxor.u32 %v1300, 2147483648
        %v1307 = vsel %vm1305, %v1299, %v1306
        %vm1308 = vcmp.eq.s32.totalorder %v1303, 2
        %v1309 = vxor.u32 %v1299, 2147483648
        %v1310 = vsel %vm1308, %v1309, %v1300
        %v1311 = vsel %vm1304, %v1307, %v1310
        %v1312 = vsel %vm1301, nan, %v1311
        %v1313 = vand.u32 2147483647, %v1208
        %vm1314 = vcmp.le.f32.partialorder %v1313, 0.7853982
        %vm1315 = vcmp.lt.s32.totalorder %v1208, 0
        %v1316 = vand.u32 %v1208, 2139095040
        %v1317 = vshrl.u32 %v1316, 23
        %v1318 = vsub.s32 %v1317, 127
        %v1319 = vand.u32 2147483647, %v1208
        %v1320 = vand.u32 %v1319, 8388607
        %v1321 = vor.u32 %v1320, 8388608
        %v1322 = vsub.s32 0, %v1321
        %v1323 = vadd.s32 %v1318, 1
        %vm1324 = vcmp.gt.s32.totalorder %v1323, 0
        %v1325 = vsel %vm1324, %v1323, 0
        %v1326 = vshrl.u32 %v1325, 5
        %v1327 = vand.u32 %v1325, 31
        %v1328 = vsub.s32 32, %v1327
        %v1329 = vshrl.u32 683565275, %v1328
        %v1330 = vshll.u32 683565275, %v1327
        %v1331 = vshrl.u32 2475754826, %v1328
        %v1332 = vor.u32 %v1330, %v1331
        %v1333 = vshll.u32 2475754826, %v1327
        %v1334 = vshrl.u32 2131351028, %v1328
        %v1335 = vor.u32 %v1333, %v1334
        %v1336 = vshll.u32 2131351028, %v1327
        %v1337 = vshrl.u32 2102212464, %v1328
        %v1338 = vor.u32 %v1336, %v1337
        %v1339 = vshll.u32 2102212464, %v1327
        %v1340 = vshrl.u32 920167782, %v1328
        %v1341 = vor.u32 %v1339, %v1340
        %v1342 = vshll.u32 920167782, %v1327
        %v1343 = vshrl.u32 1326507024, %v1328
        %v1344 = vor.u32 %v1342, %v1343
        %vm1345 = vcmp.lt.s32.totalorder %v1326, 1
        %vm1346 = vcmp.lt.s32.totalorder %v1326, 2
        %vm1347 = vcmp.lt.s32.totalorder %v1326, 3
        %vm1348 = vcmp.lt.s32.totalorder %v1326, 4
        %v1349 = vsel %vm1345, %v1329, %v1332
        %v1350 = vsel %vm1348, %v1338, 2102212464
        %v1351 = vsel %vm1347, %v1335, %v1350
        %v1352 = vsel %vm1346, %v1349, %v1351
        %v1353 = vsel %vm1345, %v1332, %v1335
        %v1354 = vsel %vm1348, %v1341, 920167782
        %v1355 = vsel %vm1347, %v1338, %v1354
        %v1356 = vsel %vm1346, %v1353, %v1355
        %v1357 = vsel %vm1345, %v1335, %v1338
        %v1358 = vsel %vm1348, %v1344, 1326507024
        %v1359 = vsel %vm1347, %v1341, %v1358
        %v1360 = vsel %vm1346, %v1357, %v1359
        %v1361 = vshll.u32 %v1321, 8
        %v1362 = vmul.u32.u64.compose %v1361, %v1360
        %v1363 = vextract.low.u32 %v1362
        %v1364 = vextract.high.u32 %v1362
        %v1365 = vmul.u32.u64.compose %v1361, %v1356
        %v1366 = vextract.low.u32 %v1365
        %v1367 = vextract.high.u32 %v1365
        %v1368 = vmul.u32 %v1361, %v1352
        %v1369 = vadd.s32 %v1364, %v1366
        %vm1370 = vc.u32 %v1364, %v1366
        %v1371 = vadd.s32 %v1367, 1
        %v1372 = vsel %vm1370, %v1371, %v1367
        %v1373 = vadd.s32 %v1368, %v1372
        %v1374 = vadd.s32 %v1373, 536870912
        %v1375 = vshrl.u32 %v1374, 30
        %v1376 = vshll.u32 %v1375, 30
        %v1377 = vsub.s32 %v1373, %v1376
        %vm1378 = vcmp.lt.s32.totalorder %v1377, 0
        %v1379 = vsub.s32 0, %v1377
        %v1380 = vsel %vm1378, %v1379, %v1377
        %v1381 = vclz %v1380
        %v1382 = vsub.s32 %v1381, 2
        %vm1383 = vcmp.gt.s32.totalorder 0, %v1382
        %v1384 = vsel %vm1383, 0, %v1382
        %v1385 = vsub.s32 32, %v1384
        %v1386 = vshll.u32 %v1377, %v1384
        %v1387 = vshrl.u32 %v1369, %v1385
        %v1388 = vor.u32 %v1386, %v1387
        %v1389 = vsub.s32 4294967266, %v1384
        %v1390 = vadd.s32 %v1389, 127
        %v1391 = vshll.u32 %v1390, 23
        %v1392 = vor.u32 4788187, %v1391
        %v1393 = vand.u32 2147483647, %v1392
        %v1395 = vcvt.s32.f32 %v1388
        %v1396 = vmul.f32 %v1395, %v1393
        %v1397 = vxor.u32 %v1396, 2147483648
        %v1398 = vsel %vm1315, %v1397, %v1396
        %v1399 = vsub.s32 4, %v1375
        %v1400 = vsel %vm1315, %v1399, %v1375
        %v1401 = vsel %vm1314, %v1208, %v1398
        %v1402 = vsel %vm1314, 0, %v1400
        %v1403 = vcosq.f32.pop %v1401
        %v1404 = vsinq.f32.pop %v1401
        %vm1405 = vweird.f32 %v1208
        %v1406 = vadd.s32 %v1402, 3
        %v1407 = vand.u32 %v1406, 3
        %vm1408 = vcmp.lt.s32.totalorder %v1407, 2
        %vm1409 = vcmp.eq.s32.totalorder %v1407, 0
        %v1410 = vxor.u32 %v1404, 2147483648
        %v1411 = vsel %vm1409, %v1403, %v1410
        %vm1412 = vcmp.eq.s32.totalorder %v1407, 2
        %v1413 = vxor.u32 %v1403, 2147483648
        %v1414 = vsel %vm1412, %v1413, %v1404
        %v1415 = vsel %vm1408, %v1411, %v1414
        %v1416 = vsel %vm1405, nan, %v1415
        %v1419 = vcombine.high %v1312, %v1312
        %v1420 = vcombine.high %v1416, %v1416
        %1423 = vst [vmem:[#allocation2 + $0x20] sm:$0xf] %v1312
        %1424 = vst [vmem:[#allocation2 + $0x28] sm:$0xf] %v1419
        %1425 = vst [vmem:[#allocation2 + $0x30] sm:$0xf] %v1416
        %1426 = vst [vmem:[#allocation2 + $0x38] sm:$0xf] %v1420
        %v1427 = vand.u32 2147483647, %v1207
        %vm1428 = vcmp.le.f32.partialorder %v1427, 0.7853982
        %vm1429 = vcmp.lt.s32.totalorder %v1207, 0
        %v1430 = vand.u32 %v1207, 2139095040
        %v1431 = vshrl.u32 %v1430, 23
        %v1432 = vsub.s32 %v1431, 127
        %v1433 = vand.u32 2147483647, %v1207
        %v1434 = vand.u32 %v1433, 8388607
        %v1435 = vor.u32 %v1434, 8388608
        %v1436 = vsub.s32 0, %v1435
        %v1437 = vadd.s32 %v1432, 1
        %vm1438 = vcmp.gt.s32.totalorder %v1437, 0
        %v1439 = vsel %vm1438, %v1437, 0
        %v1440 = vshrl.u32 %v1439, 5
        %v1441 = vand.u32 %v1439, 31
        %v1442 = vsub.s32 32, %v1441
        %v1443 = vshrl.u32 683565275, %v1442
        %v1444 = vshll.u32 683565275, %v1441
        %v1445 = vshrl.u32 2475754826, %v1442
        %v1446 = vor.u32 %v1444, %v1445
        %v1447 = vshll.u32 2475754826, %v1441
        %v1448 = vshrl.u32 2131351028, %v1442
        %v1449 = vor.u32 %v1447, %v1448
        %v1450 = vshll.u32 2131351028, %v1441
        %v1451 = vshrl.u32 2102212464, %v1442
        %v1452 = vor.u32 %v1450, %v1451
        %v1453 = vshll.u32 2102212464, %v1441
        %v1454 = vshrl.u32 920167782, %v1442
        %v1455 = vor.u32 %v1453, %v1454
        %v1456 = vshll.u32 920167782, %v1441
        %v1457 = vshrl.u32 1326507024, %v1442
        %v1458 = vor.u32 %v1456, %v1457
        %vm1459 = vcmp.lt.s32.totalorder %v1440, 1
        %vm1460 = vcmp.lt.s32.totalorder %v1440, 2
        %vm1461 = vcmp.lt.s32.totalorder %v1440, 3
        %vm1462 = vcmp.lt.s32.totalorder %v1440, 4
        %v1463 = vsel %vm1459, %v1443, %v1446
        %v1464 = vsel %vm1462, %v1452, 2102212464
        %v1465 = vsel %vm1461, %v1449, %v1464
        %v1466 = vsel %vm1460, %v1463, %v1465
        %v1467 = vsel %vm1459, %v1446, %v1449
        %v1468 = vsel %vm1462, %v1455, 920167782
        %v1469 = vsel %vm1461, %v1452, %v1468
        %v1470 = vsel %vm1460, %v1467, %v1469
        %v1471 = vsel %vm1459, %v1449, %v1452
        %v1472 = vsel %vm1462, %v1458, 1326507024
        %v1473 = vsel %vm1461, %v1455, %v1472
        %v1474 = vsel %vm1460, %v1471, %v1473
        %v1475 = vshll.u32 %v1435, 8
        %v1476 = vmul.u32.u64.compose %v1475, %v1474
        %v1477 = vextract.low.u32 %v1476
        %v1478 = vextract.high.u32 %v1476
        %v1479 = vmul.u32.u64.compose %v1475, %v1470
        %v1480 = vextract.low.u32 %v1479
        %v1481 = vextract.high.u32 %v1479
        %v1482 = vmul.u32 %v1475, %v1466
        %v1483 = vadd.s32 %v1478, %v1480
        %vm1484 = vc.u32 %v1478, %v1480
        %v1485 = vadd.s32 %v1481, 1
        %v1486 = vsel %vm1484, %v1485, %v1481
        %v1487 = vadd.s32 %v1482, %v1486
        %v1488 = vadd.s32 %v1487, 536870912
        %v1489 = vshrl.u32 %v1488, 30
        %v1490 = vshll.u32 %v1489, 30
        %v1491 = vsub.s32 %v1487, %v1490
        %vm1492 = vcmp.lt.s32.totalorder %v1491, 0
        %v1493 = vsub.s32 0, %v1491
        %v1494 = vsel %vm1492, %v1493, %v1491
        %v1495 = vclz %v1494
        %v1496 = vsub.s32 %v1495, 2
        %vm1497 = vcmp.gt.s32.totalorder 0, %v1496
        %v1498 = vsel %vm1497, 0, %v1496
        %v1499 = vsub.s32 32, %v1498
        %v1500 = vshll.u32 %v1491, %v1498
        %v1501 = vshrl.u32 %v1483, %v1499
        %v1502 = vor.u32 %v1500, %v1501
        %v1503 = vsub.s32 4294967266, %v1498
        %v1504 = vadd.s32 %v1503, 127
        %v1505 = vshll.u32 %v1504, 23
        %v1506 = vor.u32 4788187, %v1505
        %v1507 = vand.u32 2147483647, %v1506
        %v1509 = vcvt.s32.f32 %v1502
        %v1510 = vmul.f32 %v1509, %v1507
        %v1511 = vxor.u32 %v1510, 2147483648
        %v1512 = vsel %vm1429, %v1511, %v1510
        %v1513 = vsub.s32 4, %v1489
        %v1514 = vsel %vm1429, %v1513, %v1489
        %v1515 = vsel %vm1428, %v1207, %v1512
        %v1516 = vsel %vm1428, 0, %v1514
        %v1517 = vcosq.f32.pop %v1515
        %v1518 = vsinq.f32.pop %v1515
        %vm1519 = vweird.f32 %v1207
        %v1520 = vand.u32 %v1516, 3
        %vm1521 = vcmp.lt.s32.totalorder %v1520, 2
        %vm1522 = vcmp.eq.s32.totalorder %v1520, 0
        %v1523 = vxor.u32 %v1518, 2147483648
        %v1524 = vsel %vm1522, %v1517, %v1523
        %vm1525 = vcmp.eq.s32.totalorder %v1520, 2
        %v1526 = vxor.u32 %v1517, 2147483648
        %v1527 = vsel %vm1525, %v1526, %v1518
        %v1528 = vsel %vm1521, %v1524, %v1527
        %v1529 = vsel %vm1519, nan, %v1528
        %v1530 = vand.u32 2147483647, %v1208
        %vm1531 = vcmp.le.f32.partialorder %v1530, 0.7853982
        %vm1532 = vcmp.lt.s32.totalorder %v1208, 0
        %v1533 = vand.u32 %v1208, 2139095040
        %v1534 = vshrl.u32 %v1533, 23
        %v1535 = vsub.s32 %v1534, 127
        %v1536 = vand.u32 2147483647, %v1208
        %v1537 = vand.u32 %v1536, 8388607
        %v1538 = vor.u32 %v1537, 8388608
        %v1539 = vsub.s32 0, %v1538
        %v1540 = vadd.s32 %v1535, 1
        %vm1541 = vcmp.gt.s32.totalorder %v1540, 0
        %v1542 = vsel %vm1541, %v1540, 0
        %v1543 = vshrl.u32 %v1542, 5
        %v1544 = vand.u32 %v1542, 31
        %v1545 = vsub.s32 32, %v1544
        %v1546 = vshrl.u32 683565275, %v1545
        %v1547 = vshll.u32 683565275, %v1544
        %v1548 = vshrl.u32 2475754826, %v1545
        %v1549 = vor.u32 %v1547, %v1548
        %v1550 = vshll.u32 2475754826, %v1544
        %v1551 = vshrl.u32 2131351028, %v1545
        %v1552 = vor.u32 %v1550, %v1551
        %v1553 = vshll.u32 2131351028, %v1544
        %v1554 = vshrl.u32 2102212464, %v1545
        %v1555 = vor.u32 %v1553, %v1554
        %v1556 = vshll.u32 2102212464, %v1544
        %v1557 = vshrl.u32 920167782, %v1545
        %v1558 = vor.u32 %v1556, %v1557
        %v1559 = vshll.u32 920167782, %v1544
        %v1560 = vshrl.u32 1326507024, %v1545
        %v1561 = vor.u32 %v1559, %v1560
        %vm1562 = vcmp.lt.s32.totalorder %v1543, 1
        %vm1563 = vcmp.lt.s32.totalorder %v1543, 2
        %vm1564 = vcmp.lt.s32.totalorder %v1543, 3
        %vm1565 = vcmp.lt.s32.totalorder %v1543, 4
        %v1566 = vsel %vm1562, %v1546, %v1549
        %v1567 = vsel %vm1565, %v1555, 2102212464
        %v1568 = vsel %vm1564, %v1552, %v1567
        %v1569 = vsel %vm1563, %v1566, %v1568
        %v1570 = vsel %vm1562, %v1549, %v1552
        %v1571 = vsel %vm1565, %v1558, 920167782
        %v1572 = vsel %vm1564, %v1555, %v1571
        %v1573 = vsel %vm1563, %v1570, %v1572
        %v1574 = vsel %vm1562, %v1552, %v1555
        %v1575 = vsel %vm1565, %v1561, 1326507024
        %v1576 = vsel %vm1564, %v1558, %v1575
        %v1577 = vsel %vm1563, %v1574, %v1576
        %v1578 = vshll.u32 %v1538, 8
        %v1579 = vmul.u32.u64.compose %v1578, %v1577
        %v1580 = vextract.low.u32 %v1579
        %v1581 = vextract.high.u32 %v1579
        %v1582 = vmul.u32.u64.compose %v1578, %v1573
        %v1583 = vextract.low.u32 %v1582
        %v1584 = vextract.high.u32 %v1582
        %v1585 = vmul.u32 %v1578, %v1569
        %v1586 = vadd.s32 %v1581, %v1583
        %vm1587 = vc.u32 %v1581, %v1583
        %v1588 = vadd.s32 %v1584, 1
        %v1589 = vsel %vm1587, %v1588, %v1584
        %v1590 = vadd.s32 %v1585, %v1589
        %v1591 = vadd.s32 %v1590, 536870912
        %v1592 = vshrl.u32 %v1591, 30
        %v1593 = vshll.u32 %v1592, 30
        %v1594 = vsub.s32 %v1590, %v1593
        %vm1595 = vcmp.lt.s32.totalorder %v1594, 0
        %v1596 = vsub.s32 0, %v1594
        %v1597 = vsel %vm1595, %v1596, %v1594
        %v1598 = vclz %v1597
        %v1599 = vsub.s32 %v1598, 2
        %vm1600 = vcmp.gt.s32.totalorder 0, %v1599
        %v1601 = vsel %vm1600, 0, %v1599
        %v1602 = vsub.s32 32, %v1601
        %v1603 = vshll.u32 %v1594, %v1601
        %v1604 = vshrl.u32 %v1586, %v1602
        %v1605 = vor.u32 %v1603, %v1604
        %v1606 = vsub.s32 4294967266, %v1601
        %v1607 = vadd.s32 %v1606, 127
        %v1608 = vshll.u32 %v1607, 23
        %v1609 = vor.u32 4788187, %v1608
        %v1610 = vand.u32 2147483647, %v1609
        %v1612 = vcvt.s32.f32 %v1605
        %v1613 = vmul.f32 %v1612, %v1610
        %v1614 = vxor.u32 %v1613, 2147483648
        %v1615 = vsel %vm1532, %v1614, %v1613
        %v1616 = vsub.s32 4, %v1592
        %v1617 = vsel %vm1532, %v1616, %v1592
        %v1618 = vsel %vm1531, %v1208, %v1615
        %v1619 = vsel %vm1531, 0, %v1617
        %v1620 = vcosq.f32.pop %v1618
        %v1621 = vsinq.f32.pop %v1618
        %vm1622 = vweird.f32 %v1208
        %v1623 = vand.u32 %v1619, 3
        %vm1624 = vcmp.lt.s32.totalorder %v1623, 2
        %vm1625 = vcmp.eq.s32.totalorder %v1623, 0
        %v1626 = vxor.u32 %v1621, 2147483648
        %v1627 = vsel %vm1625, %v1620, %v1626
        %vm1628 = vcmp.eq.s32.totalorder %v1623, 2
        %v1629 = vxor.u32 %v1620, 2147483648
        %v1630 = vsel %vm1628, %v1629, %v1621
        %v1631 = vsel %vm1624, %v1627, %v1630
        %v1632 = vsel %vm1622, nan, %v1631
        %v1635 = vcombine.low %v1529, %v1529
        %v1636 = vcombine.low %v1632, %v1632
        %1639 = vst [vmem:[#allocation2 + $0x60] sm:$0xf0] %v1635
        %1640 = vst [vmem:[#allocation2 + $0x68] sm:$0xf0] %v1529
        %1641 = vst [vmem:[#allocation2 + $0x70] sm:$0xf0] %v1636
        %1642 = vst [vmem:[#allocation2 + $0x78] sm:$0xf0] %v1632
        %v1643 = vmul.f32 %v335, 4.0
        %v1644 = vmul.f32 %v336, 4.0
        %v1645 = vand.u32 2147483647, %v1643
        %vm1646 = vcmp.le.f32.partialorder %v1645, 0.7853982
        %vm1647 = vcmp.lt.s32.totalorder %v1643, 0
        %v1648 = vand.u32 %v1643, 2139095040
        %v1649 = vshrl.u32 %v1648, 23
        %v1650 = vsub.s32 %v1649, 127
        %v1651 = vand.u32 2147483647, %v1643
        %v1652 = vand.u32 %v1651, 8388607
        %v1653 = vor.u32 %v1652, 8388608
        %v1654 = vsub.s32 0, %v1653
        %v1655 = vadd.s32 %v1650, 1
        %vm1656 = vcmp.gt.s32.totalorder %v1655, 0
        %v1657 = vsel %vm1656, %v1655, 0
        %v1658 = vshrl.u32 %v1657, 5
        %v1659 = vand.u32 %v1657, 31
        %v1660 = vsub.s32 32, %v1659
        %v1661 = vshrl.u32 683565275, %v1660
        %v1662 = vshll.u32 683565275, %v1659
        %v1663 = vshrl.u32 2475754826, %v1660
        %v1664 = vor.u32 %v1662, %v1663
        %v1665 = vshll.u32 2475754826, %v1659
        %v1666 = vshrl.u32 2131351028, %v1660
        %v1667 = vor.u32 %v1665, %v1666
        %v1668 = vshll.u32 2131351028, %v1659
        %v1669 = vshrl.u32 2102212464, %v1660
        %v1670 = vor.u32 %v1668, %v1669
        %v1671 = vshll.u32 2102212464, %v1659
        %v1672 = vshrl.u32 920167782, %v1660
        %v1673 = vor.u32 %v1671, %v1672
        %v1674 = vshll.u32 920167782, %v1659
        %v1675 = vshrl.u32 1326507024, %v1660
        %v1676 = vor.u32 %v1674, %v1675
        %vm1677 = vcmp.lt.s32.totalorder %v1658, 1
        %vm1678 = vcmp.lt.s32.totalorder %v1658, 2
        %vm1679 = vcmp.lt.s32.totalorder %v1658, 3
        %vm1680 = vcmp.lt.s32.totalorder %v1658, 4
        %v1681 = vsel %vm1677, %v1661, %v1664
        %v1682 = vsel %vm1680, %v1670, 2102212464
        %v1683 = vsel %vm1679, %v1667, %v1682
        %v1684 = vsel %vm1678, %v1681, %v1683
        %v1685 = vsel %vm1677, %v1664, %v1667
        %v1686 = vsel %vm1680, %v1673, 920167782
        %v1687 = vsel %vm1679, %v1670, %v1686
        %v1688 = vsel %vm1678, %v1685, %v1687
        %v1689 = vsel %vm1677, %v1667, %v1670
        %v1690 = vsel %vm1680, %v1676, 1326507024
        %v1691 = vsel %vm1679, %v1673, %v1690
        %v1692 = vsel %vm1678, %v1689, %v1691
        %v1693 = vshll.u32 %v1653, 8
        %v1694 = vmul.u32.u64.compose %v1693, %v1692
        %v1695 = vextract.low.u32 %v1694
        %v1696 = vextract.high.u32 %v1694
        %v1697 = vmul.u32.u64.compose %v1693, %v1688
        %v1698 = vextract.low.u32 %v1697
        %v1699 = vextract.high.u32 %v1697
        %v1700 = vmul.u32 %v1693, %v1684
        %v1701 = vadd.s32 %v1696, %v1698
        %vm1702 = vc.u32 %v1696, %v1698
        %v1703 = vadd.s32 %v1699, 1
        %v1704 = vsel %vm1702, %v1703, %v1699
        %v1705 = vadd.s32 %v1700, %v1704
        %v1706 = vadd.s32 %v1705, 536870912
        %v1707 = vshrl.u32 %v1706, 30
        %v1708 = vshll.u32 %v1707, 30
        %v1709 = vsub.s32 %v1705, %v1708
        %vm1710 = vcmp.lt.s32.totalorder %v1709, 0
        %v1711 = vsub.s32 0, %v1709
        %v1712 = vsel %vm1710, %v1711, %v1709
        %v1713 = vclz %v1712
        %v1714 = vsub.s32 %v1713, 2
        %vm1715 = vcmp.gt.s32.totalorder 0, %v1714
        %v1716 = vsel %vm1715, 0, %v1714
        %v1717 = vsub.s32 32, %v1716
        %v1718 = vshll.u32 %v1709, %v1716
        %v1719 = vshrl.u32 %v1701, %v1717
        %v1720 = vor.u32 %v1718, %v1719
        %v1721 = vsub.s32 4294967266, %v1716
        %v1722 = vadd.s32 %v1721, 127
        %v1723 = vshll.u32 %v1722, 23
        %v1724 = vor.u32 4788187, %v1723
        %v1725 = vand.u32 2147483647, %v1724
        %v1727 = vcvt.s32.f32 %v1720
        %v1728 = vmul.f32 %v1727, %v1725
        %v1729 = vxor.u32 %v1728, 2147483648
        %v1730 = vsel %vm1647, %v1729, %v1728
        %v1731 = vsub.s32 4, %v1707
        %v1732 = vsel %vm1647, %v1731, %v1707
        %v1733 = vsel %vm1646, %v1643, %v1730
        %v1734 = vsel %vm1646, 0, %v1732
        %v1735 = vcosq.f32.pop %v1733
        %v1736 = vsinq.f32.pop %v1733
        %vm1737 = vweird.f32 %v1643
        %v1738 = vadd.s32 %v1734, 3
        %v1739 = vand.u32 %v1738, 3
        %vm1740 = vcmp.lt.s32.totalorder %v1739, 2
        %vm1741 = vcmp.eq.s32.totalorder %v1739, 0
        %v1742 = vxor.u32 %v1736, 2147483648
        %v1743 = vsel %vm1741, %v1735, %v1742
        %vm1744 = vcmp.eq.s32.totalorder %v1739, 2
        %v1745 = vxor.u32 %v1735, 2147483648
        %v1746 = vsel %vm1744, %v1745, %v1736
        %v1747 = vsel %vm1740, %v1743, %v1746
        %v1748 = vsel %vm1737, nan, %v1747
        %v1749 = vand.u32 2147483647, %v1644
        %vm1750 = vcmp.le.f32.partialorder %v1749, 0.7853982
        %vm1751 = vcmp.lt.s32.totalorder %v1644, 0
        %v1752 = vand.u32 %v1644, 2139095040
        %v1753 = vshrl.u32 %v1752, 23
        %v1754 = vsub.s32 %v1753, 127
        %v1755 = vand.u32 2147483647, %v1644
        %v1756 = vand.u32 %v1755, 8388607
        %v1757 = vor.u32 %v1756, 8388608
        %v1758 = vsub.s32 0, %v1757
        %v1759 = vadd.s32 %v1754, 1
        %vm1760 = vcmp.gt.s32.totalorder %v1759, 0
        %v1761 = vsel %vm1760, %v1759, 0
        %v1762 = vshrl.u32 %v1761, 5
        %v1763 = vand.u32 %v1761, 31
        %v1764 = vsub.s32 32, %v1763
        %v1765 = vshrl.u32 683565275, %v1764
        %v1766 = vshll.u32 683565275, %v1763
        %v1767 = vshrl.u32 2475754826, %v1764
        %v1768 = vor.u32 %v1766, %v1767
        %v1769 = vshll.u32 2475754826, %v1763
        %v1770 = vshrl.u32 2131351028, %v1764
        %v1771 = vor.u32 %v1769, %v1770
        %v1772 = vshll.u32 2131351028, %v1763
        %v1773 = vshrl.u32 2102212464, %v1764
        %v1774 = vor.u32 %v1772, %v1773
        %v1775 = vshll.u32 2102212464, %v1763
        %v1776 = vshrl.u32 920167782, %v1764
        %v1777 = vor.u32 %v1775, %v1776
        %v1778 = vshll.u32 920167782, %v1763
        %v1779 = vshrl.u32 1326507024, %v1764
        %v1780 = vor.u32 %v1778, %v1779
        %vm1781 = vcmp.lt.s32.totalorder %v1762, 1
        %vm1782 = vcmp.lt.s32.totalorder %v1762, 2
        %vm1783 = vcmp.lt.s32.totalorder %v1762, 3
        %vm1784 = vcmp.lt.s32.totalorder %v1762, 4
        %v1785 = vsel %vm1781, %v1765, %v1768
        %v1786 = vsel %vm1784, %v1774, 2102212464
        %v1787 = vsel %vm1783, %v1771, %v1786
        %v1788 = vsel %vm1782, %v1785, %v1787
        %v1789 = vsel %vm1781, %v1768, %v1771
        %v1790 = vsel %vm1784, %v1777, 920167782
        %v1791 = vsel %vm1783, %v1774, %v1790
        %v1792 = vsel %vm1782, %v1789, %v1791
        %v1793 = vsel %vm1781, %v1771, %v1774
        %v1794 = vsel %vm1784, %v1780, 1326507024
        %v1795 = vsel %vm1783, %v1777, %v1794
        %v1796 = vsel %vm1782, %v1793, %v1795
        %v1797 = vshll.u32 %v1757, 8
        %v1798 = vmul.u32.u64.compose %v1797, %v1796
        %v1799 = vextract.low.u32 %v1798
        %v1800 = vextract.high.u32 %v1798
        %v1801 = vmul.u32.u64.compose %v1797, %v1792
        %v1802 = vextract.low.u32 %v1801
        %v1803 = vextract.high.u32 %v1801
        %v1804 = vmul.u32 %v1797, %v1788
        %v1805 = vadd.s32 %v1800, %v1802
        %vm1806 = vc.u32 %v1800, %v1802
        %v1807 = vadd.s32 %v1803, 1
        %v1808 = vsel %vm1806, %v1807, %v1803
        %v1809 = vadd.s32 %v1804, %v1808
        %v1810 = vadd.s32 %v1809, 536870912
        %v1811 = vshrl.u32 %v1810, 30
        %v1812 = vshll.u32 %v1811, 30
        %v1813 = vsub.s32 %v1809, %v1812
        %vm1814 = vcmp.lt.s32.totalorder %v1813, 0
        %v1815 = vsub.s32 0, %v1813
        %v1816 = vsel %vm1814, %v1815, %v1813
        %v1817 = vclz %v1816
        %v1818 = vsub.s32 %v1817, 2
        %vm1819 = vcmp.gt.s32.totalorder 0, %v1818
        %v1820 = vsel %vm1819, 0, %v1818
        %v1821 = vsub.s32 32, %v1820
        %v1822 = vshll.u32 %v1813, %v1820
        %v1823 = vshrl.u32 %v1805, %v1821
        %v1824 = vor.u32 %v1822, %v1823
        %v1825 = vsub.s32 4294967266, %v1820
        %v1826 = vadd.s32 %v1825, 127
        %v1827 = vshll.u32 %v1826, 23
        %v1828 = vor.u32 4788187, %v1827
        %v1829 = vand.u32 2147483647, %v1828
        %v1831 = vcvt.s32.f32 %v1824
        %v1832 = vmul.f32 %v1831, %v1829
        %v1833 = vxor.u32 %v1832, 2147483648
        %v1834 = vsel %vm1751, %v1833, %v1832
        %v1835 = vsub.s32 4, %v1811
        %v1836 = vsel %vm1751, %v1835, %v1811
        %v1837 = vsel %vm1750, %v1644, %v1834
        %v1838 = vsel %vm1750, 0, %v1836
        %v1839 = vcosq.f32.pop %v1837
        %v1840 = vsinq.f32.pop %v1837
        %vm1841 = vweird.f32 %v1644
        %v1842 = vadd.s32 %v1838, 3
        %v1843 = vand.u32 %v1842, 3
        %vm1844 = vcmp.lt.s32.totalorder %v1843, 2
        %vm1845 = vcmp.eq.s32.totalorder %v1843, 0
        %v1846 = vxor.u32 %v1840, 2147483648
        %v1847 = vsel %vm1845, %v1839, %v1846
        %vm1848 = vcmp.eq.s32.totalorder %v1843, 2
        %v1849 = vxor.u32 %v1839, 2147483648
        %v1850 = vsel %vm1848, %v1849, %v1840
        %v1851 = vsel %vm1844, %v1847, %v1850
        %v1852 = vsel %vm1841, nan, %v1851
        %v1855 = vcombine.low %v1748, %v1748
        %v1856 = vcombine.low %v1852, %v1852
        %1859 = vst [vmem:[#allocation2 + $0x20] sm:$0xf0] %v1855
        %1860 = vst [vmem:[#allocation2 + $0x28] sm:$0xf0] %v1748
        %1861 = vst [vmem:[#allocation2 + $0x30] sm:$0xf0] %v1856
        %1862 = vst [vmem:[#allocation2 + $0x38] sm:$0xf0] %v1852
        %v1863 = vand.u32 2147483647, %v1643
        %vm1864 = vcmp.le.f32.partialorder %v1863, 0.7853982
        %vm1865 = vcmp.lt.s32.totalorder %v1643, 0
        %v1866 = vand.u32 %v1643, 2139095040
        %v1867 = vshrl.u32 %v1866, 23
        %v1868 = vsub.s32 %v1867, 127
        %v1869 = vand.u32 2147483647, %v1643
        %v1870 = vand.u32 %v1869, 8388607
        %v1871 = vor.u32 %v1870, 8388608
        %v1872 = vsub.s32 0, %v1871
        %v1873 = vadd.s32 %v1868, 1
        %vm1874 = vcmp.gt.s32.totalorder %v1873, 0
        %v1875 = vsel %vm1874, %v1873, 0
        %v1876 = vshrl.u32 %v1875, 5
        %v1877 = vand.u32 %v1875, 31
        %v1878 = vsub.s32 32, %v1877
        %v1879 = vshrl.u32 683565275, %v1878
        %v1880 = vshll.u32 683565275, %v1877
        %v1881 = vshrl.u32 2475754826, %v1878
        %v1882 = vor.u32 %v1880, %v1881
        %v1883 = vshll.u32 2475754826, %v1877
        %v1884 = vshrl.u32 2131351028, %v1878
        %v1885 = vor.u32 %v1883, %v1884
        %v1886 = vshll.u32 2131351028, %v1877
        %v1887 = vshrl.u32 2102212464, %v1878
        %v1888 = vor.u32 %v1886, %v1887
        %v1889 = vshll.u32 2102212464, %v1877
        %v1890 = vshrl.u32 920167782, %v1878
        %v1891 = vor.u32 %v1889, %v1890
        %v1892 = vshll.u32 920167782, %v1877
        %v1893 = vshrl.u32 1326507024, %v1878
        %v1894 = vor.u32 %v1892, %v1893
        %vm1895 = vcmp.lt.s32.totalorder %v1876, 1
        %vm1896 = vcmp.lt.s32.totalorder %v1876, 2
        %vm1897 = vcmp.lt.s32.totalorder %v1876, 3
        %vm1898 = vcmp.lt.s32.totalorder %v1876, 4
        %v1899 = vsel %vm1895, %v1879, %v1882
        %v1900 = vsel %vm1898, %v1888, 2102212464
        %v1901 = vsel %vm1897, %v1885, %v1900
        %v1902 = vsel %vm1896, %v1899, %v1901
        %v1903 = vsel %vm1895, %v1882, %v1885
        %v1904 = vsel %vm1898, %v1891, 920167782
        %v1905 = vsel %vm1897, %v1888, %v1904
        %v1906 = vsel %vm1896, %v1903, %v1905
        %v1907 = vsel %vm1895, %v1885, %v1888
        %v1908 = vsel %vm1898, %v1894, 1326507024
        %v1909 = vsel %vm1897, %v1891, %v1908
        %v1910 = vsel %vm1896, %v1907, %v1909
        %v1911 = vshll.u32 %v1871, 8
        %v1912 = vmul.u32.u64.compose %v1911, %v1910
        %v1913 = vextract.low.u32 %v1912
        %v1914 = vextract.high.u32 %v1912
        %v1915 = vmul.u32.u64.compose %v1911, %v1906
        %v1916 = vextract.low.u32 %v1915
        %v1917 = vextract.high.u32 %v1915
        %v1918 = vmul.u32 %v1911, %v1902
        %v1919 = vadd.s32 %v1914, %v1916
        %vm1920 = vc.u32 %v1914, %v1916
        %v1921 = vadd.s32 %v1917, 1
        %v1922 = vsel %vm1920, %v1921, %v1917
        %v1923 = vadd.s32 %v1918, %v1922
        %v1924 = vadd.s32 %v1923, 536870912
        %v1925 = vshrl.u32 %v1924, 30
        %v1926 = vshll.u32 %v1925, 30
        %v1927 = vsub.s32 %v1923, %v1926
        %vm1928 = vcmp.lt.s32.totalorder %v1927, 0
        %v1929 = vsub.s32 0, %v1927
        %v1930 = vsel %vm1928, %v1929, %v1927
        %v1931 = vclz %v1930
        %v1932 = vsub.s32 %v1931, 2
        %vm1933 = vcmp.gt.s32.totalorder 0, %v1932
        %v1934 = vsel %vm1933, 0, %v1932
        %v1935 = vsub.s32 32, %v1934
        %v1936 = vshll.u32 %v1927, %v1934
        %v1937 = vshrl.u32 %v1919, %v1935
        %v1938 = vor.u32 %v1936, %v1937
        %v1939 = vsub.s32 4294967266, %v1934
        %v1940 = vadd.s32 %v1939, 127
        %v1941 = vshll.u32 %v1940, 23
        %v1942 = vor.u32 4788187, %v1941
        %v1943 = vand.u32 2147483647, %v1942
        %v1945 = vcvt.s32.f32 %v1938
        %v1946 = vmul.f32 %v1945, %v1943
        %v1947 = vxor.u32 %v1946, 2147483648
        %v1948 = vsel %vm1865, %v1947, %v1946
        %v1949 = vsub.s32 4, %v1925
        %v1950 = vsel %vm1865, %v1949, %v1925
        %v1951 = vsel %vm1864, %v1643, %v1948
        %v1952 = vsel %vm1864, 0, %v1950
        %v1953 = vcosq.f32.pop %v1951
        %v1954 = vsinq.f32.pop %v1951
        %vm1955 = vweird.f32 %v1643
        %v1956 = vand.u32 %v1952, 3
        %vm1957 = vcmp.lt.s32.totalorder %v1956, 2
        %vm1958 = vcmp.eq.s32.totalorder %v1956, 0
        %v1959 = vxor.u32 %v1954, 2147483648
        %v1960 = vsel %vm1958, %v1953, %v1959
        %vm1961 = vcmp.eq.s32.totalorder %v1956, 2
        %v1962 = vxor.u32 %v1953, 2147483648
        %v1963 = vsel %vm1961, %v1962, %v1954
        %v1964 = vsel %vm1957, %v1960, %v1963
        %v1965 = vsel %vm1955, nan, %v1964
        %v1966 = vand.u32 2147483647, %v1644
        %vm1967 = vcmp.le.f32.partialorder %v1966, 0.7853982
        %vm1968 = vcmp.lt.s32.totalorder %v1644, 0
        %v1969 = vand.u32 %v1644, 2139095040
        %v1970 = vshrl.u32 %v1969, 23
        %v1971 = vsub.s32 %v1970, 127
        %v1972 = vand.u32 2147483647, %v1644
        %v1973 = vand.u32 %v1972, 8388607
        %v1974 = vor.u32 %v1973, 8388608
        %v1975 = vsub.s32 0, %v1974
        %v1976 = vadd.s32 %v1971, 1
        %vm1977 = vcmp.gt.s32.totalorder %v1976, 0
        %v1978 = vsel %vm1977, %v1976, 0
        %v1979 = vshrl.u32 %v1978, 5
        %v1980 = vand.u32 %v1978, 31
        %v1981 = vsub.s32 32, %v1980
        %v1982 = vshrl.u32 683565275, %v1981
        %v1983 = vshll.u32 683565275, %v1980
        %v1984 = vshrl.u32 2475754826, %v1981
        %v1985 = vor.u32 %v1983, %v1984
        %v1986 = vshll.u32 2475754826, %v1980
        %v1987 = vshrl.u32 2131351028, %v1981
        %v1988 = vor.u32 %v1986, %v1987
        %v1989 = vshll.u32 2131351028, %v1980
        %v1990 = vshrl.u32 2102212464, %v1981
        %v1991 = vor.u32 %v1989, %v1990
        %v1992 = vshll.u32 2102212464, %v1980
        %v1993 = vshrl.u32 920167782, %v1981
        %v1994 = vor.u32 %v1992, %v1993
        %v1995 = vshll.u32 920167782, %v1980
        %v1996 = vshrl.u32 1326507024, %v1981
        %v1997 = vor.u32 %v1995, %v1996
        %vm1998 = vcmp.lt.s32.totalorder %v1979, 1
        %vm1999 = vcmp.lt.s32.totalorder %v1979, 2
        %vm2000 = vcmp.lt.s32.totalorder %v1979, 3
        %vm2001 = vcmp.lt.s32.totalorder %v1979, 4
        %v2002 = vsel %vm1998, %v1982, %v1985
        %v2003 = vsel %vm2001, %v1991, 2102212464
        %v2004 = vsel %vm2000, %v1988, %v2003
        %v2005 = vsel %vm1999, %v2002, %v2004
        %v2006 = vsel %vm1998, %v1985, %v1988
        %v2007 = vsel %vm2001, %v1994, 920167782
        %v2008 = vsel %vm2000, %v1991, %v2007
        %v2009 = vsel %vm1999, %v2006, %v2008
        %v2010 = vsel %vm1998, %v1988, %v1991
        %v2011 = vsel %vm2001, %v1997, 1326507024
        %v2012 = vsel %vm2000, %v1994, %v2011
        %v2013 = vsel %vm1999, %v2010, %v2012
        %v2014 = vshll.u32 %v1974, 8
        %v2015 = vmul.u32.u64.compose %v2014, %v2013
        %v2016 = vextract.low.u32 %v2015
        %v2017 = vextract.high.u32 %v2015
        %v2018 = vmul.u32.u64.compose %v2014, %v2009
        %v2019 = vextract.low.u32 %v2018
        %v2020 = vextract.high.u32 %v2018
        %v2021 = vmul.u32 %v2014, %v2005
        %v2022 = vadd.s32 %v2017, %v2019
        %vm2023 = vc.u32 %v2017, %v2019
        %v2024 = vadd.s32 %v2020, 1
        %v2025 = vsel %vm2023, %v2024, %v2020
        %v2026 = vadd.s32 %v2021, %v2025
        %v2027 = vadd.s32 %v2026, 536870912
        %v2028 = vshrl.u32 %v2027, 30
        %v2029 = vshll.u32 %v2028, 30
        %v2030 = vsub.s32 %v2026, %v2029
        %vm2031 = vcmp.lt.s32.totalorder %v2030, 0
        %v2032 = vsub.s32 0, %v2030
        %v2033 = vsel %vm2031, %v2032, %v2030
        %v2034 = vclz %v2033
        %v2035 = vsub.s32 %v2034, 2
        %vm2036 = vcmp.gt.s32.totalorder 0, %v2035
        %v2037 = vsel %vm2036, 0, %v2035
        %v2038 = vsub.s32 32, %v2037
        %v2039 = vshll.u32 %v2030, %v2037
        %v2040 = vshrl.u32 %v2022, %v2038
        %v2041 = vor.u32 %v2039, %v2040
        %v2042 = vsub.s32 4294967266, %v2037
        %v2043 = vadd.s32 %v2042, 127
        %v2044 = vshll.u32 %v2043, 23
        %v2045 = vor.u32 4788187, %v2044
        %v2046 = vand.u32 2147483647, %v2045
        %v2048 = vcvt.s32.f32 %v2041
        %v2049 = vmul.f32 %v2048, %v2046
        %v2050 = vxor.u32 %v2049, 2147483648
        %v2051 = vsel %vm1968, %v2050, %v2049
        %v2052 = vsub.s32 4, %v2028
        %v2053 = vsel %vm1968, %v2052, %v2028
        %v2054 = vsel %vm1967, %v1644, %v2051
        %v2055 = vsel %vm1967, 0, %v2053
        %v2056 = vcosq.f32.pop %v2054
        %v2057 = vsinq.f32.pop %v2054
        %vm2058 = vweird.f32 %v1644
        %v2059 = vand.u32 %v2055, 3
        %vm2060 = vcmp.lt.s32.totalorder %v2059, 2
        %vm2061 = vcmp.eq.s32.totalorder %v2059, 0
        %v2062 = vxor.u32 %v2057, 2147483648
        %v2063 = vsel %vm2061, %v2056, %v2062
        %vm2064 = vcmp.eq.s32.totalorder %v2059, 2
        %v2065 = vxor.u32 %v2056, 2147483648
        %v2066 = vsel %vm2064, %v2065, %v2057
        %v2067 = vsel %vm2060, %v2063, %v2066
        %v2068 = vsel %vm2058, nan, %v2067
        %v2071 = vcombine.high %v1965, %v1965
        %v2072 = vcombine.high %v2068, %v2068
        %2075 = vst [vmem:[#allocation2 + $0x80] sm:$0xf] %v1965
        %2076 = vst [vmem:[#allocation2 + $0x88] sm:$0xf] %v2071
        %2077 = vst [vmem:[#allocation2 + $0x90] sm:$0xf] %v2068
        %2078 = vst [vmem:[#allocation2 + $0x98] sm:$0xf] %v2072
        %v2079 = vmul.f32 %v335, 8.0
        %v2080 = vmul.f32 %v336, 8.0
        %v2081 = vand.u32 2147483647, %v2079
        %vm2082 = vcmp.le.f32.partialorder %v2081, 0.7853982
        %vm2083 = vcmp.lt.s32.totalorder %v2079, 0
        %v2084 = vand.u32 %v2079, 2139095040
        %v2085 = vshrl.u32 %v2084, 23
        %v2086 = vsub.s32 %v2085, 127
        %v2087 = vand.u32 2147483647, %v2079
        %v2088 = vand.u32 %v2087, 8388607
        %v2089 = vor.u32 %v2088, 8388608
        %v2090 = vsub.s32 0, %v2089
        %v2091 = vadd.s32 %v2086, 1
        %vm2092 = vcmp.gt.s32.totalorder %v2091, 0
        %v2093 = vsel %vm2092, %v2091, 0
        %v2094 = vshrl.u32 %v2093, 5
        %v2095 = vand.u32 %v2093, 31
        %v2096 = vsub.s32 32, %v2095
        %v2097 = vshrl.u32 683565275, %v2096
        %v2098 = vshll.u32 683565275, %v2095
        %v2099 = vshrl.u32 2475754826, %v2096
        %v2100 = vor.u32 %v2098, %v2099
        %v2101 = vshll.u32 2475754826, %v2095
        %v2102 = vshrl.u32 2131351028, %v2096
        %v2103 = vor.u32 %v2101, %v2102
        %v2104 = vshll.u32 2131351028, %v2095
        %v2105 = vshrl.u32 2102212464, %v2096
        %v2106 = vor.u32 %v2104, %v2105
        %v2107 = vshll.u32 2102212464, %v2095
        %v2108 = vshrl.u32 920167782, %v2096
        %v2109 = vor.u32 %v2107, %v2108
        %v2110 = vshll.u32 920167782, %v2095
        %v2111 = vshrl.u32 1326507024, %v2096
        %v2112 = vor.u32 %v2110, %v2111
        %vm2113 = vcmp.lt.s32.totalorder %v2094, 1
        %vm2114 = vcmp.lt.s32.totalorder %v2094, 2
        %vm2115 = vcmp.lt.s32.totalorder %v2094, 3
        %vm2116 = vcmp.lt.s32.totalorder %v2094, 4
        %v2117 = vsel %vm2113, %v2097, %v2100
        %v2118 = vsel %vm2116, %v2106, 2102212464
        %v2119 = vsel %vm2115, %v2103, %v2118
        %v2120 = vsel %vm2114, %v2117, %v2119
        %v2121 = vsel %vm2113, %v2100, %v2103
        %v2122 = vsel %vm2116, %v2109, 920167782
        %v2123 = vsel %vm2115, %v2106, %v2122
        %v2124 = vsel %vm2114, %v2121, %v2123
        %v2125 = vsel %vm2113, %v2103, %v2106
        %v2126 = vsel %vm2116, %v2112, 1326507024
        %v2127 = vsel %vm2115, %v2109, %v2126
        %v2128 = vsel %vm2114, %v2125, %v2127
        %v2129 = vshll.u32 %v2089, 8
        %v2130 = vmul.u32.u64.compose %v2129, %v2128
        %v2131 = vextract.low.u32 %v2130
        %v2132 = vextract.high.u32 %v2130
        %v2133 = vmul.u32.u64.compose %v2129, %v2124
        %v2134 = vextract.low.u32 %v2133
        %v2135 = vextract.high.u32 %v2133
        %v2136 = vmul.u32 %v2129, %v2120
        %v2137 = vadd.s32 %v2132, %v2134
        %vm2138 = vc.u32 %v2132, %v2134
        %v2139 = vadd.s32 %v2135, 1
        %v2140 = vsel %vm2138, %v2139, %v2135
        %v2141 = vadd.s32 %v2136, %v2140
        %v2142 = vadd.s32 %v2141, 536870912
        %v2143 = vshrl.u32 %v2142, 30
        %v2144 = vshll.u32 %v2143, 30
        %v2145 = vsub.s32 %v2141, %v2144
        %vm2146 = vcmp.lt.s32.totalorder %v2145, 0
        %v2147 = vsub.s32 0, %v2145
        %v2148 = vsel %vm2146, %v2147, %v2145
        %v2149 = vclz %v2148
        %v2150 = vsub.s32 %v2149, 2
        %vm2151 = vcmp.gt.s32.totalorder 0, %v2150
        %v2152 = vsel %vm2151, 0, %v2150
        %v2153 = vsub.s32 32, %v2152
        %v2154 = vshll.u32 %v2145, %v2152
        %v2155 = vshrl.u32 %v2137, %v2153
        %v2156 = vor.u32 %v2154, %v2155
        %v2157 = vsub.s32 4294967266, %v2152
        %v2158 = vadd.s32 %v2157, 127
        %v2159 = vshll.u32 %v2158, 23
        %v2160 = vor.u32 4788187, %v2159
        %v2161 = vand.u32 2147483647, %v2160
        %v2163 = vcvt.s32.f32 %v2156
        %v2164 = vmul.f32 %v2163, %v2161
        %v2165 = vxor.u32 %v2164, 2147483648
        %v2166 = vsel %vm2083, %v2165, %v2164
        %v2167 = vsub.s32 4, %v2143
        %v2168 = vsel %vm2083, %v2167, %v2143
        %v2169 = vsel %vm2082, %v2079, %v2166
        %v2170 = vsel %vm2082, 0, %v2168
        %v2171 = vcosq.f32.pop %v2169
        %v2172 = vsinq.f32.pop %v2169
        %vm2173 = vweird.f32 %v2079
        %v2174 = vadd.s32 %v2170, 3
        %v2175 = vand.u32 %v2174, 3
        %vm2176 = vcmp.lt.s32.totalorder %v2175, 2
        %vm2177 = vcmp.eq.s32.totalorder %v2175, 0
        %v2178 = vxor.u32 %v2172, 2147483648
        %v2179 = vsel %vm2177, %v2171, %v2178
        %vm2180 = vcmp.eq.s32.totalorder %v2175, 2
        %v2181 = vxor.u32 %v2171, 2147483648
        %v2182 = vsel %vm2180, %v2181, %v2172
        %v2183 = vsel %vm2176, %v2179, %v2182
        %v2184 = vsel %vm2173, nan, %v2183
        %v2185 = vand.u32 2147483647, %v2080
        %vm2186 = vcmp.le.f32.partialorder %v2185, 0.7853982
        %vm2187 = vcmp.lt.s32.totalorder %v2080, 0
        %v2188 = vand.u32 %v2080, 2139095040
        %v2189 = vshrl.u32 %v2188, 23
        %v2190 = vsub.s32 %v2189, 127
        %v2191 = vand.u32 2147483647, %v2080
        %v2192 = vand.u32 %v2191, 8388607
        %v2193 = vor.u32 %v2192, 8388608
        %v2194 = vsub.s32 0, %v2193
        %v2195 = vadd.s32 %v2190, 1
        %vm2196 = vcmp.gt.s32.totalorder %v2195, 0
        %v2197 = vsel %vm2196, %v2195, 0
        %v2198 = vshrl.u32 %v2197, 5
        %v2199 = vand.u32 %v2197, 31
        %v2200 = vsub.s32 32, %v2199
        %v2201 = vshrl.u32 683565275, %v2200
        %v2202 = vshll.u32 683565275, %v2199
        %v2203 = vshrl.u32 2475754826, %v2200
        %v2204 = vor.u32 %v2202, %v2203
        %v2205 = vshll.u32 2475754826, %v2199
        %v2206 = vshrl.u32 2131351028, %v2200
        %v2207 = vor.u32 %v2205, %v2206
        %v2208 = vshll.u32 2131351028, %v2199
        %v2209 = vshrl.u32 2102212464, %v2200
        %v2210 = vor.u32 %v2208, %v2209
        %v2211 = vshll.u32 2102212464, %v2199
        %v2212 = vshrl.u32 920167782, %v2200
        %v2213 = vor.u32 %v2211, %v2212
        %v2214 = vshll.u32 920167782, %v2199
        %v2215 = vshrl.u32 1326507024, %v2200
        %v2216 = vor.u32 %v2214, %v2215
        %vm2217 = vcmp.lt.s32.totalorder %v2198, 1
        %vm2218 = vcmp.lt.s32.totalorder %v2198, 2
        %vm2219 = vcmp.lt.s32.totalorder %v2198, 3
        %vm2220 = vcmp.lt.s32.totalorder %v2198, 4
        %v2221 = vsel %vm2217, %v2201, %v2204
        %v2222 = vsel %vm2220, %v2210, 2102212464
        %v2223 = vsel %vm2219, %v2207, %v2222
        %v2224 = vsel %vm2218, %v2221, %v2223
        %v2225 = vsel %vm2217, %v2204, %v2207
        %v2226 = vsel %vm2220, %v2213, 920167782
        %v2227 = vsel %vm2219, %v2210, %v2226
        %v2228 = vsel %vm2218, %v2225, %v2227
        %v2229 = vsel %vm2217, %v2207, %v2210
        %v2230 = vsel %vm2220, %v2216, 1326507024
        %v2231 = vsel %vm2219, %v2213, %v2230
        %v2232 = vsel %vm2218, %v2229, %v2231
        %v2233 = vshll.u32 %v2193, 8
        %v2234 = vmul.u32.u64.compose %v2233, %v2232
        %v2235 = vextract.low.u32 %v2234
        %v2236 = vextract.high.u32 %v2234
        %v2237 = vmul.u32.u64.compose %v2233, %v2228
        %v2238 = vextract.low.u32 %v2237
        %v2239 = vextract.high.u32 %v2237
        %v2240 = vmul.u32 %v2233, %v2224
        %v2241 = vadd.s32 %v2236, %v2238
        %vm2242 = vc.u32 %v2236, %v2238
        %v2243 = vadd.s32 %v2239, 1
        %v2244 = vsel %vm2242, %v2243, %v2239
        %v2245 = vadd.s32 %v2240, %v2244
        %v2246 = vadd.s32 %v2245, 536870912
        %v2247 = vshrl.u32 %v2246, 30
        %v2248 = vshll.u32 %v2247, 30
        %v2249 = vsub.s32 %v2245, %v2248
        %vm2250 = vcmp.lt.s32.totalorder %v2249, 0
        %v2251 = vsub.s32 0, %v2249
        %v2252 = vsel %vm2250, %v2251, %v2249
        %v2253 = vclz %v2252
        %v2254 = vsub.s32 %v2253, 2
        %vm2255 = vcmp.gt.s32.totalorder 0, %v2254
        %v2256 = vsel %vm2255, 0, %v2254
        %v2257 = vsub.s32 32, %v2256
        %v2258 = vshll.u32 %v2249, %v2256
        %v2259 = vshrl.u32 %v2241, %v2257
        %v2260 = vor.u32 %v2258, %v2259
        %v2261 = vsub.s32 4294967266, %v2256
        %v2262 = vadd.s32 %v2261, 127
        %v2263 = vshll.u32 %v2262, 23
        %v2264 = vor.u32 4788187, %v2263
        %v2265 = vand.u32 2147483647, %v2264
        %v2267 = vcvt.s32.f32 %v2260
        %v2268 = vmul.f32 %v2267, %v2265
        %v2269 = vxor.u32 %v2268, 2147483648
        %v2270 = vsel %vm2187, %v2269, %v2268
        %v2271 = vsub.s32 4, %v2247
        %v2272 = vsel %vm2187, %v2271, %v2247
        %v2273 = vsel %vm2186, %v2080, %v2270
        %v2274 = vsel %vm2186, 0, %v2272
        %v2275 = vcosq.f32.pop %v2273
        %v2276 = vsinq.f32.pop %v2273
        %vm2277 = vweird.f32 %v2080
        %v2278 = vadd.s32 %v2274, 3
        %v2279 = vand.u32 %v2278, 3
        %vm2280 = vcmp.lt.s32.totalorder %v2279, 2
        %vm2281 = vcmp.eq.s32.totalorder %v2279, 0
        %v2282 = vxor.u32 %v2276, 2147483648
        %v2283 = vsel %vm2281, %v2275, %v2282
        %vm2284 = vcmp.eq.s32.totalorder %v2279, 2
        %v2285 = vxor.u32 %v2275, 2147483648
        %v2286 = vsel %vm2284, %v2285, %v2276
        %v2287 = vsel %vm2280, %v2283, %v2286
        %v2288 = vsel %vm2277, nan, %v2287
        %v2291 = vcombine.high %v2184, %v2184
        %v2292 = vcombine.high %v2288, %v2288
        %2295 = vst [vmem:[#allocation2 + $0x40] sm:$0xf] %v2184
        %2296 = vst [vmem:[#allocation2 + $0x48] sm:$0xf] %v2291
        %2297 = vst [vmem:[#allocation2 + $0x50] sm:$0xf] %v2288
        %2298 = vst [vmem:[#allocation2 + $0x58] sm:$0xf] %v2292
        %v2299 = vand.u32 2147483647, %v2079
        %vm2300 = vcmp.le.f32.partialorder %v2299, 0.7853982
        %vm2301 = vcmp.lt.s32.totalorder %v2079, 0
        %v2302 = vand.u32 %v2079, 2139095040
        %v2303 = vshrl.u32 %v2302, 23
        %v2304 = vsub.s32 %v2303, 127
        %v2305 = vand.u32 2147483647, %v2079
        %v2306 = vand.u32 %v2305, 8388607
        %v2307 = vor.u32 %v2306, 8388608
        %v2308 = vsub.s32 0, %v2307
        %v2309 = vadd.s32 %v2304, 1
        %vm2310 = vcmp.gt.s32.totalorder %v2309, 0
        %v2311 = vsel %vm2310, %v2309, 0
        %v2312 = vshrl.u32 %v2311, 5
        %v2313 = vand.u32 %v2311, 31
        %v2314 = vsub.s32 32, %v2313
        %v2315 = vshrl.u32 683565275, %v2314
        %v2316 = vshll.u32 683565275, %v2313
        %v2317 = vshrl.u32 2475754826, %v2314
        %v2318 = vor.u32 %v2316, %v2317
        %v2319 = vshll.u32 2475754826, %v2313
        %v2320 = vshrl.u32 2131351028, %v2314
        %v2321 = vor.u32 %v2319, %v2320
        %v2322 = vshll.u32 2131351028, %v2313
        %v2323 = vshrl.u32 2102212464, %v2314
        %v2324 = vor.u32 %v2322, %v2323
        %v2325 = vshll.u32 2102212464, %v2313
        %v2326 = vshrl.u32 920167782, %v2314
        %v2327 = vor.u32 %v2325, %v2326
        %v2328 = vshll.u32 920167782, %v2313
        %v2329 = vshrl.u32 1326507024, %v2314
        %v2330 = vor.u32 %v2328, %v2329
        %vm2331 = vcmp.lt.s32.totalorder %v2312, 1
        %vm2332 = vcmp.lt.s32.totalorder %v2312, 2
        %vm2333 = vcmp.lt.s32.totalorder %v2312, 3
        %vm2334 = vcmp.lt.s32.totalorder %v2312, 4
        %v2335 = vsel %vm2331, %v2315, %v2318
        %v2336 = vsel %vm2334, %v2324, 2102212464
        %v2337 = vsel %vm2333, %v2321, %v2336
        %v2338 = vsel %vm2332, %v2335, %v2337
        %v2339 = vsel %vm2331, %v2318, %v2321
        %v2340 = vsel %vm2334, %v2327, 920167782
        %v2341 = vsel %vm2333, %v2324, %v2340
        %v2342 = vsel %vm2332, %v2339, %v2341
        %v2343 = vsel %vm2331, %v2321, %v2324
        %v2344 = vsel %vm2334, %v2330, 1326507024
        %v2345 = vsel %vm2333, %v2327, %v2344
        %v2346 = vsel %vm2332, %v2343, %v2345
        %v2347 = vshll.u32 %v2307, 8
        %v2348 = vmul.u32.u64.compose %v2347, %v2346
        %v2349 = vextract.low.u32 %v2348
        %v2350 = vextract.high.u32 %v2348
        %v2351 = vmul.u32.u64.compose %v2347, %v2342
        %v2352 = vextract.low.u32 %v2351
        %v2353 = vextract.high.u32 %v2351
        %v2354 = vmul.u32 %v2347, %v2338
        %v2355 = vadd.s32 %v2350, %v2352
        %vm2356 = vc.u32 %v2350, %v2352
        %v2357 = vadd.s32 %v2353, 1
        %v2358 = vsel %vm2356, %v2357, %v2353
        %v2359 = vadd.s32 %v2354, %v2358
        %v2360 = vadd.s32 %v2359, 536870912
        %v2361 = vshrl.u32 %v2360, 30
        %v2362 = vshll.u32 %v2361, 30
        %v2363 = vsub.s32 %v2359, %v2362
        %vm2364 = vcmp.lt.s32.totalorder %v2363, 0
        %v2365 = vsub.s32 0, %v2363
        %v2366 = vsel %vm2364, %v2365, %v2363
        %v2367 = vclz %v2366
        %v2368 = vsub.s32 %v2367, 2
        %vm2369 = vcmp.gt.s32.totalorder 0, %v2368
        %v2370 = vsel %vm2369, 0, %v2368
        %v2371 = vsub.s32 32, %v2370
        %v2372 = vshll.u32 %v2363, %v2370
        %v2373 = vshrl.u32 %v2355, %v2371
        %v2374 = vor.u32 %v2372, %v2373
        %v2375 = vsub.s32 4294967266, %v2370
        %v2376 = vadd.s32 %v2375, 127
        %v2377 = vshll.u32 %v2376, 23
        %v2378 = vor.u32 4788187, %v2377
        %v2379 = vand.u32 2147483647, %v2378
        %v2381 = vcvt.s32.f32 %v2374
        %v2382 = vmul.f32 %v2381, %v2379
        %v2383 = vxor.u32 %v2382, 2147483648
        %v2384 = vsel %vm2301, %v2383, %v2382
        %v2385 = vsub.s32 4, %v2361
        %v2386 = vsel %vm2301, %v2385, %v2361
        %v2387 = vsel %vm2300, %v2079, %v2384
        %v2388 = vsel %vm2300, 0, %v2386
        %v2389 = vcosq.f32.pop %v2387
        %v2390 = vsinq.f32.pop %v2387
        %vm2391 = vweird.f32 %v2079
        %v2392 = vand.u32 %v2388, 3
        %vm2393 = vcmp.lt.s32.totalorder %v2392, 2
        %vm2394 = vcmp.eq.s32.totalorder %v2392, 0
        %v2395 = vxor.u32 %v2390, 2147483648
        %v2396 = vsel %vm2394, %v2389, %v2395
        %vm2397 = vcmp.eq.s32.totalorder %v2392, 2
        %v2398 = vxor.u32 %v2389, 2147483648
        %v2399 = vsel %vm2397, %v2398, %v2390
        %v2400 = vsel %vm2393, %v2396, %v2399
        %v2401 = vsel %vm2391, nan, %v2400
        %v2402 = vand.u32 2147483647, %v2080
        %vm2403 = vcmp.le.f32.partialorder %v2402, 0.7853982
        %vm2404 = vcmp.lt.s32.totalorder %v2080, 0
        %v2405 = vand.u32 %v2080, 2139095040
        %v2406 = vshrl.u32 %v2405, 23
        %v2407 = vsub.s32 %v2406, 127
        %v2408 = vand.u32 2147483647, %v2080
        %v2409 = vand.u32 %v2408, 8388607
        %v2410 = vor.u32 %v2409, 8388608
        %v2411 = vsub.s32 0, %v2410
        %v2412 = vadd.s32 %v2407, 1
        %vm2413 = vcmp.gt.s32.totalorder %v2412, 0
        %v2414 = vsel %vm2413, %v2412, 0
        %v2415 = vshrl.u32 %v2414, 5
        %v2416 = vand.u32 %v2414, 31
        %v2417 = vsub.s32 32, %v2416
        %v2418 = vshrl.u32 683565275, %v2417
        %v2419 = vshll.u32 683565275, %v2416
        %v2420 = vshrl.u32 2475754826, %v2417
        %v2421 = vor.u32 %v2419, %v2420
        %v2422 = vshll.u32 2475754826, %v2416
        %v2423 = vshrl.u32 2131351028, %v2417
        %v2424 = vor.u32 %v2422, %v2423
        %v2425 = vshll.u32 2131351028, %v2416
        %v2426 = vshrl.u32 2102212464, %v2417
        %v2427 = vor.u32 %v2425, %v2426
        %v2428 = vshll.u32 2102212464, %v2416
        %v2429 = vshrl.u32 920167782, %v2417
        %v2430 = vor.u32 %v2428, %v2429
        %v2431 = vshll.u32 920167782, %v2416
        %v2432 = vshrl.u32 1326507024, %v2417
        %v2433 = vor.u32 %v2431, %v2432
        %vm2434 = vcmp.lt.s32.totalorder %v2415, 1
        %vm2435 = vcmp.lt.s32.totalorder %v2415, 2
        %vm2436 = vcmp.lt.s32.totalorder %v2415, 3
        %vm2437 = vcmp.lt.s32.totalorder %v2415, 4
        %v2438 = vsel %vm2434, %v2418, %v2421
        %v2439 = vsel %vm2437, %v2427, 2102212464
        %v2440 = vsel %vm2436, %v2424, %v2439
        %v2441 = vsel %vm2435, %v2438, %v2440
        %v2442 = vsel %vm2434, %v2421, %v2424
        %v2443 = vsel %vm2437, %v2430, 920167782
        %v2444 = vsel %vm2436, %v2427, %v2443
        %v2445 = vsel %vm2435, %v2442, %v2444
        %v2446 = vsel %vm2434, %v2424, %v2427
        %v2447 = vsel %vm2437, %v2433, 1326507024
        %v2448 = vsel %vm2436, %v2430, %v2447
        %v2449 = vsel %vm2435, %v2446, %v2448
        %v2450 = vshll.u32 %v2410, 8
        %v2451 = vmul.u32.u64.compose %v2450, %v2449
        %v2452 = vextract.low.u32 %v2451
        %v2453 = vextract.high.u32 %v2451
        %v2454 = vmul.u32.u64.compose %v2450, %v2445
        %v2455 = vextract.low.u32 %v2454
        %v2456 = vextract.high.u32 %v2454
        %v2457 = vmul.u32 %v2450, %v2441
        %v2458 = vadd.s32 %v2453, %v2455
        %vm2459 = vc.u32 %v2453, %v2455
        %v2460 = vadd.s32 %v2456, 1
        %v2461 = vsel %vm2459, %v2460, %v2456
        %v2462 = vadd.s32 %v2457, %v2461
        %v2463 = vadd.s32 %v2462, 536870912
        %v2464 = vshrl.u32 %v2463, 30
        %v2465 = vshll.u32 %v2464, 30
        %v2466 = vsub.s32 %v2462, %v2465
        %vm2467 = vcmp.lt.s32.totalorder %v2466, 0
        %v2468 = vsub.s32 0, %v2466
        %v2469 = vsel %vm2467, %v2468, %v2466
        %v2470 = vclz %v2469
        %v2471 = vsub.s32 %v2470, 2
        %vm2472 = vcmp.gt.s32.totalorder 0, %v2471
        %v2473 = vsel %vm2472, 0, %v2471
        %v2474 = vsub.s32 32, %v2473
        %v2475 = vshll.u32 %v2466, %v2473
        %v2476 = vshrl.u32 %v2458, %v2474
        %v2477 = vor.u32 %v2475, %v2476
        %v2478 = vsub.s32 4294967266, %v2473
        %v2479 = vadd.s32 %v2478, 127
        %v2480 = vshll.u32 %v2479, 23
        %v2481 = vor.u32 4788187, %v2480
        %v2482 = vand.u32 2147483647, %v2481
        %v2484 = vcvt.s32.f32 %v2477
        %v2485 = vmul.f32 %v2484, %v2482
        %v2486 = vxor.u32 %v2485, 2147483648
        %v2487 = vsel %vm2404, %v2486, %v2485
        %v2488 = vsub.s32 4, %v2464
        %v2489 = vsel %vm2404, %v2488, %v2464
        %v2490 = vsel %vm2403, %v2080, %v2487
        %v2491 = vsel %vm2403, 0, %v2489
        %v2492 = vcosq.f32.pop %v2490
        %v2493 = vsinq.f32.pop %v2490
        %vm2494 = vweird.f32 %v2080
        %v2495 = vand.u32 %v2491, 3
        %vm2496 = vcmp.lt.s32.totalorder %v2495, 2
        %vm2497 = vcmp.eq.s32.totalorder %v2495, 0
        %v2498 = vxor.u32 %v2493, 2147483648
        %v2499 = vsel %vm2497, %v2492, %v2498
        %vm2500 = vcmp.eq.s32.totalorder %v2495, 2
        %v2501 = vxor.u32 %v2492, 2147483648
        %v2502 = vsel %vm2500, %v2501, %v2493
        %v2503 = vsel %vm2496, %v2499, %v2502
        %v2504 = vsel %vm2494, nan, %v2503
        %v2507 = vcombine.low %v2401, %v2401
        %v2508 = vcombine.low %v2504, %v2504
        %2511 = vst [vmem:[#allocation2 + $0x80] sm:$0xf0] %v2507
        %2512 = vst [vmem:[#allocation2 + $0x88] sm:$0xf0] %v2401
        %2513 = vst [vmem:[#allocation2 + $0x90] sm:$0xf0] %v2508
        %2514 = vst [vmem:[#allocation2 + $0x98] sm:$0xf0] %v2504
        %v2515 = vld [vmem:[#allocation2] sm:$0xff]
        %v2516 = vld [vmem:[#allocation2 + $0x8] sm:$0xff]
        %v2517 = vld [vmem:[#allocation2 + $0x10] sm:$0xff]
        %v2518 = vld [vmem:[#allocation2 + $0x18] sm:$0xff]
        %v2519 = vld [vmem:[#allocation2 + $0x20] sm:$0xff]
        %v2520 = vld [vmem:[#allocation2 + $0x28] sm:$0xff]
        %v2521 = vld [vmem:[#allocation2 + $0x30] sm:$0xff]
        %v2522 = vld [vmem:[#allocation2 + $0x38] sm:$0xff]
        %v2523 = vld [vmem:[#allocation2 + $0x40] sm:$0xff]
        %v2524 = vld [vmem:[#allocation2 + $0x48] sm:$0xff]
        %v2525 = vld [vmem:[#allocation2 + $0x50] sm:$0xff]
        %v2526 = vld [vmem:[#allocation2 + $0x58] sm:$0xff]
        %v2527 = vld [vmem:[#allocation2 + $0x60] sm:$0xff]
        %v2528 = vld [vmem:[#allocation2 + $0x68] sm:$0xff]
        %v2529 = vld [vmem:[#allocation2 + $0x70] sm:$0xff]
        %v2530 = vld [vmem:[#allocation2 + $0x78] sm:$0xff]
        %v2531 = vld [vmem:[#allocation2 + $0x80] sm:$0xff]
        %v2532 = vld [vmem:[#allocation2 + $0x88] sm:$0xff]
        %v2533 = vld [vmem:[#allocation2 + $0x90] sm:$0xff]
        %v2534 = vld [vmem:[#allocation2 + $0x98] sm:$0xff]
        %v2535 = vpack.c.bf16 %v2519, %v2515
        %v2536 = vpack.c.bf16 %v2520, %v2516
        %v2537 = vpack.c.bf16 %v2521, %v2517
        %v2538 = vpack.c.bf16 %v2522, %v2518
        %v2539 = vpack.c.bf16 %v2527, %v2523
        %v2540 = vpack.c.bf16 %v2528, %v2524
        %v2541 = vpack.c.bf16 %v2529, %v2525
        %v2542 = vpack.c.bf16 %v2530, %v2526
        %v2543 = vpack.c.bf16 %v2531, %v2531
        %v2544 = vpack.c.bf16 %v2532, %v2532
        %v2545 = vpack.c.bf16 %v2533, %v2533
        %v2546 = vpack.c.bf16 %v2534, %v2534
        %v2547 = vld [vmem:[%s1] sm:$0xf]
        %v2548 = vld [vmem:[%s1 + $0x4] sm:$0xf]
        %v2549 = vld [vmem:[%s1 + $0x8] sm:$0xf]
        %v2550 = vld [vmem:[%s1 + $0xc] sm:$0xf]
        %v2551 = vld [vmem:[%s2] sm:$0xff]
        %v2552 = vld [vmem:[%s2 + $0x8] sm:$0xff]
        %v2553 = vld [vmem:[%s2 + $0x10] sm:$0xff]
        %v2554 = vld [vmem:[%s2 + $0x18] sm:$0xff]
        %2556 = vset.pattern.permute.xlu0 0
        %2557 = vperm.xlu0 %2556, %v2551
        %v2558 = vpop.permute.xlu0 %2557
        %2561 = vset.pattern.permute.xlu0 0
        %2562 = vperm.xlu0 %2561, %v2552
        %v2563 = vpop.permute.xlu0 %2562
        %2566 = vset.pattern.permute.xlu0 0
        %2567 = vperm.xlu0 %2566, %v2553
        %v2568 = vpop.permute.xlu0 %2567
        %2571 = vset.pattern.permute.xlu0 0
        %2572 = vperm.xlu0 %2571, %v2554
        %v2573 = vpop.permute.xlu0 %2572
        %v2579 = vunpack.c.l.b16 %v2547
        %v2580 = vunpack.c.l.b16 %v2548
        %v2581 = vunpack.c.l.b16 %v2549
        %v2582 = vunpack.c.l.b16 %v2550
        %v2583 = vpack.c.b16 %v2580, %v2579
        %v2584 = vpack.c.b16 %v2582, %v2581
        %vm2585 = vcmask 326656
        %v2587 = vsel %vm2585, %v2583, 0
        %v2590 = vsel %vm2585, %v2584, 0
        %vm2592 = vcmask 1043456
        %v2594 = vsel %vm2592, %v2543, 0
        %v2597 = vsel %vm2592, %v2544, 0
        %v2600 = vsel %vm2592, %v2545, 0
        %v2603 = vsel %vm2592, %v2546, 0
        %2605 = vmatprep.subr.bf16.mxu0 %v2536
        %2606 = vmatpush1.bf16.msra.mxu0 %v2535
        %2607 = vmatprep.subr.bf16.mxu0 %v2540
        %2608 = vmatpush1.bf16.msra.mxu0 %v2539
        %2609 = vmatprep.subr.bf16.mxu0 %v2597
        %2610 = vmatpush1.bf16.msra.mxu0 %v2594
        %2611 = vmatprep.subr.bf16.mxu0 0
        %2612 = vmatpush1.bf16.msra.mxu0 0
        %2613 = vmatprep.subr.bf16.mxu0 0
        %2614 = vmatpush1.bf16.msra.mxu0 0
        %2615 = vmatprep.subr.bf16.mxu0 0
        %2616 = vmatpush1.bf16.msra.mxu0 0
        %2617 = vmatprep.subr.bf16.mxu0 0
        %2618 = vmatpush1.bf16.msra.mxu0 0
        %2619 = vmatprep.subr.bf16.mxu0 0
        %2620 = vmatpush1.bf16.msra.mxu0 0
        %2621 = vmatprep.subr.bf16.mxu0 0
        %2622 = vmatpush1.bf16.msra.mxu0 0
        %2623 = vmatprep.subr.bf16.mxu0 0
        %2624 = vmatpush1.bf16.msra.mxu0 0
        %2625 = vmatprep.subr.bf16.mxu0 0
        %2626 = vmatpush1.bf16.msra.mxu0 0
        %2627 = vmatprep.subr.bf16.mxu0 0
        %2628 = vmatpush1.bf16.msra.mxu0 0
        %2629 = vmatprep.subr.bf16.mxu0 0
        %2630 = vmatpush1.bf16.msra.mxu0 0
        %2631 = vmatprep.subr.bf16.mxu0 0
        %2632 = vmatpush1.bf16.msra.mxu0 0
        %2633 = vmatprep.subr.bf16.mxu0 0
        %2634 = vmatpush1.bf16.msra.mxu0 0
        %2635 = vmatprep.subr.bf16.mxu0 0
        %2636 = vmatpush1.bf16.msra.mxu0 0
        %2637 = vmatprep.mubr.bf16.mxu0 0
        %2638 = vmatmul.mubr.bf16.gmra.mrb[0].mxu0 %v2587
        %v2639 = vpop.f32.mrb[0].mxu0
        %v2640 = vadd.f32 %v2558, %v2639
        %v2641 = vpop.f32.mrb[0].mxu0
        %v2642 = vadd.f32 %v2558, %v2641
        %v2643 = vpop.f32.mrb[0].mxu0
        %v2644 = vadd.f32 %v2563, %v2643
        %v2645 = vpop.f32.mrb[0].mxu0
        %v2646 = vadd.f32 %v2563, %v2645
        %2647 = vmatprep.mubr.bf16.mxu0 0
        %2648 = vmatmul.mubr.bf16.gmra.mrb[0].mxu0 %v2590
        %v2649 = vpop.f32.mrb[0].mxu0
        %v2650 = vadd.f32 %v2568, %v2649
        %v2651 = vpop.f32.mrb[0].mxu0
        %v2652 = vadd.f32 %v2568, %v2651
        %v2653 = vpop.f32.mrb[0].mxu0
        %v2654 = vadd.f32 %v2573, %v2653
        %v2655 = vpop.f32.mrb[0].mxu0
        %v2656 = vadd.f32 %v2573, %v2655
        %2657 = vdwg.mxu0
        %2658 = vmatprep.subr.bf16.mxu0 %v2538
        %2659 = vmatpush1.bf16.msra.mxu0 %v2537
        %2660 = vmatprep.subr.bf16.mxu0 %v2542
        %2661 = vmatpush1.bf16.msra.mxu0 %v2541
        %2662 = vmatprep.subr.bf16.mxu0 %v2603
        %2663 = vmatpush1.bf16.msra.mxu0 %v2600
        %2664 = vmatprep.subr.bf16.mxu0 0
        %2665 = vmatpush1.bf16.msra.mxu0 0
        %2666 = vmatprep.subr.bf16.mxu0 0
        %2667 = vmatpush1.bf16.msra.mxu0 0
        %2668 = vmatprep.subr.bf16.mxu0 0
        %2669 = vmatpush1.bf16.msra.mxu0 0
        %2670 = vmatprep.subr.bf16.mxu0 0
        %2671 = vmatpush1.bf16.msra.mxu0 0
        %2672 = vmatprep.subr.bf16.mxu0 0
        %2673 = vmatpush1.bf16.msra.mxu0 0
        %2674 = vmatprep.subr.bf16.mxu0 0
        %2675 = vmatpush1.bf16.msra.mxu0 0
        %2676 = vmatprep.subr.bf16.mxu0 0
        %2677 = vmatpush1.bf16.msra.mxu0 0
        %2678 = vmatprep.subr.bf16.mxu0 0
        %2679 = vmatpush1.bf16.msra.mxu0 0
        %2680 = vmatprep.subr.bf16.mxu0 0
        %2681 = vmatpush1.bf16.msra.mxu0 0
        %2682 = vmatprep.subr.bf16.mxu0 0
        %2683 = vmatpush1.bf16.msra.mxu0 0
        %2684 = vmatprep.subr.bf16.mxu0 0
        %2685 = vmatpush1.bf16.msra.mxu0 0
        %2686 = vmatprep.subr.bf16.mxu0 0
        %2687 = vmatpush1.bf16.msra.mxu0 0
        %2688 = vmatprep.subr.bf16.mxu0 0
        %2689 = vmatpush1.bf16.msra.mxu0 0
        %2690 = vmatprep.mubr.bf16.mxu0 0
        %2691 = vmatmul.mubr.bf16.gmra.mrb[0].mxu0 %v2587
        %v2692 = vpop.f32.mrb[0].mxu0
        %v2693 = vadd.f32 %v2558, %v2692
        %v2694 = vpop.f32.mrb[0].mxu0
        %v2695 = vadd.f32 %v2558, %v2694
        %v2696 = vpop.f32.mrb[0].mxu0
        %v2697 = vadd.f32 %v2563, %v2696
        %v2698 = vpop.f32.mrb[0].mxu0
        %v2699 = vadd.f32 %v2563, %v2698
        %2700 = vmatprep.mubr.bf16.mxu0 0
        %2701 = vmatmul.mubr.bf16.gmra.mrb[0].mxu0 %v2590
        %v2702 = vpop.f32.mrb[0].mxu0
        %v2703 = vadd.f32 %v2568, %v2702
        %v2704 = vpop.f32.mrb[0].mxu0
        %v2705 = vadd.f32 %v2568, %v2704
        %v2706 = vpop.f32.mrb[0].mxu0
        %v2707 = vadd.f32 %v2573, %v2706
        %v2708 = vpop.f32.mrb[0].mxu0
        %v2709 = vadd.f32 %v2573, %v2708
        %2710 = vdwg.mxu0
        %vm2711 = vcmp.gt.f32.partialorder %v2640, 0.0
        %vm2712 = vcmp.gt.f32.partialorder %v2642, 0.0
        %vm2713 = vcmp.gt.f32.partialorder %v2693, 0.0
        %vm2714 = vcmp.gt.f32.partialorder %v2695, 0.0
        %vm2715 = vcmp.gt.f32.partialorder %v2644, 0.0
        %vm2716 = vcmp.gt.f32.partialorder %v2646, 0.0
        %vm2717 = vcmp.gt.f32.partialorder %v2697, 0.0
        %vm2718 = vcmp.gt.f32.partialorder %v2699, 0.0
        %vm2719 = vcmp.gt.f32.partialorder %v2650, 0.0
        %vm2720 = vcmp.gt.f32.partialorder %v2652, 0.0
        %vm2721 = vcmp.gt.f32.partialorder %v2703, 0.0
        %vm2722 = vcmp.gt.f32.partialorder %v2705, 0.0
        %vm2723 = vcmp.gt.f32.partialorder %v2654, 0.0
        %vm2724 = vcmp.gt.f32.partialorder %v2656, 0.0
        %vm2725 = vcmp.gt.f32.partialorder %v2707, 0.0
        %vm2726 = vcmp.gt.f32.partialorder %v2709, 0.0
        %v2727 = vmul.f32 %v2640, 0.2
        %v2728 = vmul.f32 %v2642, 0.2
        %v2729 = vmul.f32 %v2693, 0.2
        %v2730 = vmul.f32 %v2695, 0.2
        %v2731 = vmul.f32 %v2644, 0.2
        %v2732 = vmul.f32 %v2646, 0.2
        %v2733 = vmul.f32 %v2697, 0.2
        %v2734 = vmul.f32 %v2699, 0.2
        %v2735 = vmul.f32 %v2650, 0.2
        %v2736 = vmul.f32 %v2652, 0.2
        %v2737 = vmul.f32 %v2703, 0.2
        %v2738 = vmul.f32 %v2705, 0.2
        %v2739 = vmul.f32 %v2654, 0.2
        %v2740 = vmul.f32 %v2656, 0.2
        %v2741 = vmul.f32 %v2707, 0.2
        %v2742 = vmul.f32 %v2709, 0.2
        %v2743 = vsel %vm2711, %v2640, %v2727
        %v2744 = vsel %vm2712, %v2642, %v2728
        %v2745 = vsel %vm2713, %v2693, %v2729
        %v2746 = vsel %vm2714, %v2695, %v2730
        %v2747 = vsel %vm2715, %v2644, %v2731
        %v2748 = vsel %vm2716, %v2646, %v2732
        %v2749 = vsel %vm2717, %v2697, %v2733
        %v2750 = vsel %vm2718, %v2699, %v2734
        %v2751 = vsel %vm2719, %v2650, %v2735
        %v2752 = vsel %vm2720, %v2652, %v2736
        %v2753 = vsel %vm2721, %v2703, %v2737
        %v2754 = vsel %vm2722, %v2705, %v2738
        %v2755 = vsel %vm2723, %v2654, %v2739
        %v2756 = vsel %vm2724, %v2656, %v2740
        %v2757 = vsel %vm2725, %v2707, %v2741
        %v2758 = vsel %vm2726, %v2709, %v2742
        %v2759 = vpack.c.bf16 %v2747, %v2743
        %v2760 = vpack.c.bf16 %v2748, %v2744
        %v2761 = vpack.c.bf16 %v2749, %v2745
        %v2762 = vpack.c.bf16 %v2750, %v2746
        %v2763 = vpack.c.bf16 %v2755, %v2751
        %v2764 = vpack.c.bf16 %v2756, %v2752
        %v2765 = vpack.c.bf16 %v2757, %v2753
        %v2766 = vpack.c.bf16 %v2758, %v2754
        %v2767 = vld [vmem:[%s3] sm:$0xf]
        %v2768 = vld [vmem:[%s3 + $0x4] sm:$0xf]
        %v2769 = vld [vmem:[%s3 + $0x8] sm:$0xf]
        %v2770 = vld [vmem:[%s3 + $0xc] sm:$0xf]
        %v2771 = vld [vmem:[%s4] sm:$0xff]
        %v2772 = vld [vmem:[%s4 + $0x8] sm:$0xff]
        %v2773 = vld [vmem:[%s4 + $0x10] sm:$0xff]
        %v2774 = vld [vmem:[%s4 + $0x18] sm:$0xff]
        %2776 = vset.pattern.permute.xlu0 0
        %2777 = vperm.xlu0 %2776, %v2771
        %v2778 = vpop.permute.xlu0 %2777
        %2781 = vset.pattern.permute.xlu0 0
        %2782 = vperm.xlu0 %2781, %v2772
        %v2783 = vpop.permute.xlu0 %2782
        %2786 = vset.pattern.permute.xlu0 0
        %2787 = vperm.xlu0 %2786, %v2773
        %v2788 = vpop.permute.xlu0 %2787
        %2791 = vset.pattern.permute.xlu0 0
        %2792 = vperm.xlu0 %2791, %v2774
        %v2793 = vpop.permute.xlu0 %2792
        %v2799 = vunpack.c.l.b16 %v2767
        %v2800 = vunpack.c.l.b16 %v2768
        %v2801 = vunpack.c.l.b16 %v2769
        %v2802 = vunpack.c.l.b16 %v2770
        %v2803 = vpack.c.b16 %v2800, %v2799
        %v2804 = vpack.c.b16 %v2802, %v2801
        %vm2805 = vcmask 261120
        %v2807 = vsel %vm2805, %v2803, 0
        %v2810 = vsel %vm2805, %v2804, 0
        %2812 = vmatprep.subr.bf16.mxu0 %v2760
        %2813 = vmatpush1.bf16.msra.mxu0 %v2759
        %2814 = vmatprep.subr.bf16.mxu0 %v2764
        %2815 = vmatpush1.bf16.msra.mxu0 %v2763
        %2816 = vmatprep.subr.bf16.mxu0 0
        %2817 = vmatpush1.bf16.msra.mxu0 0
        %2818 = vmatprep.subr.bf16.mxu0 0
        %2819 = vmatpush1.bf16.msra.mxu0 0
        %2820 = vmatprep.subr.bf16.mxu0 0
        %2821 = vmatpush1.bf16.msra.mxu0 0
        %2822 = vmatprep.subr.bf16.mxu0 0
        %2823 = vmatpush1.bf16.msra.mxu0 0
        %2824 = vmatprep.subr.bf16.mxu0 0
        %2825 = vmatpush1.bf16.msra.mxu0 0
        %2826 = vmatprep.subr.bf16.mxu0 0
        %2827 = vmatpush1.bf16.msra.mxu0 0
        %2828 = vmatprep.subr.bf16.mxu0 0
        %2829 = vmatpush1.bf16.msra.mxu0 0
        %2830 = vmatprep.subr.bf16.mxu0 0
        %2831 = vmatpush1.bf16.msra.mxu0 0
        %2832 = vmatprep.subr.bf16.mxu0 0
        %2833 = vmatpush1.bf16.msra.mxu0 0
        %2834 = vmatprep.subr.bf16.mxu0 0
        %2835 = vmatpush1.bf16.msra.mxu0 0
        %2836 = vmatprep.subr.bf16.mxu0 0
        %2837 = vmatpush1.bf16.msra.mxu0 0
        %2838 = vmatprep.subr.bf16.mxu0 0
        %2839 = vmatpush1.bf16.msra.mxu0 0
        %2840 = vmatprep.subr.bf16.mxu0 0
        %2841 = vmatpush1.bf16.msra.mxu0 0
        %2842 = vmatprep.subr.bf16.mxu0 0
        %2843 = vmatpush1.bf16.msra.mxu0 0
        %2844 = vmatprep.mubr.bf16.mxu0 0
        %2845 = vmatmul.mubr.bf16.gmra.mrb[0].mxu0 %v2807
        %v2846 = vpop.f32.mrb[0].mxu0
        %v2847 = vadd.f32 %v2778, %v2846
        %v2848 = vpop.f32.mrb[0].mxu0
        %v2849 = vadd.f32 %v2778, %v2848
        %v2850 = vpop.f32.mrb[0].mxu0
        %v2851 = vadd.f32 %v2783, %v2850
        %v2852 = vpop.f32.mrb[0].mxu0
        %v2853 = vadd.f32 %v2783, %v2852
        %2854 = vmatprep.mubr.bf16.mxu0 0
        %2855 = vmatmul.mubr.bf16.gmra.mrb[0].mxu0 %v2810
        %v2856 = vpop.f32.mrb[0].mxu0
        %v2857 = vadd.f32 %v2788, %v2856
        %v2858 = vpop.f32.mrb[0].mxu0
        %v2859 = vadd.f32 %v2788, %v2858
        %v2860 = vpop.f32.mrb[0].mxu0
        %v2861 = vadd.f32 %v2793, %v2860
        %v2862 = vpop.f32.mrb[0].mxu0
        %v2863 = vadd.f32 %v2793, %v2862
        %2864 = vdwg.mxu0
        %2865 = vmatprep.subr.bf16.mxu0 %v2762
        %2866 = vmatpush1.bf16.msra.mxu0 %v2761
        %2867 = vmatprep.subr.bf16.mxu0 %v2766
        %2868 = vmatpush1.bf16.msra.mxu0 %v2765
        %2869 = vmatprep.subr.bf16.mxu0 0
        %2870 = vmatpush1.bf16.msra.mxu0 0
        %2871 = vmatprep.subr.bf16.mxu0 0
        %2872 = vmatpush1.bf16.msra.mxu0 0
        %2873 = vmatprep.subr.bf16.mxu0 0
        %2874 = vmatpush1.bf16.msra.mxu0 0
        %2875 = vmatprep.subr.bf16.mxu0 0
        %2876 = vmatpush1.bf16.msra.mxu0 0
        %2877 = vmatprep.subr.bf16.mxu0 0
        %2878 = vmatpush1.bf16.msra.mxu0 0
        %2879 = vmatprep.subr.bf16.mxu0 0
        %2880 = vmatpush1.bf16.msra.mxu0 0
        %2881 = vmatprep.subr.bf16.mxu0 0
        %2882 = vmatpush1.bf16.msra.mxu0 0
        %2883 = vmatprep.subr.bf16.mxu0 0
        %2884 = vmatpush1.bf16.msra.mxu0 0
        %2885 = vmatprep.subr.bf16.mxu0 0
        %2886 = vmatpush1.bf16.msra.mxu0 0
        %2887 = vmatprep.subr.bf16.mxu0 0
        %2888 = vmatpush1.bf16.msra.mxu0 0
        %2889 = vmatprep.subr.bf16.mxu0 0
        %2890 = vmatpush1.bf16.msra.mxu0 0
        %2891 = vmatprep.subr.bf16.mxu0 0
        %2892 = vmatpush1.bf16.msra.mxu0 0
        %2893 = vmatprep.subr.bf16.mxu0 0
        %2894 = vmatpush1.bf16.msra.mxu0 0
        %2895 = vmatprep.subr.bf16.mxu0 0
        %2896 = vmatpush1.bf16.msra.mxu0 0
        %2897 = vmatprep.mubr.bf16.mxu0 0
        %2898 = vmatmul.mubr.bf16.gmra.mrb[0].mxu0 %v2807
        %v2899 = vpop.f32.mrb[0].mxu0
        %v2900 = vadd.f32 %v2778, %v2899
        %v2901 = vpop.f32.mrb[0].mxu0
        %v2902 = vadd.f32 %v2778, %v2901
        %v2903 = vpop.f32.mrb[0].mxu0
        %v2904 = vadd.f32 %v2783, %v2903
        %v2905 = vpop.f32.mrb[0].mxu0
        %v2906 = vadd.f32 %v2783, %v2905
        %2907 = vmatprep.mubr.bf16.mxu0 0
        %2908 = vmatmul.mubr.bf16.gmra.mrb[0].mxu0 %v2810
        %v2909 = vpop.f32.mrb[0].mxu0
        %v2910 = vadd.f32 %v2788, %v2909
        %v2911 = vpop.f32.mrb[0].mxu0
        %v2912 = vadd.f32 %v2788, %v2911
        %v2913 = vpop.f32.mrb[0].mxu0
        %v2914 = vadd.f32 %v2793, %v2913
        %v2915 = vpop.f32.mrb[0].mxu0
        %v2916 = vadd.f32 %v2793, %v2915
        %2917 = vdwg.mxu0
        %vm2918 = vcmp.gt.f32.partialorder %v2847, 0.0
        %vm2919 = vcmp.gt.f32.partialorder %v2849, 0.0
        %vm2920 = vcmp.gt.f32.partialorder %v2900, 0.0
        %vm2921 = vcmp.gt.f32.partialorder %v2902, 0.0
        %vm2922 = vcmp.gt.f32.partialorder %v2851, 0.0
        %vm2923 = vcmp.gt.f32.partialorder %v2853, 0.0
        %vm2924 = vcmp.gt.f32.partialorder %v2904, 0.0
        %vm2925 = vcmp.gt.f32.partialorder %v2906, 0.0
        %vm2926 = vcmp.gt.f32.partialorder %v2857, 0.0
        %vm2927 = vcmp.gt.f32.partialorder %v2859, 0.0
        %vm2928 = vcmp.gt.f32.partialorder %v2910, 0.0
        %vm2929 = vcmp.gt.f32.partialorder %v2912, 0.0
        %vm2930 = vcmp.gt.f32.partialorder %v2861, 0.0
        %vm2931 = vcmp.gt.f32.partialorder %v2863, 0.0
        %vm2932 = vcmp.gt.f32.partialorder %v2914, 0.0
        %vm2933 = vcmp.gt.f32.partialorder %v2916, 0.0
        %v2934 = vmul.f32 %v2847, 0.2
        %v2935 = vmul.f32 %v2849, 0.2
        %v2936 = vmul.f32 %v2900, 0.2
        %v2937 = vmul.f32 %v2902, 0.2
        %v2938 = vmul.f32 %v2851, 0.2
        %v2939 = vmul.f32 %v2853, 0.2
        %v2940 = vmul.f32 %v2904, 0.2
        %v2941 = vmul.f32 %v2906, 0.2
        %v2942 = vmul.f32 %v2857, 0.2
        %v2943 = vmul.f32 %v2859, 0.2
        %v2944 = vmul.f32 %v2910, 0.2
        %v2945 = vmul.f32 %v2912, 0.2
        %v2946 = vmul.f32 %v2861, 0.2
        %v2947 = vmul.f32 %v2863, 0.2
        %v2948 = vmul.f32 %v2914, 0.2
        %v2949 = vmul.f32 %v2916, 0.2
        %v2950 = vsel %vm2918, %v2847, %v2934
        %v2951 = vsel %vm2919, %v2849, %v2935
        %v2952 = vsel %vm2920, %v2900, %v2936
        %v2953 = vsel %vm2921, %v2902, %v2937
        %v2954 = vsel %vm2922, %v2851, %v2938
        %v2955 = vsel %vm2923, %v2853, %v2939
        %v2956 = vsel %vm2924, %v2904, %v2940
        %v2957 = vsel %vm2925, %v2906, %v2941
        %v2958 = vsel %vm2926, %v2857, %v2942
        %v2959 = vsel %vm2927, %v2859, %v2943
        %v2960 = vsel %vm2928, %v2910, %v2944
        %v2961 = vsel %vm2929, %v2912, %v2945
        %v2962 = vsel %vm2930, %v2861, %v2946
        %v2963 = vsel %vm2931, %v2863, %v2947
        %v2964 = vsel %vm2932, %v2914, %v2948
        %v2965 = vsel %vm2933, %v2916, %v2949
        %v2966 = vpack.c.bf16 %v2954, %v2950
        %v2967 = vpack.c.bf16 %v2955, %v2951
        %v2968 = vpack.c.bf16 %v2956, %v2952
        %v2969 = vpack.c.bf16 %v2957, %v2953
        %v2970 = vpack.c.bf16 %v2962, %v2958
        %v2971 = vpack.c.bf16 %v2963, %v2959
        %v2972 = vpack.c.bf16 %v2964, %v2960
        %v2973 = vpack.c.bf16 %v2965, %v2961
        %v2974 = vld [vmem:[%s5] sm:$0xf]
        %v2975 = vld [vmem:[%s5 + $0x4] sm:$0xf]
        %v2976 = vld [vmem:[%s5 + $0x8] sm:$0xf]
        %v2977 = vld [vmem:[%s5 + $0xc] sm:$0xf]
        %v2978 = vld [vmem:[%s6] sm:$0xff]
        %v2979 = vld [vmem:[%s6 + $0x8] sm:$0xff]
        %v2980 = vld [vmem:[%s6 + $0x10] sm:$0xff]
        %v2981 = vld [vmem:[%s6 + $0x18] sm:$0xff]
        %2983 = vset.pattern.permute.xlu0 0
        %2984 = vperm.xlu0 %2983, %v2978
        %v2985 = vpop.permute.xlu0 %2984
        %2988 = vset.pattern.permute.xlu0 0
        %2989 = vperm.xlu0 %2988, %v2979
        %v2990 = vpop.permute.xlu0 %2989
        %2993 = vset.pattern.permute.xlu0 0
        %2994 = vperm.xlu0 %2993, %v2980
        %v2995 = vpop.permute.xlu0 %2994
        %2998 = vset.pattern.permute.xlu0 0
        %2999 = vperm.xlu0 %2998, %v2981
        %v3000 = vpop.permute.xlu0 %2999
        %v3006 = vunpack.c.l.b16 %v2974
        %v3007 = vunpack.c.l.b16 %v2975
        %v3008 = vunpack.c.l.b16 %v2976
        %v3009 = vunpack.c.l.b16 %v2977
        %v3010 = vpack.c.b16 %v3007, %v3006
        %v3011 = vpack.c.b16 %v3009, %v3008
        %v3013 = vsel %vm2805, %v3010, 0
        %v3016 = vsel %vm2805, %v3011, 0
        %3018 = vmatprep.subr.bf16.mxu0 %v2967
        %3019 = vmatpush1.bf16.msra.mxu0 %v2966
        %3020 = vmatprep.subr.bf16.mxu0 %v2971
        %3021 = vmatpush1.bf16.msra.mxu0 %v2970
        %3022 = vmatprep.subr.bf16.mxu0 0
        %3023 = vmatpush1.bf16.msra.mxu0 0
        %3024 = vmatprep.subr.bf16.mxu0 0
        %3025 = vmatpush1.bf16.msra.mxu0 0
        %3026 = vmatprep.subr.bf16.mxu0 0
        %3027 = vmatpush1.bf16.msra.mxu0 0
        %3028 = vmatprep.subr.bf16.mxu0 0
        %3029 = vmatpush1.bf16.msra.mxu0 0
        %3030 = vmatprep.subr.bf16.mxu0 0
        %3031 = vmatpush1.bf16.msra.mxu0 0
        %3032 = vmatprep.subr.bf16.mxu0 0
        %3033 = vmatpush1.bf16.msra.mxu0 0
        %3034 = vmatprep.subr.bf16.mxu0 0
        %3035 = vmatpush1.bf16.msra.mxu0 0
        %3036 = vmatprep.subr.bf16.mxu0 0
        %3037 = vmatpush1.bf16.msra.mxu0 0
        %3038 = vmatprep.subr.bf16.mxu0 0
        %3039 = vmatpush1.bf16.msra.mxu0 0
        %3040 = vmatprep.subr.bf16.mxu0 0
        %3041 = vmatpush1.bf16.msra.mxu0 0
        %3042 = vmatprep.subr.bf16.mxu0 0
        %3043 = vmatpush1.bf16.msra.mxu0 0
        %3044 = vmatprep.subr.bf16.mxu0 0
        %3045 = vmatpush1.bf16.msra.mxu0 0
        %3046 = vmatprep.subr.bf16.mxu0 0
        %3047 = vmatpush1.bf16.msra.mxu0 0
        %3048 = vmatprep.subr.bf16.mxu0 0
        %3049 = vmatpush1.bf16.msra.mxu0 0
        %3050 = vmatprep.mubr.bf16.mxu0 0
        %3051 = vmatmul.mubr.bf16.gmra.mrb[0].mxu0 %v3013
        %v3052 = vpop.f32.mrb[0].mxu0
        %v3053 = vadd.f32 %v2985, %v3052
        %v3054 = vpop.f32.mrb[0].mxu0
        %v3055 = vadd.f32 %v2985, %v3054
        %v3056 = vpop.f32.mrb[0].mxu0
        %v3057 = vadd.f32 %v2990, %v3056
        %v3058 = vpop.f32.mrb[0].mxu0
        %v3059 = vadd.f32 %v2990, %v3058
        %3060 = vmatprep.mubr.bf16.mxu0 0
        %3061 = vmatmul.mubr.bf16.gmra.mrb[0].mxu0 %v3016
        %v3062 = vpop.f32.mrb[0].mxu0
        %v3063 = vadd.f32 %v2995, %v3062
        %v3064 = vpop.f32.mrb[0].mxu0
        %v3065 = vadd.f32 %v2995, %v3064
        %v3066 = vpop.f32.mrb[0].mxu0
        %v3067 = vadd.f32 %v3000, %v3066
        %v3068 = vpop.f32.mrb[0].mxu0
        %v3069 = vadd.f32 %v3000, %v3068
        %3070 = vdwg.mxu0
        %3071 = vmatprep.subr.bf16.mxu0 %v2969
        %3072 = vmatpush1.bf16.msra.mxu0 %v2968
        %3073 = vmatprep.subr.bf16.mxu0 %v2973
        %3074 = vmatpush1.bf16.msra.mxu0 %v2972
        %3075 = vmatprep.subr.bf16.mxu0 0
        %3076 = vmatpush1.bf16.msra.mxu0 0
        %3077 = vmatprep.subr.bf16.mxu0 0
        %3078 = vmatpush1.bf16.msra.mxu0 0
        %3079 = vmatprep.subr.bf16.mxu0 0
        %3080 = vmatpush1.bf16.msra.mxu0 0
        %3081 = vmatprep.subr.bf16.mxu0 0
        %3082 = vmatpush1.bf16.msra.mxu0 0
        %3083 = vmatprep.subr.bf16.mxu0 0
        %3084 = vmatpush1.bf16.msra.mxu0 0
        %3085 = vmatprep.subr.bf16.mxu0 0
        %3086 = vmatpush1.bf16.msra.mxu0 0
        %3087 = vmatprep.subr.bf16.mxu0 0
        %3088 = vmatpush1.bf16.msra.mxu0 0
        %3089 = vmatprep.subr.bf16.mxu0 0
        %3090 = vmatpush1.bf16.msra.mxu0 0
        %3091 = vmatprep.subr.bf16.mxu0 0
        %3092 = vmatpush1.bf16.msra.mxu0 0
        %3093 = vmatprep.subr.bf16.mxu0 0
        %3094 = vmatpush1.bf16.msra.mxu0 0
        %3095 = vmatprep.subr.bf16.mxu0 0
        %3096 = vmatpush1.bf16.msra.mxu0 0
        %3097 = vmatprep.subr.bf16.mxu0 0
        %3098 = vmatpush1.bf16.msra.mxu0 0
        %3099 = vmatprep.subr.bf16.mxu0 0
        %3100 = vmatpush1.bf16.msra.mxu0 0
        %3101 = vmatprep.subr.bf16.mxu0 0
        %3102 = vmatpush1.bf16.msra.mxu0 0
        %3103 = vmatprep.mubr.bf16.mxu0 0
        %3104 = vmatmul.mubr.bf16.gmra.mrb[0].mxu0 %v3013
        %v3105 = vpop.f32.mrb[0].mxu0
        %v3106 = vadd.f32 %v2985, %v3105
        %v3107 = vpop.f32.mrb[0].mxu0
        %v3108 = vadd.f32 %v2985, %v3107
        %v3109 = vpop.f32.mrb[0].mxu0
        %v3110 = vadd.f32 %v2990, %v3109
        %v3111 = vpop.f32.mrb[0].mxu0
        %v3112 = vadd.f32 %v2990, %v3111
        %3113 = vmatprep.mubr.bf16.mxu0 0
        %3114 = vmatmul.mubr.bf16.gmra.mrb[0].mxu0 %v3016
        %v3115 = vpop.f32.mrb[0].mxu0
        %v3116 = vadd.f32 %v2995, %v3115
        %v3117 = vpop.f32.mrb[0].mxu0
        %v3118 = vadd.f32 %v2995, %v3117
        %v3119 = vpop.f32.mrb[0].mxu0
        %v3120 = vadd.f32 %v3000, %v3119
        %v3121 = vpop.f32.mrb[0].mxu0
        %v3122 = vadd.f32 %v3000, %v3121
        %3123 = vdwg.mxu0
        %vm3124 = vcmp.gt.f32.partialorder %v3053, 0.0
        %vm3125 = vcmp.gt.f32.partialorder %v3055, 0.0
        %vm3126 = vcmp.gt.f32.partialorder %v3106, 0.0
        %vm3127 = vcmp.gt.f32.partialorder %v3108, 0.0
        %vm3128 = vcmp.gt.f32.partialorder %v3057, 0.0
        %vm3129 = vcmp.gt.f32.partialorder %v3059, 0.0
        %vm3130 = vcmp.gt.f32.partialorder %v3110, 0.0
        %vm3131 = vcmp.gt.f32.partialorder %v3112, 0.0
        %vm3132 = vcmp.gt.f32.partialorder %v3063, 0.0
        %vm3133 = vcmp.gt.f32.partialorder %v3065, 0.0
        %vm3134 = vcmp.gt.f32.partialorder %v3116, 0.0
        %vm3135 = vcmp.gt.f32.partialorder %v3118, 0.0
        %vm3136 = vcmp.gt.f32.partialorder %v3067, 0.0
        %vm3137 = vcmp.gt.f32.partialorder %v3069, 0.0
        %vm3138 = vcmp.gt.f32.partialorder %v3120, 0.0
        %vm3139 = vcmp.gt.f32.partialorder %v3122, 0.0
        %v3140 = vmul.f32 %v3053, 0.2
        %v3141 = vmul.f32 %v3055, 0.2
        %v3142 = vmul.f32 %v3106, 0.2
        %v3143 = vmul.f32 %v3108, 0.2
        %v3144 = vmul.f32 %v3057, 0.2
        %v3145 = vmul.f32 %v3059, 0.2
        %v3146 = vmul.f32 %v3110, 0.2
        %v3147 = vmul.f32 %v3112, 0.2
        %v3148 = vmul.f32 %v3063, 0.2
        %v3149 = vmul.f32 %v3065, 0.2
        %v3150 = vmul.f32 %v3116, 0.2
        %v3151 = vmul.f32 %v3118, 0.2
        %v3152 = vmul.f32 %v3067, 0.2
        %v3153 = vmul.f32 %v3069, 0.2
        %v3154 = vmul.f32 %v3120, 0.2
        %v3155 = vmul.f32 %v3122, 0.2
        %v3156 = vsel %vm3124, %v3053, %v3140
        %v3157 = vsel %vm3125, %v3055, %v3141
        %v3158 = vsel %vm3126, %v3106, %v3142
        %v3159 = vsel %vm3127, %v3108, %v3143
        %v3160 = vsel %vm3128, %v3057, %v3144
        %v3161 = vsel %vm3129, %v3059, %v3145
        %v3162 = vsel %vm3130, %v3110, %v3146
        %v3163 = vsel %vm3131, %v3112, %v3147
        %v3164 = vsel %vm3132, %v3063, %v3148
        %v3165 = vsel %vm3133, %v3065, %v3149
        %v3166 = vsel %vm3134, %v3116, %v3150
        %v3167 = vsel %vm3135, %v3118, %v3151
        %v3168 = vsel %vm3136, %v3067, %v3152
        %v3169 = vsel %vm3137, %v3069, %v3153
        %v3170 = vsel %vm3138, %v3120, %v3154
        %v3171 = vsel %vm3139, %v3122, %v3155
        %v3172 = vpack.c.bf16 %v3160, %v3156
        %v3173 = vpack.c.bf16 %v3161, %v3157
        %v3174 = vpack.c.bf16 %v3162, %v3158
        %v3175 = vpack.c.bf16 %v3163, %v3159
        %v3176 = vpack.c.bf16 %v3168, %v3164
        %v3177 = vpack.c.bf16 %v3169, %v3165
        %v3178 = vpack.c.bf16 %v3170, %v3166
        %v3179 = vpack.c.bf16 %v3171, %v3167
        %v3180 = vld [vmem:[%s7] sm:$0xf]
        %v3181 = vld [vmem:[%s8] sm:$0xff]
        %3183 = vset.pattern.permute.xlu0 0
        %3184 = vperm.xlu0 %3183, %v3181
        %v3185 = vpop.permute.xlu0 %3184
        %v3188 = vsel %vm2805, %v3180, 0
        %3190 = vmatprep.subr.bf16.mxu0 %v3173
        %3191 = vmatpush1.bf16.msra.mxu0 %v3172
        %3192 = vmatprep.subr.bf16.mxu0 %v3177
        %3193 = vmatpush1.bf16.msra.mxu0 %v3176
        %3194 = vmatprep.subr.bf16.mxu0 0
        %3195 = vmatpush1.bf16.msra.mxu0 0
        %3196 = vmatprep.subr.bf16.mxu0 0
        %3197 = vmatpush1.bf16.msra.mxu0 0
        %3198 = vmatprep.subr.bf16.mxu0 0
        %3199 = vmatpush1.bf16.msra.mxu0 0
        %3200 = vmatprep.subr.bf16.mxu0 0
        %3201 = vmatpush1.bf16.msra.mxu0 0
        %3202 = vmatprep.subr.bf16.mxu0 0
        %3203 = vmatpush1.bf16.msra.mxu0 0
        %3204 = vmatprep.subr.bf16.mxu0 0
        %3205 = vmatpush1.bf16.msra.mxu0 0
        %3206 = vmatprep.subr.bf16.mxu0 0
        %3207 = vmatpush1.bf16.msra.mxu0 0
        %3208 = vmatprep.subr.bf16.mxu0 0
        %3209 = vmatpush1.bf16.msra.mxu0 0
        %3210 = vmatprep.subr.bf16.mxu0 0
        %3211 = vmatpush1.bf16.msra.mxu0 0
        %3212 = vmatprep.subr.bf16.mxu0 0
        %3213 = vmatpush1.bf16.msra.mxu0 0
        %3214 = vmatprep.subr.bf16.mxu0 0
        %3215 = vmatpush1.bf16.msra.mxu0 0
        %3216 = vmatprep.subr.bf16.mxu0 0
        %3217 = vmatpush1.bf16.msra.mxu0 0
        %3218 = vmatprep.subr.bf16.mxu0 0
        %3219 = vmatpush1.bf16.msra.mxu0 0
        %3220 = vmatprep.subr.bf16.mxu0 0
        %3221 = vmatpush1.bf16.msra.mxu0 0
        %3222 = vmatprep.mubr.bf16.mxu0 0
        %3223 = vmatmul.mubr.bf16.gmra.mrb[0].mxu0 %v3188
        %v3224 = vpop.f32.mrb[0].mxu0
        %v3225 = vadd.f32 %v3185, %v3224
        %v3226 = vpop.f32.mrb[0].mxu0
        %v3227 = vadd.f32 %v3185, %v3226
        %v3228 = vpop.f32.mrb[0].mxu0
        %v3229 = vpop.f32.mrb[0].mxu0
        %3230 = vdwg.mxu0
        %3231 = vmatprep.subr.bf16.mxu0 %v3175
        %3232 = vmatpush1.bf16.msra.mxu0 %v3174
        %3233 = vmatprep.subr.bf16.mxu0 %v3179
        %3234 = vmatpush1.bf16.msra.mxu0 %v3178
        %3235 = vmatprep.subr.bf16.mxu0 0
        %3236 = vmatpush1.bf16.msra.mxu0 0
        %3237 = vmatprep.subr.bf16.mxu0 0
        %3238 = vmatpush1.bf16.msra.mxu0 0
        %3239 = vmatprep.subr.bf16.mxu0 0
        %3240 = vmatpush1.bf16.msra.mxu0 0
        %3241 = vmatprep.subr.bf16.mxu0 0
        %3242 = vmatpush1.bf16.msra.mxu0 0
        %3243 = vmatprep.subr.bf16.mxu0 0
        %3244 = vmatpush1.bf16.msra.mxu0 0
        %3245 = vmatprep.subr.bf16.mxu0 0
        %3246 = vmatpush1.bf16.msra.mxu0 0
        %3247 = vmatprep.subr.bf16.mxu0 0
        %3248 = vmatpush1.bf16.msra.mxu0 0
        %3249 = vmatprep.subr.bf16.mxu0 0
        %3250 = vmatpush1.bf16.msra.mxu0 0
        %3251 = vmatprep.subr.bf16.mxu0 0
        %3252 = vmatpush1.bf16.msra.mxu0 0
        %3253 = vmatprep.subr.bf16.mxu0 0
        %3254 = vmatpush1.bf16.msra.mxu0 0
        %3255 = vmatprep.subr.bf16.mxu0 0
        %3256 = vmatpush1.bf16.msra.mxu0 0
        %3257 = vmatprep.subr.bf16.mxu0 0
        %3258 = vmatpush1.bf16.msra.mxu0 0
        %3259 = vmatprep.subr.bf16.mxu0 0
        %3260 = vmatpush1.bf16.msra.mxu0 0
        %3261 = vmatprep.subr.bf16.mxu0 0
        %3262 = vmatpush1.bf16.msra.mxu0 0
        %3263 = vmatprep.mubr.bf16.mxu0 0
        %3264 = vmatmul.mubr.bf16.gmra.mrb[0].mxu0 %v3188
        %v3265 = vpop.f32.mrb[0].mxu0
        %v3266 = vadd.f32 %v3185, %v3265
        %v3267 = vpop.f32.mrb[0].mxu0
        %v3268 = vadd.f32 %v3185, %v3267
        %v3269 = vpop.f32.mrb[0].mxu0
        %v3270 = vpop.f32.mrb[0].mxu0
        %3271 = vdwg.mxu0
        %3272 = vst [vmem:[%s326] sm:$0xff] %v3225
        %3273 = vst [vmem:[%s326 + $0x8] sm:$0xff] %v3227
        %3274 = vst [vmem:[%s326 + $0x10] sm:$0xff] %v3266
        %3275 = vst [vmem:[%s326 + $0x18] sm:$0xff] %v3268
        %s3276 = sand.u32 %s225, 1
        %s3277 = scalar_lea.sflag [#allocation4], %s3276
        %s3278 = sand.u32 %s225, 1
        %s3279 = smul.addr %s3278, 32
        %s3280 = scalar_lea.vmem [#allocation3], %s3279
        // Predicated region
        $region57: #{posenc_mlp.1} parent=55 // pred_check
          %p3281 = pneg %p235
        $region58: #{posenc_mlp.1} parent=55 // pred_check_branch
          %3283 = sbr.rel (%p3281) target = $region60
        $region59: #{posenc_mlp.1} parent=55 // pred_region
          %s3284 = smul.u32 4, %s23
          %s3286 = ssub.s32 512, 512
          %3287 = vsyncadd %s3277, %s3286
          %s3288 = smul.addr %s3284, 128
          %s3289 = scalar_lea.hbm %s9, %s3288
          %s3291 = sshll.u32 %s3280, 4
          %s3292 = int_to_ptr.vmem [resolvable:$true] %s3291
          %3294 = dma.vmem_to_hbm [thread:$0]  %s3292, 512, %s3289, %s3277
        $region60: #{posenc_mlp.1} parent=55 // pred_fallthru
          _
      $region56: #{posenc_mlp.1} parent=5 // pred_fallthru
        _
      %p3295 = scmp.le.s32.totalorder 2, %s18
      // Predicated region
      $region61: #{posenc_mlp.1} parent=5 // pred_check
        %p3296 = pneg %p3295
      $region62: #{posenc_mlp.1} parent=5 // pred_check_branch
        %3298 = sbr.rel (%p3296) target = $region64
      $region63: #{posenc_mlp.1} parent=5 // pred_region
        %s3299 = ssub.s32 %s18, 2
        // Predicated region
        $region65: #{posenc_mlp.1} parent=63 // pred_check
          %p3300 = pneg %p241
        $region66: #{posenc_mlp.1} parent=63 // pred_check_branch
          %3302 = sbr.rel (%p3300) target = $region68
        $region67: #{posenc_mlp.1} parent=63 // pred_region
          %s3303 = sand.u32 %s226, 1
          %s3304 = scalar_lea.sflag [#allocation4], %s3303
          %s3305 = sand.u32 %s226, 1
          %s3306 = smul.addr %s3305, 32
          %s3307 = scalar_lea.vmem [#allocation3], %s3306
          %3308 = dma.done %s3304, 512
        $region68: #{posenc_mlp.1} parent=63 // pred_fallthru
          _
      $region64: #{posenc_mlp.1} parent=5 // pred_fallthru
        _
    $region6: #{posenc_mlp.1} parent=1 // loop_footer
      %s22 = sadd.s32 1, %s18
    $region7: #{posenc_mlp.1} parent=1 // loop_footer_branch
      %17 = sbr.rel target = $region3
    $region8: #{posenc_mlp.1} parent=1 // loop_exit
      _
    %3309 = vsyncpa [#allocation4], 1
    %s3310 = scalar_lea.sflag [#allocation4], 1
    %3311 = vsyncpa %s3310, 1

</llo_original>
